<compile_context>
chip_gen: v7x
topology: tpu7x:2x2x1
jax: 0.10.0
libtpu: 0.0.40
codegen_flags: <defaults>
</compile_context>

<pallas_src>
import functools

import jax
import jax.numpy as jnp
import numpy as np
from jax import lax
from jax.experimental import pallas as pl
from jax.experimental.pallas import tpu as pltpu

EPS = 1e-5
LANE = 128


# --------------------------------------------------------------------------------
# Small helpers
# --------------------------------------------------------------------------------
def _pad_up(n, m):
    return ((n + m - 1) // m) * m


def _pad_lanes(v, p):
    """1-D per-channel parameter (C,) -> zero-padded f32 row (1, p)."""
    v = jnp.asarray(v, jnp.float32)
    return jnp.pad(v, (0, p - v.shape[0])).reshape(1, p)


def _prep_conv_w(w, cin_p, cout_p, dtype):
    """PyTorch Conv1d weight (Cout, Cin, 3) -> lane-padded (3, Cin_p, Cout_p)."""
    co, ci, _ = w.shape
    wt = jnp.transpose(jnp.asarray(w, jnp.float32), (2, 1, 0))      # (3, Cin, Cout)
    wt = jnp.pad(wt, ((0, 0), (0, cin_p - ci), (0, cout_p - co)))
    return wt.astype(dtype)


@functools.lru_cache(maxsize=1)
def _tpu_budgets():
    """(row_tile_target, vmem_limit_bytes) chosen per TPU generation."""
    vmem_cap = None
    try:
        info = pltpu.get_tpu_info()
        vmem_cap = getattr(info, "vmem_capacity_bytes", None)
    except Exception:
        vmem_cap = None
    if vmem_cap is None:
        vmem_cap = 64 << 20                       # assume smallest (v7x) if unknown
    if vmem_cap >= (128 << 20):                   # v5e / v6e: 128 MiB VMEM
        return 3072, 96 << 20
    return 1024, 48 << 20                         # v7x: 64 MiB VMEM


def _samples_per_tile(n, l, target):
    """Largest divisor S of n whose (S*l)-row tile is <= target and 8-row aligned."""
    if n * l <= target:
        return n
    cands = [s for s in range(1, n + 1)
             if n % s == 0 and (s == n or (s * l) % 8 == 0)]
    good = [s for s in cands if s * l <= target]
    return max(good) if good else min(cands)


def _fold_bn(stats, gamma_p, beta_p, count):
    """[sum; sumsq] (2, Cp) -> folded BN scale/shift, each (1, Cp). Biased variance."""
    mean = stats[0:1] / count
    var = jnp.maximum(stats[1:2] / count - mean * mean, 0.0)
    scale = gamma_p * lax.rsqrt(var + EPS)
    shift = beta_p - mean * scale
    return scale, shift


# In-kernel row shifts (static slices + sublane concat; exact for any row count).
def _shift_down(a):
    """Row t of the result holds a[t-1]; row 0 is zero."""
    if a.shape[0] == 1:
        return jnp.zeros_like(a)
    z = jnp.zeros((1, a.shape[1]), a.dtype)
    return jnp.concatenate([z, a[:-1, :]], axis=0)


def _shift_up(a):
    """Row t of the result holds a[t+1]; last row is zero."""
    if a.shape[0] == 1:
        return jnp.zeros_like(a)
    z = jnp.zeros((1, a.shape[1]), a.dtype)
    return jnp.concatenate([a[1:, :], z], axis=0)


# --------------------------------------------------------------------------------
# Kernel 1: (chain of BN-affine + ReLU) -> Conv1d(k=3, p=1) (+ residual) (+ stats)
# --------------------------------------------------------------------------------
def _bn_relu_conv(h, affines, w3, bias, resid, *, n, l, cin_p, cout_p,
                  emit_stats, act_dtype, compute_dtype, row_tile, vmem_limit):
    rows = n * l
    s = _samples_per_tile(n, l, row_tile)
    rt = s * l
    grid_n = rows // rt
    n_aff = len(affines)
    has_resid = resid is not None
    cdt = compute_dtype

    def kernel(*refs):
        idx = 0
        h_ref = refs[idx]; idx += 1
        aff_refs = refs[idx: idx + 2 * n_aff]; idx += 2 * n_aff
        w_ref = refs[idx]; idx += 1
        b_ref = refs[idx]; idx += 1
        resid_ref = None
        if has_resid:
            resid_ref = refs[idx]; idx += 1
        y_ref = refs[idx]; idx += 1
        st_ref = refs[idx] if emit_stats else None

        a = h_ref[...].astype(jnp.float32)
        for j in range(n_aff):                      # folded BN affine(s) + ReLU
            a = jnp.maximum(a * aff_refs[2 * j][...] + aff_refs[2 * j + 1][...], 0.0)

        # sample-local position masks built in-register (no HBM mask inputs)
        pos = lax.broadcasted_iota(jnp.int32, (rt, 1), 0) % l
        nf = pos != 0
        nl = pos != (l - 1)
        a_m1 = jnp.where(nf, _shift_down(a), 0.0)    # row t holds a[t-1]
        a_p1 = jnp.where(nl, _shift_up(a), 0.0)      # row t holds a[t+1]

        # 3-tap conv as three accumulated MXU dots (no (rt, 3*Cin) concat buffer)
        y = jnp.dot(a.astype(cdt), w_ref[1], preferred_element_type=jnp.float32)
        y += jnp.dot(a_m1.astype(cdt), w_ref[0], preferred_element_type=jnp.float32)
        y += jnp.dot(a_p1.astype(cdt), w_ref[2], preferred_element_type=jnp.float32)
        y = y + b_ref[...]
        if has_resid:
            y = y + resid_ref[...].astype(jnp.float32)
        y_ref[...] = y.astype(y_ref.dtype)
        if emit_stats:
            st = jnp.concatenate(
                [jnp.sum(y, axis=0, keepdims=True),
                 jnp.sum(y * y, axis=0, keepdims=True)], axis=0)
            st_ref[...] = st.reshape(1, 2, cout_p)

    in_specs = [pl.BlockSpec((rt, cin_p), lambda i: (i, 0))]
    args = [h]
    for (scl, shf) in affines:
        in_specs += [pl.BlockSpec((1, cin_p), lambda i: (0, 0)),
                     pl.BlockSpec((1, cin_p), lambda i: (0, 0))]
        args += [scl, shf]
    in_specs += [pl.BlockSpec((3, cin_p, cout_p), lambda i: (0, 0, 0)),
                 pl.BlockSpec((1, cout_p), lambda i: (0, 0))]
    args += [w3, bias]
    if has_resid:
        in_specs.append(pl.BlockSpec((rt, cout_p), lambda i: (i, 0)))
        args.append(resid)

    out_shape = [jax.ShapeDtypeStruct((rows, cout_p), act_dtype)]
    out_specs = [pl.BlockSpec((rt, cout_p), lambda i: (i, 0))]
    if emit_stats:
        out_shape.append(jax.ShapeDtypeStruct((grid_n, 2, cout_p), jnp.float32))
        out_specs.append(pl.BlockSpec((1, 2, cout_p), lambda i: (i, 0, 0)))

    a_bytes = jnp.dtype(act_dtype).itemsize
    c_bytes = jnp.dtype(cdt).itemsize
    flops = 2 * rows * 3 * cin_p * cout_p + rows * cin_p * (4 * n_aff + 6)
    bytes_acc = (a_bytes * rows * (cin_p + cout_p * (2 if has_resid else 1))
                 + c_bytes * 3 * cin_p * cout_p + 4 * 8 * (cin_p + cout_p))
    out = pl.pallas_call(
        kernel,
        grid=(grid_n,),
        in_specs=in_specs,
        out_specs=tuple(out_specs),
        out_shape=tuple(out_shape),
        compiler_params=pltpu.CompilerParams(
            dimension_semantics=("parallel",), vmem_limit_bytes=vmem_limit),
        cost_estimate=pl.CostEstimate(flops=int(flops), transcendentals=0,
                                      bytes_accessed=int(bytes_acc)),
    )(*args)
    if emit_stats:
        y, st = out
        return y, st.sum(axis=0)
    return out[0], None


# --------------------------------------------------------------------------------
# Kernel 2: stats-only reduction of ReLU(scale*h + shift) (no activation write)
# --------------------------------------------------------------------------------
def _affine_relu_stats_only(h, scale, shift, *, n, l, cp, row_tile, vmem_limit):
    rows = n * l
    s = _samples_per_tile(n, l, row_tile)
    rt = s * l
    grid_n = rows // rt

    def kernel(h_ref, sc_ref, sh_ref, st_ref):
        a = jnp.maximum(h_ref[...].astype(jnp.float32) * sc_ref[...] + sh_ref[...],
                        0.0)
        st = jnp.concatenate(
            [jnp.sum(a, axis=0, keepdims=True),
             jnp.sum(a * a, axis=0, keepdims=True)], axis=0)
        st_ref[...] = st.reshape(1, 2, cp)

    st = pl.pallas_call(
        kernel,
        grid=(grid_n,),
        in_specs=[pl.BlockSpec((rt, cp), lambda i: (i, 0)),
                  pl.BlockSpec((1, cp), lambda i: (0, 0)),
                  pl.BlockSpec((1, cp), lambda i: (0, 0))],
        out_specs=pl.BlockSpec((1, 2, cp), lambda i: (i, 0, 0)),
        out_shape=jax.ShapeDtypeStruct((grid_n, 2, cp), jnp.float32),
        compiler_params=pltpu.CompilerParams(
            dimension_semantics=("parallel",), vmem_limit_bytes=vmem_limit),
        cost_estimate=pl.CostEstimate(flops=int(6 * rows * cp), transcendentals=0,
                                      bytes_accessed=int(4 * rows * cp)),
    )(h, scale, shift)
    return st.sum(axis=0)


# --------------------------------------------------------------------------------
# Kernel 3: ConstantPad1d((0,1)) + MaxPool1d(k=3, s=2), fused with output stats
# --------------------------------------------------------------------------------
def _pool_stats(h, *, n, l, cp, act_dtype, row_tile, vmem_limit):
    if l % 2 != 0:
        # TODO(synk): odd pooled sequence lengths are not supported by this path.
        raise NotImplementedError("odd sequence length in pooling stage")
    lo = l // 2
    # (n*l, cp) -> (n*lo, 2*cp) is a free reshape: row t holds [x[2t] | x[2t+1]].
    x2 = h.reshape(n, lo, 2 * cp).reshape(n * lo, 2 * cp)
    s = _samples_per_tile(n, lo, row_tile)
    rt = s * lo
    grid_n = (n * lo) // rt

    def kernel(x_ref, sc_ref, st_ref):
        xv = x_ref[...].astype(jnp.float32)
        a = xv[:, :cp]                                     # x[2t]
        b = xv[:, cp:]                                     # x[2t+1]
        pos = lax.broadcasted_iota(jnp.int32, (rt, 1), 0) % lo
        nl = pos != (lo - 1)
        c = jnp.where(nl, _shift_up(a), 0.0)               # x[2t+2]; 0 at right pad
        scv = jnp.maximum(jnp.maximum(a, b), c)
        sc_ref[...] = scv.astype(sc_ref.dtype)
        st = jnp.concatenate(
            [jnp.sum(scv, axis=0, keepdims=True),
             jnp.sum(scv * scv, axis=0, keepdims=True)], axis=0)
        st_ref[...] = st.reshape(1, 2, cp)

    sc, st = pl.pallas_call(
        kernel,
        grid=(grid_n,),
        in_specs=[pl.BlockSpec((rt, 2 * cp), lambda i: (i, 0))],
        out_specs=(pl.BlockSpec((rt, cp), lambda i: (i, 0)),
                   pl.BlockSpec((1, 2, cp), lambda i: (i, 0, 0))),
        out_shape=(jax.ShapeDtypeStruct((n * lo, cp), act_dtype),
                   jax.ShapeDtypeStruct((grid_n, 2, cp), jnp.float32)),
        compiler_params=pltpu.CompilerParams(
            dimension_semantics=("parallel",), vmem_limit_bytes=vmem_limit),
        cost_estimate=pl.CostEstimate(flops=int(8 * n * lo * cp), transcendentals=0,
                                      bytes_accessed=int(4 * 3 * n * lo * cp)),
    )(x2)
    return sc, st.sum(axis=0), lo


# --------------------------------------------------------------------------------
# Kernel 4: whole ResnetBlock in one grid-less call (small tail blocks)
#           pool -> BN/ReLU/conv -> BN/ReLU/conv -> + shortcut (exact batch stats)
# --------------------------------------------------------------------------------
def _resnet_block_fused(x2, w1, b1, g1, be1, w2, b2, g2, be2, *, n, lo, cp,
                        act_dtype, compute_dtype, vmem_limit):
    rows = n * lo
    cdt = compute_dtype

    def kernel(x_ref, w1_ref, b1_ref, g1_ref, be1_ref,
               w2_ref, b2_ref, g2_ref, be2_ref, o_ref):
        inv = jnp.float32(1.0 / rows)
        xv = x_ref[...].astype(jnp.float32)
        a = xv[:, :cp]
        b = xv[:, cp:]
        pos = lax.broadcasted_iota(jnp.int32, (rows, 1), 0) % lo
        nf = pos != 0
        nl = pos != (lo - 1)
        c = jnp.where(nl, _shift_up(a), 0.0)
        sc = jnp.maximum(jnp.maximum(a, b), c)              # maxpool shortcut

        def bn_relu(v, g_ref, be_ref):
            mean = jnp.sum(v, axis=0, keepdims=True) * inv
            var = jnp.maximum(jnp.sum(v * v, axis=0, keepdims=True) * inv
                              - mean * mean, 0.0)
            scale = g_ref[...] * lax.rsqrt(var + EPS)
            return jnp.maximum(v * scale + (be_ref[...] - mean * scale), 0.0)

        def conv(v, w_ref, b_ref):
            v_m1 = jnp.where(nf, _shift_down(v), 0.0)
            v_p1 = jnp.where(nl, _shift_up(v), 0.0)
            y = jnp.dot(v.astype(cdt), w_ref[1], preferred_element_type=jnp.float32)
            y += jnp.dot(v_m1.astype(cdt), w_ref[0],
                         preferred_element_type=jnp.float32)
            y += jnp.dot(v_p1.astype(cdt), w_ref[2],
                         preferred_element_type=jnp.float32)
            return y + b_ref[...]

        h1 = conv(bn_relu(sc, g1_ref, be1_ref), w1_ref, b1_ref)
        h2 = conv(bn_relu(h1, g2_ref, be2_ref), w2_ref, b2_ref)
        o_ref[...] = (h2 + sc).astype(o_ref.dtype)

    vmem = pl.BlockSpec(memory_space=pltpu.MemorySpace.VMEM)
    flops = 2 * 2 * rows * 3 * cp * cp + 20 * rows * cp
    bytes_acc = (jnp.dtype(act_dtype).itemsize * rows * 3 * cp
                 + jnp.dtype(cdt).itemsize * 6 * cp * cp)
    return pl.pallas_call(
        kernel,
        in_specs=[vmem] * 9,
        out_specs=vmem,
        out_shape=jax.ShapeDtypeStruct((rows, cp), act_dtype),
        compiler_params=pltpu.CompilerParams(vmem_limit_bytes=vmem_limit),
        cost_estimate=pl.CostEstimate(flops=int(flops), transcendentals=int(2 * cp),
                                      bytes_accessed=int(bytes_acc)),
    )(x2, w1, b1, g1, be1, w2, b2, g2, be2)


# --------------------------------------------------------------------------------
# Kernel 5: FC head: Linear -> BN1d(batch stats) -> ReLU -> Linear  (single call)
# --------------------------------------------------------------------------------
def _fc_head(flat, w1, b1, g, be, w2, b2, n_rows, *, compute_dtype, vmem_limit):
    n, dp = flat.shape
    kp = w1.shape[1]
    cdt = compute_dtype

    def kernel(x_ref, w1_ref, b1_ref, g_ref, be_ref, w2_ref, b2_ref, o_ref):
        z = jnp.dot(x_ref[...].astype(cdt), w1_ref[...],
                    preferred_element_type=jnp.float32) + b1_ref[...]
        inv_n = jnp.float32(1.0 / n_rows)
        mean = jnp.sum(z, axis=0, keepdims=True) * inv_n
        var = jnp.maximum(jnp.sum(z * z, axis=0, keepdims=True) * inv_n
                          - mean * mean, 0.0)
        scale = g_ref[...] * lax.rsqrt(var + EPS)
        a = jnp.maximum(z * scale + (be_ref[...] - mean * scale), 0.0)
        o_ref[...] = (jnp.dot(a.astype(cdt), w2_ref[...],
                              preferred_element_type=jnp.float32) + b2_ref[...])

    vmem = pl.BlockSpec(memory_space=pltpu.MemorySpace.VMEM)
    return pl.pallas_call(
        kernel,
        in_specs=[vmem] * 7,
        out_specs=vmem,
        out_shape=jax.ShapeDtypeStruct((n, kp), jnp.float32),
        compiler_params=pltpu.CompilerParams(vmem_limit_bytes=vmem_limit),
        cost_estimate=pl.CostEstimate(
            flops=int(2 * n * dp * kp + 2 * n * kp * kp), transcendentals=int(kp),
            bytes_accessed=int(4 * (n * dp + dp * kp + kp * kp + n * kp))),
    )(flat, w1, b1, g, be, w2, b2)


# --------------------------------------------------------------------------------
# Full DPCNN forward
# --------------------------------------------------------------------------------
def dpcnn_forward(x, params, *, compute_dtype=jnp.bfloat16, act_dtype=jnp.bfloat16,
                  fuse_resnet=True):
    """x: (N, seq_length, embed_dim) float32 — same input as DPCNN.forward."""
    n, seq, e = x.shape
    f = params["region"]["w"].shape[0]
    k = params["fc"]["w1"].shape[0]
    ep, fp, kp = _pad_up(e, LANE), _pad_up(f, LANE), _pad_up(k, LANE)
    row_tile, vmem_limit = _tpu_budgets()
    cdt, adt = compute_dtype, act_dtype

    # TODO(synk): tiny channel counts (like this toy config) waste lanes under the
    # pad-to-128 scheme; a sublane-packed small-channel path is not implemented.

    # channel-last, lane-padded activation rows; single layout conversion at entry.
    h = jnp.pad(jnp.asarray(x, jnp.float32), ((0, 0), (0, 0), (0, ep - e)))
    h = h.reshape(n * seq, ep).astype(adt)

    common = dict(act_dtype=adt, compute_dtype=cdt,
                  row_tile=row_tile, vmem_limit=vmem_limit)

    # --- region layer: Conv1d(E->F) + stats of its output (for its BN) ----------
    reg = params["region"]
    u, st_u = _bn_relu_conv(h, (), _prep_conv_w(reg["w"], ep, fp, cdt),
                            _pad_lanes(reg["b"], fp), None,
                            n=n, l=seq, cin_p=ep, cout_p=fp,
                            emit_stats=True, **common)
    sc_r, sh_r = _fold_bn(st_u, _pad_lanes(reg["g"], fp),
                          _pad_lanes(reg["be"], fp), n * seq)
    # stats of out0 = ReLU(BN(u)) (Dropout(0.2) = identity) without writing out0.
    st_out0 = _affine_relu_stats_only(u, sc_r, sh_r, n=n, l=seq, cp=fp,
                                      row_tile=row_tile, vmem_limit=vmem_limit)
    # TODO(synk): Dropout(0.2)/Dropout(0.5) are training-time stochastic ops,
    # evaluated as identity here; BN running-stat buffers are not updated.

    # --- conv_block: BN,ReLU,Conv, BN,ReLU,Conv ----------------------------------
    cb = params["conv_block"]
    s1, t1 = _fold_bn(st_out0, _pad_lanes(cb["g1"], fp), _pad_lanes(cb["be1"], fp),
                      n * seq)
    # first conv applies BOTH affine+ReLU stages (region BN and conv_block BN1) on u
    h1, st_h1 = _bn_relu_conv(u, ((sc_r, sh_r), (s1, t1)),
                              _prep_conv_w(cb["w1"], fp, fp, cdt),
                              _pad_lanes(cb["b1"], fp), None,
                              n=n, l=seq, cin_p=fp, cout_p=fp,
                              emit_stats=True, **common)
    s2, t2 = _fold_bn(st_h1, _pad_lanes(cb["g2"], fp), _pad_lanes(cb["be2"], fp),
                      n * seq)
    cur, _ = _bn_relu_conv(h1, ((s2, t2),), _prep_conv_w(cb["w2"], fp, fp, cdt),
                           _pad_lanes(cb["b2"], fp), None,
                           n=n, l=seq, cin_p=fp, cout_p=fp,
                           emit_stats=False, **common)
    cur_l = seq

    # --- ResnetBlocks -------------------------------------------------------------
    for blk in params["blocks"]:
        if cur_l % 2 != 0:
            # TODO(synk): odd pooled sequence lengths are unsupported.
            raise NotImplementedError("odd sequence length in pooling stage")
        lo = cur_l // 2
        rows_o = n * lo
        w1p = _prep_conv_w(blk["w1"], fp, fp, cdt)
        w2p = _prep_conv_w(blk["w2"], fp, fp, cdt)
        b1p, b2p = _pad_lanes(blk["b1"], fp), _pad_lanes(blk["b2"], fp)
        g1p, be1p = _pad_lanes(blk["g1"], fp), _pad_lanes(blk["be1"], fp)
        g2p, be2p = _pad_lanes(blk["g2"], fp), _pad_lanes(blk["be2"], fp)

        fused_ok = (fuse_resnet and rows_o <= row_tile
                    and rows_o * fp * 48 + 6 * fp * fp * 4 <= vmem_limit // 3)
        if fused_ok:
            x2 = cur.reshape(n, lo, 2 * fp).reshape(rows_o, 2 * fp)
            cur = _resnet_block_fused(x2, w1p, b1p, g1p, be1p, w2p, b2p, g2p, be2p,
                                      n=n, lo=lo, cp=fp, act_dtype=adt,
                                      compute_dtype=cdt, vmem_limit=vmem_limit)
        else:
            sc, st_sc, lo = _pool_stats(cur, n=n, l=cur_l, cp=fp, act_dtype=adt,
                                        row_tile=row_tile, vmem_limit=vmem_limit)
            s1, t1 = _fold_bn(st_sc, g1p, be1p, rows_o)
            h1, st_h1 = _bn_relu_conv(sc, ((s1, t1),), w1p, b1p, None,
                                      n=n, l=lo, cin_p=fp, cout_p=fp,
                                      emit_stats=True, **common)
            s2, t2 = _fold_bn(st_h1, g2p, be2p, rows_o)
            cur, _ = _bn_relu_conv(h1, ((s2, t2),), w2p, b2p, sc,
                                   n=n, l=lo, cin_p=fp, cout_p=fp,
                                   emit_stats=False, **common)
        cur_l = lo

    # --- FC head: Linear -> BN1d -> ReLU -> (Dropout 0.5: identity) -> Linear -----
    fc = params["fc"]
    flat = cur.reshape(n, cur_l * fp)
    # PyTorch flattens (N, F, L) channel-major; permute/pad the Linear weight instead
    # of transposing the (channel-last) activations.
    w1 = jnp.asarray(fc["w1"], jnp.float32).reshape(k, f, cur_l)
    w1 = jnp.transpose(w1, (2, 1, 0))                                # (L_f, F, K)
    w1 = jnp.pad(w1, ((0, 0), (0, fp - f), (0, kp - k))).reshape(cur_l * fp, kp)
    w2 = jnp.pad(jnp.asarray(fc["w2"], jnp.float32).T, ((0, kp - k), (0, kp - k)))
    out = _fc_head(flat, w1.astype(cdt), _pad_lanes(fc["b1"], kp),
                   _pad_lanes(fc["g"], kp), _pad_lanes(fc["be"], kp),
                   w2.astype(cdt), _pad_lanes(fc["b2"], kp), n,
                   compute_dtype=cdt, vmem_limit=vmem_limit)
    return out[:, :k]


# --------------------------------------------------------------------------------
# Pure-JAX reference (PyTorch semantics: training-mode BN, dropout = identity)
# --------------------------------------------------------------------------------
def dpcnn_reference(x, params):
    xc = jnp.transpose(jnp.asarray(x, jnp.float32), (0, 2, 1))        # (N, C, L)

    def conv1d(h, w, b):
        y = lax.conv_general_dilated(h, jnp.asarray(w, jnp.float32), (1,), [(1, 1)],
                                     dimension_numbers=("NCH", "OIH", "NCH"),
                                     precision=lax.Precision.HIGHEST)
        return y + b.reshape(1, -1, 1)

    def bn(h, g, be):
        mean = h.mean(axis=(0, 2), keepdims=True)
        var = ((h - mean) ** 2).mean(axis=(0, 2), keepdims=True)
        return ((h - mean) / jnp.sqrt(var + EPS) * g.reshape(1, -1, 1)
                + be.reshape(1, -1, 1))

    reg = params["region"]
    out = jax.nn.relu(bn(conv1d(xc, reg["w"], reg["b"]), reg["g"], reg["be"]))

    cb = params["conv_block"]
    h = conv1d(jax.nn.relu(bn(out, cb["g1"], cb["be1"])), cb["w1"], cb["b1"])
    out = conv1d(jax.nn.relu(bn(h, cb["g2"], cb["be2"])), cb["w2"], cb["b2"])

    for blk in params["blocks"]:
        l = out.shape[2]
        lo = (l + 1 - 3) // 2 + 1
        xp = jnp.pad(out, ((0, 0), (0, 0), (0, 1)))
        sc = jnp.maximum(jnp.maximum(xp[:, :, 0:2 * lo:2], xp[:, :, 1:2 * lo:2]),
                         xp[:, :, 2:2 * lo + 1:2])
        h = conv1d(jax.nn.relu(bn(sc, blk["g1"], blk["be1"])), blk["w1"], blk["b1"])
        h = conv1d(jax.nn.relu(bn(h, blk["g2"], blk["be2"])), blk["w2"], blk["b2"])
        out = h + sc

    fc = params["fc"]
    flat = out.reshape(out.shape[0], -1)
    z = jnp.dot(flat, fc["w1"].T, precision=lax.Precision.HIGHEST) + fc["b1"]
    mean = z.mean(axis=0, keepdims=True)
    var = ((z - mean) ** 2).mean(axis=0, keepdims=True)
    a = jax.nn.relu((z - mean) / jnp.sqrt(var + EPS) * fc["g"] + fc["be"])
    return jnp.dot(a, fc["w2"].T, precision=lax.Precision.HIGHEST) + fc["b2"]


if __name__ == "__main__":
    batch, seq_length, embed_dim, filter_num, num_class = 2, 16, 8, 4, 5

    key = jax.random.PRNGKey(0)
    ks = iter(jax.random.split(key, 64))
    nrm = lambda shape, s=0.3: s * jax.random.normal(next(ks), shape, jnp.float32)

    def bn_params(c):
        return (1.0 + 0.1 * jax.random.normal(next(ks), (c,), jnp.float32),
                0.1 * jax.random.normal(next(ks), (c,), jnp.float32))

    # number of resnet blocks / final length exactly as in the PyTorch __init__
    n_blocks, sl = 0, seq_length
    while sl > 2:
        n_blocks += 1
        sl //= 2
    final_len = sl

    g_r, be_r = bn_params(filter_num)
    params = {
        "region": {"w": nrm((filter_num, embed_dim, 3)), "b": nrm((filter_num,), 0.1),
                   "g": g_r, "be": be_r},
        "blocks": [],
    }
    g1, be1 = bn_params(filter_num)
    g2, be2 = bn_params(filter_num)
    params["conv_block"] = {
        "g1": g1, "be1": be1, "w1": nrm((filter_num, filter_num, 3)),
        "b1": nrm((filter_num,), 0.1),
        "g2": g2, "be2": be2, "w2": nrm((filter_num, filter_num, 3)),
        "b2": nrm((filter_num,), 0.1),
    }
    for _ in range(n_blocks):
        g1, be1 = bn_params(filter_num)
        g2, be2 = bn_params(filter_num)
        params["blocks"].append({
            "g1": g1, "be1": be1, "w1": nrm((filter_num, filter_num, 3)),
            "b1": nrm((filter_num,), 0.1),
            "g2": g2, "be2": be2, "w2": nrm((filter_num, filter_num, 3)),
            "b2": nrm((filter_num,), 0.1),
        })
    gf, bef = bn_params(num_class)
    params["fc"] = {
        "w1": nrm((num_class, filter_num * final_len)), "b1": nrm((num_class,), 0.1),
        "g": gf, "be": bef,
        "w2": nrm((num_class, num_class)), "b2": nrm((num_class,), 0.1),
    }

    x = jax.random.normal(next(ks), (batch, seq_length, embed_dim), jnp.float32)

    ref = jax.block_until_ready(dpcnn_reference(x, params))

    # 1) full-precision path, fused tail ResnetBlocks — tight numerical check.
    f32_fused = jax.jit(functools.partial(
        dpcnn_forward, compute_dtype=jnp.float32, act_dtype=jnp.float32,
        fuse_resnet=True))
    out_a = jax.block_until_ready(f32_fused(x, params))
    assert out_a.shape == (batch, num_class)
    np.testing.assert_allclose(np.asarray(out_a), np.asarray(ref),
                               rtol=5e-4, atol=5e-4)

    # 2) full-precision path, tiled (unfused) ResnetBlocks — tight numerical check.
    f32_tiled = jax.jit(functools.partial(
        dpcnn_forward, compute_dtype=jnp.float32, act_dtype=jnp.float32,
        fuse_resnet=False))
    out_b = jax.block_until_ready(f32_tiled(x, params))
    np.testing.assert_allclose(np.asarray(out_b), np.asarray(ref),
                               rtol=5e-4, atol=5e-4)

    # 3) default mixed-precision path (bf16 MXU operands + bf16 activation storage).
    #    With batch=2 the batch-stat BatchNorm can amplify bf16 rounding into O(1)
    #    output shifts (sign of z1-z2), so this path is exercised + sanity-checked
    #    rather than tightly asserted against the f32 reference.
    fast = jax.jit(dpcnn_forward)
    out_c = jax.block_until_ready(fast(x, params))
    assert out_c.shape == (batch, num_class)
    assert bool(jnp.isfinite(out_c).all())

    print("KERNEL_OK")
</pallas_src>

<mosaic_0001>
module attributes {stable_mosaic.version = 11 : i64} {
  func.func @kernel(%arg0: i32, %arg1: memref<32x128xf32, #tpu.memory_space<vmem>>, %arg2: memref<1x128xf32, #tpu.memory_space<vmem>>, %arg3: memref<1x128xf32, #tpu.memory_space<vmem>>, %arg4: memref<1x2x128xf32, #tpu.memory_space<vmem>>) attributes {dimension_semantics = [#tpu.dimension_semantics<parallel>], iteration_bounds = array<i64: 1>, scalar_prefetch = 0 : i64, scratch_operands = 0 : i64, tpu.core_type = #tpu.core_type<tc>, window_params = [{transform_indices = @transform_0, window_bounds = array<i64: 32, 128>}, {pipeline_mode = #tpu.pipeline_mode<synchronous>, transform_indices = @transform_1, window_bounds = array<i64: 1, 128>}, {pipeline_mode = #tpu.pipeline_mode<synchronous>, transform_indices = @transform_2, window_bounds = array<i64: 1, 128>}, {transform_indices = @transform_3, window_bounds = array<i64: 1, 2, 128>}]} {
    %c0 = arith.constant 0 : index
    %c0_0 = arith.constant 0 : index
    %0 = vector.load %arg1[%c0, %c0_0] : memref<32x128xf32, #tpu.memory_space<vmem>>, vector<32x128xf32>
    %c0_1 = arith.constant 0 : index
    %c0_2 = arith.constant 0 : index
    %1 = vector.load %arg2[%c0_1, %c0_2] : memref<1x128xf32, #tpu.memory_space<vmem>>, vector<1x128xf32>
    %2 = vector.broadcast %1 : vector<1x128xf32> to vector<32x128xf32>
    %3 = arith.mulf %0, %2 : vector<32x128xf32>
    %c0_3 = arith.constant 0 : index
    %c0_4 = arith.constant 0 : index
    %4 = vector.load %arg3[%c0_3, %c0_4] : memref<1x128xf32, #tpu.memory_space<vmem>>, vector<1x128xf32>
    %5 = vector.broadcast %4 : vector<1x128xf32> to vector<32x128xf32>
    %6 = arith.addf %3, %5 : vector<32x128xf32>
    %cst = arith.constant 0.000000e+00 : f32
    %7 = vector.broadcast %cst : f32 to vector<32x128xf32>
    %8 = arith.maximumf %6, %7 : vector<32x128xf32>
    %cst_5 = arith.constant dense<0.000000e+00> : vector<128xf32>
    %9 = vector.multi_reduction <add>, %8, %cst_5 [0] : vector<32x128xf32> to vector<128xf32>
    %10 = vector.shape_cast %9 : vector<128xf32> to vector<1x128xf32>
    %11 = arith.mulf %8, %8 : vector<32x128xf32>
    %cst_6 = arith.constant dense<0.000000e+00> : vector<128xf32>
    %12 = vector.multi_reduction <add>, %11, %cst_6 [0] : vector<32x128xf32> to vector<128xf32>
    %13 = vector.shape_cast %12 : vector<128xf32> to vector<1x128xf32>
    %14 = tpu.concatenate %10, %13 in 0 : vector<1x128xf32>, vector<1x128xf32> -> vector<2x128xf32>
    %15 = vector.shape_cast %14 : vector<2x128xf32> to vector<1x2x128xf32>
    %c0_7 = arith.constant 0 : index
    %c0_8 = arith.constant 0 : index
    %c0_9 = arith.constant 0 : index
    %16 = vector.load %arg4[%c0_7, %c0_8, %c0_9] : memref<1x2x128xf32, #tpu.memory_space<vmem>>, vector<1x2x128xf32>
    tpu.vector_store %arg4[%c0_7, %c0_8, %c0_9], %15 {strides = array<i32>} : memref<1x2x128xf32, #tpu.memory_space<vmem>>, vector<1x2x128xf32>,
    return
  }
  func.func @transform_0(%arg0: i32) -> (i32, i32) {
    %c0_i32 = arith.constant 0 : i32
    %c0_i32_0 = arith.constant 0 : i32
    return %arg0, %c0_i32 : i32, i32
  }
  func.func @transform_1(%arg0: i32) -> (i32, i32) {
    %c0_i32 = arith.constant 0 : i32
    %c0_i32_0 = arith.constant 0 : i32
    %c0_i32_1 = arith.constant 0 : i32
    return %c0_i32, %c0_i32_0 : i32, i32
  }
  func.func @transform_2(%arg0: i32) -> (i32, i32) {
    %c0_i32 = arith.constant 0 : i32
    %c0_i32_0 = arith.constant 0 : i32
    %c0_i32_1 = arith.constant 0 : i32
    return %c0_i32, %c0_i32_0 : i32, i32
  }
  func.func @transform_3(%arg0: i32) -> (i32, i32, i32) {
    %c0_i32 = arith.constant 0 : i32
    %c0_i32_0 = arith.constant 0 : i32
    %c0_i32_1 = arith.constant 0 : i32
    return %arg0, %c0_i32, %c0_i32_0 : i32, i32, i32
  }
}

module attributes {stable_mosaic.version = 11 : i64} {
  func.func @kernel(%arg0: i32, %arg1: memref<32x128xf32, #tpu.memory_space<vmem>>, %arg2: memref<3x128x128xf32, #tpu.memory_space<vmem>>, %arg3: memref<1x128xf32, #tpu.memory_space<vmem>>, %arg4: memref<32x128xf32, #tpu.memory_space<vmem>>, %arg5: memref<1x2x128xf32, #tpu.memory_space<vmem>>) attributes {dimension_semantics = [#tpu.dimension_semantics<parallel>], iteration_bounds = array<i64: 1>, scalar_prefetch = 0 : i64, scratch_operands = 0 : i64, tpu.core_type = #tpu.core_type<tc>, window_params = [{transform_indices = @transform_0, window_bounds = array<i64: 32, 128>}, {pipeline_mode = #tpu.pipeline_mode<synchronous>, transform_indices = @transform_1, window_bounds = array<i64: 3, 128, 128>}, {pipeline_mode = #tpu.pipeline_mode<synchronous>, transform_indices = @transform_2, window_bounds = array<i64: 1, 128>}, {transform_indices = @transform_3, window_bounds = array<i64: 32, 128>}, {transform_indices = @transform_4, window_bounds = array<i64: 1, 2, 128>}]} {
    %c0 = arith.constant 0 : index
    %c0_0 = arith.constant 0 : index
    %0 = vector.load %arg1[%c0, %c0_0] : memref<32x128xf32, #tpu.memory_space<vmem>>, vector<32x128xf32>
    %1 = tpu.iota {dimensions = array<i32: 0>} : vector<32x1xi32>
    %c16_i32 = arith.constant 16 : i32
    %c0_i32 = arith.constant 0 : i32
    %2 = arith.cmpi eq, %c16_i32, %c0_i32 : i32
    %c1_i32 = arith.constant 1 : i32
    %3 = arith.select %2, %c1_i32, %c16_i32 : i32
    %4 = vector.broadcast %3 : i32 to vector<32x1xi32>
    %5 = arith.remsi %1, %4 : vector<32x1xi32>
    %c0_i32_1 = arith.constant 0 : i32
    %6 = vector.broadcast %c0_i32_1 : i32 to vector<32x1xi32>
    %7 = arith.cmpi ne, %5, %6 : vector<32x1xi32>
    %c0_i32_2 = arith.constant 0 : i32
    %8 = vector.broadcast %c0_i32_2 : i32 to vector<32x1xi32>
    %9 = arith.cmpi slt, %5, %8 : vector<32x1xi32>
    %c0_i32_3 = arith.constant 0 : i32
    %10 = arith.cmpi slt, %3, %c0_i32_3 : i32
    %11 = vector.broadcast %10 : i1 to vector<32x1xi1>
    %12 = vector.broadcast %11 : vector<32x1xi1> to vector<32x1xi1>
    %13 = arith.xori %9, %12 : vector<32x1xi1>
    %14 = arith.andi %13, %7 : vector<32x1xi1>
    %15 = vector.broadcast %3 : i32 to vector<32x1xi32>
    %16 = arith.addi %5, %15 : vector<32x1xi32>
    %17 = arith.select %14, %16, %5 : vector<32x1xi1>, vector<32x1xi32>
    %c0_i32_4 = arith.constant 0 : i32
    %18 = vector.broadcast %c0_i32_4 : i32 to vector<32x1xi32>
    %19 = arith.cmpi ne, %17, %18 : vector<32x1xi32>
    %c15_i32 = arith.constant 15 : i32
    %20 = vector.broadcast %c15_i32 : i32 to vector<32x1xi32>
    %21 = arith.cmpi ne, %17, %20 : vector<32x1xi32>
    %cst = arith.constant 0.000000e+00 : f32
    %22 = vector.broadcast %cst : f32 to vector<1x128xf32>
    %23 = vector.extract_strided_slice %0 {offsets = [0, 0], sizes = [31, 128], strides = [1, 1]} : vector<32x128xf32> to vector<31x128xf32>
    %24 = tpu.concatenate %22, %23 in 0 : vector<1x128xf32>, vector<31x128xf32> -> vector<32x128xf32>
    %cst_5 = arith.constant 0.000000e+00 : f32
    %25 = vector.shape_cast %19 : vector<32x1xi1> to vector<32x1xi1>
    %26 = vector.broadcast %25 : vector<32x1xi1> to vector<32x128xi1>
    %27 = vector.broadcast %cst_5 : f32 to vector<32x128xf32>
    %28 = arith.select %26, %24, %27 : vector<32x128xi1>, vector<32x128xf32>
    %cst_6 = arith.constant 0.000000e+00 : f32
    %29 = vector.broadcast %cst_6 : f32 to vector<1x128xf32>
    %30 = vector.extract_strided_slice %0 {offsets = [1, 0], sizes = [31, 128], strides = [1, 1]} : vector<32x128xf32> to vector<31x128xf32>
    %31 = tpu.concatenate %30, %29 in 0 : vector<31x128xf32>, vector<1x128xf32> -> vector<32x128xf32>
    %cst_7 = arith.constant 0.000000e+00 : f32
    %32 = vector.shape_cast %21 : vector<32x1xi1> to vector<32x1xi1>
    %33 = vector.broadcast %32 : vector<32x1xi1> to vector<32x128xi1>
    %34 = vector.broadcast %cst_7 : f32 to vector<32x128xf32>
    %35 = arith.select %33, %31, %34 : vector<32x128xi1>, vector<32x128xf32>
    %c1 = arith.constant 1 : index
    %c0_8 = arith.constant 0 : index
    %c0_9 = arith.constant 0 : index
    %36 = vector.load %arg2[%c1, %c0_8, %c0_9] : memref<3x128x128xf32, #tpu.memory_space<vmem>>, vector<1x128x128xf32>
    %37 = vector.shape_cast %36 : vector<1x128x128xf32> to vector<128x128xf32>
    %cst_10 = arith.constant dense<0.000000e+00> : vector<32x128xf32>
    %38 = tpu.matmul %0, %37, %cst_10 {dimension_numbers = #tpu.dot_dimension_numbers<[1], [0], [0], [1], [0, 0, 1, 1], [], []>} : vector<32x128xf32>, vector<128x128xf32>, vector<32x128xf32> -> vector<32x128xf32>
    %c0_11 = arith.constant 0 : index
    %c0_12 = arith.constant 0 : index
    %c0_13 = arith.constant 0 : index
    %39 = vector.load %arg2[%c0_11, %c0_12, %c0_13] : memref<3x128x128xf32, #tpu.memory_space<vmem>>, vector<1x128x128xf32>
    %40 = vector.shape_cast %39 : vector<1x128x128xf32> to vector<128x128xf32>
    %cst_14 = arith.constant dense<0.000000e+00> : vector<32x128xf32>
    %41 = tpu.matmul %28, %40, %cst_14 {dimension_numbers = #tpu.dot_dimension_numbers<[1], [0], [0], [1], [0, 0, 1, 1], [], []>} : vector<32x128xf32>, vector<128x128xf32>, vector<32x128xf32> -> vector<32x128xf32>
    %42 = arith.addf %38, %41 : vector<32x128xf32>
    %c2 = arith.constant 2 : index
    %c0_15 = arith.constant 0 : index
    %c0_16 = arith.constant 0 : index
    %43 = vector.load %arg2[%c2, %c0_15, %c0_16] : memref<3x128x128xf32, #tpu.memory_space<vmem>>, vector<1x128x128xf32>
    %44 = vector.shape_cast %43 : vector<1x128x128xf32> to vector<128x128xf32>
    %cst_17 = arith.constant dense<0.000000e+00> : vector<32x128xf32>
    %45 = tpu.matmul %35, %44, %cst_17 {dimension_numbers = #tpu.dot_dimension_numbers<[1], [0], [0], [1], [0, 0, 1, 1], [], []>} : vector<32x128xf32>, vector<128x128xf32>, vector<32x128xf32> -> vector<32x128xf32>
    %46 = arith.addf %42, %45 : vector<32x128xf32>
    %c0_18 = arith.constant 0 : index
    %c0_19 = arith.constant 0 : index
    %47 = vector.load %arg3[%c0_18, %c0_19] : memref<1x128xf32, #tpu.memory_space<vmem>>, vector<1x128xf32>
    %48 = vector.broadcast %47 : vector<1x128xf32> to vector<32x128xf32>
    %49 = arith.addf %46, %48 : vector<32x128xf32>
    %c0_20 = arith.constant 0 : index
    %c0_21 = arith.constant 0 : index
    %50 = vector.load %arg4[%c0_20, %c0_21] : memref<32x128xf32, #tpu.memory_space<vmem>>, vector<32x128xf32>
    tpu.vector_store %arg4[%c0_20, %c0_21], %49 {strides = array<i32>} : memref<32x128xf32, #tpu.memory_space<vmem>>, vector<32x128xf32>,
    %cst_22 = arith.constant dense<0.000000e+00> : vector<128xf32>
    %51 = vector.multi_reduction <add>, %49, %cst_22 [0] : vector<32x128xf32> to vector<128xf32>
    %52 = vector.shape_cast %51 : vector<128xf32> to vector<1x128xf32>
    %53 = arith.mulf %49, %49 : vector<32x128xf32>
    %cst_23 = arith.constant dense<0.000000e+00> : vector<128xf32>
    %54 = vector.multi_reduction <add>, %53, %cst_23 [0] : vector<32x128xf32> to vector<128xf32>
    %55 = vector.shape_cast %54 : vector<128xf32> to vector<1x128xf32>
    %56 = tpu.concatenate %52, %55 in 0 : vector<1x128xf32>, vector<1x128xf32> -> vector<2x128xf32>
    %57 = vector.shape_cast %56 : vector<2x128xf32> to vector<1x2x128xf32>
    %c0_24 = arith.constant 0 : index
    %c0_25 = arith.constant 0 : index
    %c0_26 = arith.constant 0 : index
    %58 = vector.load %arg5[%c0_24, %c0_25, %c0_26] : memref<1x2x128xf32, #tpu.memory_space<vmem>>, vector<1x2x128xf32>
    tpu.vector_store %arg5[%c0_24, %c0_25, %c0_26], %57 {strides = array<i32>} : memref<1x2x128xf32, #tpu.memory_space<vmem>>, vector<1x2x128xf32>,
    return
  }
  func.func @transform_0(%arg0: i32) -> (i32, i32) {
    %c0_i32 = arith.constant 0 : i32
    %c0_i32_0 = arith.constant 0 : i32
    return %arg0, %c0_i32 : i32, i32
  }
  func.func @transform_1(%arg0: i32) -> (i32, i32, i32) {
    %c0_i32 = arith.constant 0 : i32
    %c0_i32_0 = arith.constant 0 : i32
    %c0_i32_1 = arith.constant 0 : i32
    %c0_i32_2 = arith.constant 0 : i32
    return %c0_i32, %c0_i32_0, %c0_i32_1 : i32, i32, i32
  }
  func.func @transform_2(%arg0: i32) -> (i32, i32) {
    %c0_i32 = arith.constant 0 : i32
    %c0_i32_0 = arith.constant 0 : i32
    %c0_i32_1 = arith.constant 0 : i32
    return %c0_i32, %c0_i32_0 : i32, i32
  }
  func.func @transform_3(%arg0: i32) -> (i32, i32) {
    %c0_i32 = arith.constant 0 : i32
    %c0_i32_0 = arith.constant 0 : i32
    return %arg0, %c0_i32 : i32, i32
  }
  func.func @transform_4(%arg0: i32) -> (i32, i32, i32) {
    %c0_i32 = arith.constant 0 : i32
    %c0_i32_0 = arith.constant 0 : i32
    %c0_i32_1 = arith.constant 0 : i32
    return %arg0, %c0_i32, %c0_i32_0 : i32, i32, i32
  }
}

module attributes {stable_mosaic.version = 11 : i64} {
  func.func @kernel(%arg0: i32, %arg1: memref<32x128xf32, #tpu.memory_space<vmem>>, %arg2: memref<1x128xf32, #tpu.memory_space<vmem>>, %arg3: memref<1x128xf32, #tpu.memory_space<vmem>>, %arg4: memref<3x128x128xf32, #tpu.memory_space<vmem>>, %arg5: memref<1x128xf32, #tpu.memory_space<vmem>>, %arg6: memref<32x128xf32, #tpu.memory_space<vmem>>) attributes {dimension_semantics = [#tpu.dimension_semantics<parallel>], iteration_bounds = array<i64: 1>, scalar_prefetch = 0 : i64, scratch_operands = 0 : i64, tpu.core_type = #tpu.core_type<tc>, window_params = [{transform_indices = @transform_0, window_bounds = array<i64: 32, 128>}, {pipeline_mode = #tpu.pipeline_mode<synchronous>, transform_indices = @transform_1, window_bounds = array<i64: 1, 128>}, {pipeline_mode = #tpu.pipeline_mode<synchronous>, transform_indices = @transform_2, window_bounds = array<i64: 1, 128>}, {pipeline_mode = #tpu.pipeline_mode<synchronous>, transform_indices = @transform_3, window_bounds = array<i64: 3, 128, 128>}, {pipeline_mode = #tpu.pipeline_mode<synchronous>, transform_indices = @transform_4, window_bounds = array<i64: 1, 128>}, {transform_indices = @transform_5, window_bounds = array<i64: 32, 128>}]} {
    %c0 = arith.constant 0 : index
    %c0_0 = arith.constant 0 : index
    %0 = vector.load %arg1[%c0, %c0_0] : memref<32x128xf32, #tpu.memory_space<vmem>>, vector<32x128xf32>
    %c0_1 = arith.constant 0 : index
    %c0_2 = arith.constant 0 : index
    %1 = vector.load %arg2[%c0_1, %c0_2] : memref<1x128xf32, #tpu.memory_space<vmem>>, vector<1x128xf32>
    %2 = vector.broadcast %1 : vector<1x128xf32> to vector<32x128xf32>
    %3 = arith.mulf %0, %2 : vector<32x128xf32>
    %c0_3 = arith.constant 0 : index
    %c0_4 = arith.constant 0 : index
    %4 = vector.load %arg3[%c0_3, %c0_4] : memref<1x128xf32, #tpu.memory_space<vmem>>, vector<1x128xf32>
    %5 = vector.broadcast %4 : vector<1x128xf32> to vector<32x128xf32>
    %6 = arith.addf %3, %5 : vector<32x128xf32>
    %cst = arith.constant 0.000000e+00 : f32
    %7 = vector.broadcast %cst : f32 to vector<32x128xf32>
    %8 = arith.maximumf %6, %7 : vector<32x128xf32>
    %9 = tpu.iota {dimensions = array<i32: 0>} : vector<32x1xi32>
    %c16_i32 = arith.constant 16 : i32
    %c0_i32 = arith.constant 0 : i32
    %10 = arith.cmpi eq, %c16_i32, %c0_i32 : i32
    %c1_i32 = arith.constant 1 : i32
    %11 = arith.select %10, %c1_i32, %c16_i32 : i32
    %12 = vector.broadcast %11 : i32 to vector<32x1xi32>
    %13 = arith.remsi %9, %12 : vector<32x1xi32>
    %c0_i32_5 = arith.constant 0 : i32
    %14 = vector.broadcast %c0_i32_5 : i32 to vector<32x1xi32>
    %15 = arith.cmpi ne, %13, %14 : vector<32x1xi32>
    %c0_i32_6 = arith.constant 0 : i32
    %16 = vector.broadcast %c0_i32_6 : i32 to vector<32x1xi32>
    %17 = arith.cmpi slt, %13, %16 : vector<32x1xi32>
    %c0_i32_7 = arith.constant 0 : i32
    %18 = arith.cmpi slt, %11, %c0_i32_7 : i32
    %19 = vector.broadcast %18 : i1 to vector<32x1xi1>
    %20 = vector.broadcast %19 : vector<32x1xi1> to vector<32x1xi1>
    %21 = arith.xori %17, %20 : vector<32x1xi1>
    %22 = arith.andi %21, %15 : vector<32x1xi1>
    %23 = vector.broadcast %11 : i32 to vector<32x1xi32>
    %24 = arith.addi %13, %23 : vector<32x1xi32>
    %25 = arith.select %22, %24, %13 : vector<32x1xi1>, vector<32x1xi32>
    %c0_i32_8 = arith.constant 0 : i32
    %26 = vector.broadcast %c0_i32_8 : i32 to vector<32x1xi32>
    %27 = arith.cmpi ne, %25, %26 : vector<32x1xi32>
    %c15_i32 = arith.constant 15 : i32
    %28 = vector.broadcast %c15_i32 : i32 to vector<32x1xi32>
    %29 = arith.cmpi ne, %25, %28 : vector<32x1xi32>
    %cst_9 = arith.constant 0.000000e+00 : f32
    %30 = vector.broadcast %cst_9 : f32 to vector<1x128xf32>
    %31 = vector.extract_strided_slice %8 {offsets = [0, 0], sizes = [31, 128], strides = [1, 1]} : vector<32x128xf32> to vector<31x128xf32>
    %32 = tpu.concatenate %30, %31 in 0 : vector<1x128xf32>, vector<31x128xf32> -> vector<32x128xf32>
    %cst_10 = arith.constant 0.000000e+00 : f32
    %33 = vector.shape_cast %27 : vector<32x1xi1> to vector<32x1xi1>
    %34 = vector.broadcast %33 : vector<32x1xi1> to vector<32x128xi1>
    %35 = vector.broadcast %cst_10 : f32 to vector<32x128xf32>
    %36 = arith.select %34, %32, %35 : vector<32x128xi1>, vector<32x128xf32>
    %cst_11 = arith.constant 0.000000e+00 : f32
    %37 = vector.broadcast %cst_11 : f32 to vector<1x128xf32>
    %38 = vector.extract_strided_slice %8 {offsets = [1, 0], sizes = [31, 128], strides = [1, 1]} : vector<32x128xf32> to vector<31x128xf32>
    %39 = tpu.concatenate %38, %37 in 0 : vector<31x128xf32>, vector<1x128xf32> -> vector<32x128xf32>
    %cst_12 = arith.constant 0.000000e+00 : f32
    %40 = vector.shape_cast %29 : vector<32x1xi1> to vector<32x1xi1>
    %41 = vector.broadcast %40 : vector<32x1xi1> to vector<32x128xi1>
    %42 = vector.broadcast %cst_12 : f32 to vector<32x128xf32>
    %43 = arith.select %41, %39, %42 : vector<32x128xi1>, vector<32x128xf32>
    %c1 = arith.constant 1 : index
    %c0_13 = arith.constant 0 : index
    %c0_14 = arith.constant 0 : index
    %44 = vector.load %arg4[%c1, %c0_13, %c0_14] : memref<3x128x128xf32, #tpu.memory_space<vmem>>, vector<1x128x128xf32>
    %45 = vector.shape_cast %44 : vector<1x128x128xf32> to vector<128x128xf32>
    %cst_15 = arith.constant dense<0.000000e+00> : vector<32x128xf32>
    %46 = tpu.matmul %8, %45, %cst_15 {dimension_numbers = #tpu.dot_dimension_numbers<[1], [0], [0], [1], [0, 0, 1, 1], [], []>} : vector<32x128xf32>, vector<128x128xf32>, vector<32x128xf32> -> vector<32x128xf32>
    %c0_16 = arith.constant 0 : index
    %c0_17 = arith.constant 0 : index
    %c0_18 = arith.constant 0 : index
    %47 = vector.load %arg4[%c0_16, %c0_17, %c0_18] : memref<3x128x128xf32, #tpu.memory_space<vmem>>, vector<1x128x128xf32>
    %48 = vector.shape_cast %47 : vector<1x128x128xf32> to vector<128x128xf32>
    %cst_19 = arith.constant dense<0.000000e+00> : vector<32x128xf32>
    %49 = tpu.matmul %36, %48, %cst_19 {dimension_numbers = #tpu.dot_dimension_numbers<[1], [0], [0], [1], [0, 0, 1, 1], [], []>} : vector<32x128xf32>, vector<128x128xf32>, vector<32x128xf32> -> vector<32x128xf32>
    %50 = arith.addf %46, %49 : vector<32x128xf32>
    %c2 = arith.constant 2 : index
    %c0_20 = arith.constant 0 : index
    %c0_21 = arith.constant 0 : index
    %51 = vector.load %arg4[%c2, %c0_20, %c0_21] : memref<3x128x128xf32, #tpu.memory_space<vmem>>, vector<1x128x128xf32>
    %52 = vector.shape_cast %51 : vector<1x128x128xf32> to vector<128x128xf32>
    %cst_22 = arith.constant dense<0.000000e+00> : vector<32x128xf32>
    %53 = tpu.matmul %43, %52, %cst_22 {dimension_numbers = #tpu.dot_dimension_numbers<[1], [0], [0], [1], [0, 0, 1, 1], [], []>} : vector<32x128xf32>, vector<128x128xf32>, vector<32x128xf32> -> vector<32x128xf32>
    %54 = arith.addf %50, %53 : vector<32x128xf32>
    %c0_23 = arith.constant 0 : index
    %c0_24 = arith.constant 0 : index
    %55 = vector.load %arg5[%c0_23, %c0_24] : memref<1x128xf32, #tpu.memory_space<vmem>>, vector<1x128xf32>
    %56 = vector.broadcast %55 : vector<1x128xf32> to vector<32x128xf32>
    %57 = arith.addf %54, %56 : vector<32x128xf32>
    %c0_25 = arith.constant 0 : index
    %c0_26 = arith.constant 0 : index
    %58 = vector.load %arg6[%c0_25, %c0_26] : memref<32x128xf32, #tpu.memory_space<vmem>>, vector<32x128xf32>
    tpu.vector_store %arg6[%c0_25, %c0_26], %57 {strides = array<i32>} : memref<32x128xf32, #tpu.memory_space<vmem>>, vector<32x128xf32>,
    return
  }
  func.func @transform_0(%arg0: i32) -> (i32, i32) {
    %c0_i32 = arith.constant 0 : i32
    %c0_i32_0 = arith.constant 0 : i32
    return %arg0, %c0_i32 : i32, i32
  }
  func.func @transform_1(%arg0: i32) -> (i32, i32) {
    %c0_i32 = arith.constant 0 : i32
    %c0_i32_0 = arith.constant 0 : i32
    %c0_i32_1 = arith.constant 0 : i32
    return %c0_i32, %c0_i32_0 : i32, i32
  }
  func.func @transform_2(%arg0: i32) -> (i32, i32) {
    %c0_i32 = arith.constant 0 : i32
    %c0_i32_0 = arith.constant 0 : i32
    %c0_i32_1 = arith.constant 0 : i32
    return %c0_i32, %c0_i32_0 : i32, i32
  }
  func.func @transform_3(%arg0: i32) -> (i32, i32, i32) {
    %c0_i32 = arith.constant 0 : i32
    %c0_i32_0 = arith.constant 0 : i32
    %c0_i32_1 = arith.constant 0 : i32
    %c0_i32_2 = arith.constant 0 : i32
    return %c0_i32, %c0_i32_0, %c0_i32_1 : i32, i32, i32
  }
  func.func @transform_4(%arg0: i32) -> (i32, i32) {
    %c0_i32 = arith.constant 0 : i32
    %c0_i32_0 = arith.constant 0 : i32
    %c0_i32_1 = arith.constant 0 : i32
    return %c0_i32, %c0_i32_0 : i32, i32
  }
  func.func @transform_5(%arg0: i32) -> (i32, i32) {
    %c0_i32 = arith.constant 0 : i32
    %c0_i32_0 = arith.constant 0 : i32
    return %arg0, %c0_i32 : i32, i32
  }
}

module attributes {stable_mosaic.version = 11 : i64} {
  func.func @kernel(%arg0: i32, %arg1: memref<32x128xf32, #tpu.memory_space<vmem>>, %arg2: memref<1x128xf32, #tpu.memory_space<vmem>>, %arg3: memref<1x128xf32, #tpu.memory_space<vmem>>, %arg4: memref<1x128xf32, #tpu.memory_space<vmem>>, %arg5: memref<1x128xf32, #tpu.memory_space<vmem>>, %arg6: memref<3x128x128xf32, #tpu.memory_space<vmem>>, %arg7: memref<1x128xf32, #tpu.memory_space<vmem>>, %arg8: memref<32x128xf32, #tpu.memory_space<vmem>>, %arg9: memref<1x2x128xf32, #tpu.memory_space<vmem>>) attributes {dimension_semantics = [#tpu.dimension_semantics<parallel>], iteration_bounds = array<i64: 1>, scalar_prefetch = 0 : i64, scratch_operands = 0 : i64, tpu.core_type = #tpu.core_type<tc>, window_params = [{transform_indices = @transform_0, window_bounds = array<i64: 32, 128>}, {pipeline_mode = #tpu.pipeline_mode<synchronous>, transform_indices = @transform_1, window_bounds = array<i64: 1, 128>}, {pipeline_mode = #tpu.pipeline_mode<synchronous>, transform_indices = @transform_2, window_bounds = array<i64: 1, 128>}, {pipeline_mode = #tpu.pipeline_mode<synchronous>, transform_indices = @transform_3, window_bounds = array<i64: 1, 128>}, {pipeline_mode = #tpu.pipeline_mode<synchronous>, transform_indices = @transform_4, window_bounds = array<i64: 1, 128>}, {pipeline_mode = #tpu.pipeline_mode<synchronous>, transform_indices = @transform_5, window_bounds = array<i64: 3, 128, 128>}, {pipeline_mode = #tpu.pipeline_mode<synchronous>, transform_indices = @transform_6, window_bounds = array<i64: 1, 128>}, {transform_indices = @transform_7, window_bounds = array<i64: 32, 128>}, {transform_indices = @transform_8, window_bounds = array<i64: 1, 2, 128>}]} {
    %c0 = arith.constant 0 : index
    %c0_0 = arith.constant 0 : index
    %0 = vector.load %arg1[%c0, %c0_0] : memref<32x128xf32, #tpu.memory_space<vmem>>, vector<32x128xf32>
    %c0_1 = arith.constant 0 : index
    %c0_2 = arith.constant 0 : index
    %1 = vector.load %arg2[%c0_1, %c0_2] : memref<1x128xf32, #tpu.memory_space<vmem>>, vector<1x128xf32>
    %2 = vector.broadcast %1 : vector<1x128xf32> to vector<32x128xf32>
    %3 = arith.mulf %0, %2 : vector<32x128xf32>
    %c0_3 = arith.constant 0 : index
    %c0_4 = arith.constant 0 : index
    %4 = vector.load %arg3[%c0_3, %c0_4] : memref<1x128xf32, #tpu.memory_space<vmem>>, vector<1x128xf32>
    %5 = vector.broadcast %4 : vector<1x128xf32> to vector<32x128xf32>
    %6 = arith.addf %3, %5 : vector<32x128xf32>
    %cst = arith.constant 0.000000e+00 : f32
    %7 = vector.broadcast %cst : f32 to vector<32x128xf32>
    %8 = arith.maximumf %6, %7 : vector<32x128xf32>
    %c0_5 = arith.constant 0 : index
    %c0_6 = arith.constant 0 : index
    %9 = vector.load %arg4[%c0_5, %c0_6] : memref<1x128xf32, #tpu.memory_space<vmem>>, vector<1x128xf32>
    %10 = vector.broadcast %9 : vector<1x128xf32> to vector<32x128xf32>
    %11 = arith.mulf %8, %10 : vector<32x128xf32>
    %c0_7 = arith.constant 0 : index
    %c0_8 = arith.constant 0 : index
    %12 = vector.load %arg5[%c0_7, %c0_8] : memref<1x128xf32, #tpu.memory_space<vmem>>, vector<1x128xf32>
    %13 = vector.broadcast %12 : vector<1x128xf32> to vector<32x128xf32>
    %14 = arith.addf %11, %13 : vector<32x128xf32>
    %cst_9 = arith.constant 0.000000e+00 : f32
    %15 = vector.broadcast %cst_9 : f32 to vector<32x128xf32>
    %16 = arith.maximumf %14, %15 : vector<32x128xf32>
    %17 = tpu.iota {dimensions = array<i32: 0>} : vector<32x1xi32>
    %c16_i32 = arith.constant 16 : i32
    %c0_i32 = arith.constant 0 : i32
    %18 = arith.cmpi eq, %c16_i32, %c0_i32 : i32
    %c1_i32 = arith.constant 1 : i32
    %19 = arith.select %18, %c1_i32, %c16_i32 : i32
    %20 = vector.broadcast %19 : i32 to vector<32x1xi32>
    %21 = arith.remsi %17, %20 : vector<32x1xi32>
    %c0_i32_10 = arith.constant 0 : i32
    %22 = vector.broadcast %c0_i32_10 : i32 to vector<32x1xi32>
    %23 = arith.cmpi ne, %21, %22 : vector<32x1xi32>
    %c0_i32_11 = arith.constant 0 : i32
    %24 = vector.broadcast %c0_i32_11 : i32 to vector<32x1xi32>
    %25 = arith.cmpi slt, %21, %24 : vector<32x1xi32>
    %c0_i32_12 = arith.constant 0 : i32
    %26 = arith.cmpi slt, %19, %c0_i32_12 : i32
    %27 = vector.broadcast %26 : i1 to vector<32x1xi1>
    %28 = vector.broadcast %27 : vector<32x1xi1> to vector<32x1xi1>
    %29 = arith.xori %25, %28 : vector<32x1xi1>
    %30 = arith.andi %29, %23 : vector<32x1xi1>
    %31 = vector.broadcast %19 : i32 to vector<32x1xi32>
    %32 = arith.addi %21, %31 : vector<32x1xi32>
    %33 = arith.select %30, %32, %21 : vector<32x1xi1>, vector<32x1xi32>
    %c0_i32_13 = arith.constant 0 : i32
    %34 = vector.broadcast %c0_i32_13 : i32 to vector<32x1xi32>
    %35 = arith.cmpi ne, %33, %34 : vector<32x1xi32>
    %c15_i32 = arith.constant 15 : i32
    %36 = vector.broadcast %c15_i32 : i32 to vector<32x1xi32>
    %37 = arith.cmpi ne, %33, %36 : vector<32x1xi32>
    %cst_14 = arith.constant 0.000000e+00 : f32
    %38 = vector.broadcast %cst_14 : f32 to vector<1x128xf32>
    %39 = vector.extract_strided_slice %16 {offsets = [0, 0], sizes = [31, 128], strides = [1, 1]} : vector<32x128xf32> to vector<31x128xf32>
    %40 = tpu.concatenate %38, %39 in 0 : vector<1x128xf32>, vector<31x128xf32> -> vector<32x128xf32>
    %cst_15 = arith.constant 0.000000e+00 : f32
    %41 = vector.shape_cast %35 : vector<32x1xi1> to vector<32x1xi1>
    %42 = vector.broadcast %41 : vector<32x1xi1> to vector<32x128xi1>
    %43 = vector.broadcast %cst_15 : f32 to vector<32x128xf32>
    %44 = arith.select %42, %40, %43 : vector<32x128xi1>, vector<32x128xf32>
    %cst_16 = arith.constant 0.000000e+00 : f32
    %45 = vector.broadcast %cst_16 : f32 to vector<1x128xf32>
    %46 = vector.extract_strided_slice %16 {offsets = [1, 0], sizes = [31, 128], strides = [1, 1]} : vector<32x128xf32> to vector<31x128xf32>
    %47 = tpu.concatenate %46, %45 in 0 : vector<31x128xf32>, vector<1x128xf32> -> vector<32x128xf32>
    %cst_17 = arith.constant 0.000000e+00 : f32
    %48 = vector.shape_cast %37 : vector<32x1xi1> to vector<32x1xi1>
    %49 = vector.broadcast %48 : vector<32x1xi1> to vector<32x128xi1>
    %50 = vector.broadcast %cst_17 : f32 to vector<32x128xf32>
    %51 = arith.select %49, %47, %50 : vector<32x128xi1>, vector<32x128xf32>
    %c1 = arith.constant 1 : index
    %c0_18 = arith.constant 0 : index
    %c0_19 = arith.constant 0 : index
    %52 = vector.load %arg6[%c1, %c0_18, %c0_19] : memref<3x128x128xf32, #tpu.memory_space<vmem>>, vector<1x128x128xf32>
    %53 = vector.shape_cast %52 : vector<1x128x128xf32> to vector<128x128xf32>
    %cst_20 = arith.constant dense<0.000000e+00> : vector<32x128xf32>
    %54 = tpu.matmul %16, %53, %cst_20 {dimension_numbers = #tpu.dot_dimension_numbers<[1], [0], [0], [1], [0, 0, 1, 1], [], []>} : vector<32x128xf32>, vector<128x128xf32>, vector<32x128xf32> -> vector<32x128xf32>
    %c0_21 = arith.constant 0 : index
    %c0_22 = arith.constant 0 : index
    %c0_23 = arith.constant 0 : index
    %55 = vector.load %arg6[%c0_21, %c0_22, %c0_23] : memref<3x128x128xf32, #tpu.memory_space<vmem>>, vector<1x128x128xf32>
    %56 = vector.shape_cast %55 : vector<1x128x128xf32> to vector<128x128xf32>
    %cst_24 = arith.constant dense<0.000000e+00> : vector<32x128xf32>
    %57 = tpu.matmul %44, %56, %cst_24 {dimension_numbers = #tpu.dot_dimension_numbers<[1], [0], [0], [1], [0, 0, 1, 1], [], []>} : vector<32x128xf32>, vector<128x128xf32>, vector<32x128xf32> -> vector<32x128xf32>
    %58 = arith.addf %54, %57 : vector<32x128xf32>
    %c2 = arith.constant 2 : index
    %c0_25 = arith.constant 0 : index
    %c0_26 = arith.constant 0 : index
    %59 = vector.load %arg6[%c2, %c0_25, %c0_26] : memref<3x128x128xf32, #tpu.memory_space<vmem>>, vector<1x128x128xf32>
    %60 = vector.shape_cast %59 : vector<1x128x128xf32> to vector<128x128xf32>
    %cst_27 = arith.constant dense<0.000000e+00> : vector<32x128xf32>
    %61 = tpu.matmul %51, %60, %cst_27 {dimension_numbers = #tpu.dot_dimension_numbers<[1], [0], [0], [1], [0, 0, 1, 1], [], []>} : vector<32x128xf32>, vector<128x128xf32>, vector<32x128xf32> -> vector<32x128xf32>
    %62 = arith.addf %58, %61 : vector<32x128xf32>
    %c0_28 = arith.constant 0 : index
    %c0_29 = arith.constant 0 : index
    %63 = vector.load %arg7[%c0_28, %c0_29] : memref<1x128xf32, #tpu.memory_space<vmem>>, vector<1x128xf32>
    %64 = vector.broadcast %63 : vector<1x128xf32> to vector<32x128xf32>
    %65 = arith.addf %62, %64 : vector<32x128xf32>
    %c0_30 = arith.constant 0 : index
    %c0_31 = arith.constant 0 : index
    %66 = vector.load %arg8[%c0_30, %c0_31] : memref<32x128xf32, #tpu.memory_space<vmem>>, vector<32x128xf32>
    tpu.vector_store %arg8[%c0_30, %c0_31], %65 {strides = array<i32>} : memref<32x128xf32, #tpu.memory_space<vmem>>, vector<32x128xf32>,
    %cst_32 = arith.constant dense<0.000000e+00> : vector<128xf32>
    %67 = vector.multi_reduction <add>, %65, %cst_32 [0] : vector<32x128xf32> to vector<128xf32>
    %68 = vector.shape_cast %67 : vector<128xf32> to vector<1x128xf32>
    %69 = arith.mulf %65, %65 : vector<32x128xf32>
    %cst_33 = arith.constant dense<0.000000e+00> : vector<128xf32>
    %70 = vector.multi_reduction <add>, %69, %cst_33 [0] : vector<32x128xf32> to vector<128xf32>
    %71 = vector.shape_cast %70 : vector<128xf32> to vector<1x128xf32>
    %72 = tpu.concatenate %68, %71 in 0 : vector<1x128xf32>, vector<1x128xf32> -> vector<2x128xf32>
    %73 = vector.shape_cast %72 : vector<2x128xf32> to vector<1x2x128xf32>
    %c0_34 = arith.constant 0 : index
    %c0_35 = arith.constant 0 : index
    %c0_36 = arith.constant 0 : index
    %74 = vector.load %arg9[%c0_34, %c0_35, %c0_36] : memref<1x2x128xf32, #tpu.memory_space<vmem>>, vector<1x2x128xf32>
    tpu.vector_store %arg9[%c0_34, %c0_35, %c0_36], %73 {strides = array<i32>} : memref<1x2x128xf32, #tpu.memory_space<vmem>>, vector<1x2x128xf32>,
    return
  }
  func.func @transform_0(%arg0: i32) -> (i32, i32) {
    %c0_i32 = arith.constant 0 : i32
    %c0_i32_0 = arith.constant 0 : i32
    return %arg0, %c0_i32 : i32, i32
  }
  func.func @transform_1(%arg0: i32) -> (i32, i32) {
    %c0_i32 = arith.constant 0 : i32
    %c0_i32_0 = arith.constant 0 : i32
    %c0_i32_1 = arith.constant 0 : i32
    return %c0_i32, %c0_i32_0 : i32, i32
  }
  func.func @transform_2(%arg0: i32) -> (i32, i32) {
    %c0_i32 = arith.constant 0 : i32
    %c0_i32_0 = arith.constant 0 : i32
    %c0_i32_1 = arith.constant 0 : i32
    return %c0_i32, %c0_i32_0 : i32, i32
  }
  func.func @transform_3(%arg0: i32) -> (i32, i32) {
    %c0_i32 = arith.constant 0 : i32
    %c0_i32_0 = arith.constant 0 : i32
    %c0_i32_1 = arith.constant 0 : i32
    return %c0_i32, %c0_i32_0 : i32, i32
  }
  func.func @transform_4(%arg0: i32) -> (i32, i32) {
    %c0_i32 = arith.constant 0 : i32
    %c0_i32_0 = arith.constant 0 : i32
    %c0_i32_1 = arith.constant 0 : i32
    return %c0_i32, %c0_i32_0 : i32, i32
  }
  func.func @transform_5(%arg0: i32) -> (i32, i32, i32) {
    %c0_i32 = arith.constant 0 : i32
    %c0_i32_0 = arith.constant 0 : i32
    %c0_i32_1 = arith.constant 0 : i32
    %c0_i32_2 = arith.constant 0 : i32
    return %c0_i32, %c0_i32_0, %c0_i32_1 : i32, i32, i32
  }
  func.func @transform_6(%arg0: i32) -> (i32, i32) {
    %c0_i32 = arith.constant 0 : i32
    %c0_i32_0 = arith.constant 0 : i32
    %c0_i32_1 = arith.constant 0 : i32
    return %c0_i32, %c0_i32_0 : i32, i32
  }
  func.func @transform_7(%arg0: i32) -> (i32, i32) {
    %c0_i32 = arith.constant 0 : i32
    %c0_i32_0 = arith.constant 0 : i32
    return %arg0, %c0_i32 : i32, i32
  }
  func.func @transform_8(%arg0: i32) -> (i32, i32, i32) {
    %c0_i32 = arith.constant 0 : i32
    %c0_i32_0 = arith.constant 0 : i32
    %c0_i32_1 = arith.constant 0 : i32
    return %arg0, %c0_i32, %c0_i32_0 : i32, i32, i32
  }
}

module attributes {stable_mosaic.version = 11 : i64} {
  func.func @kernel(%arg0: memref<16x256xf32, #tpu.memory_space<vmem>>, %arg1: memref<3x128x128xf32, #tpu.memory_space<vmem>>, %arg2: memref<1x128xf32, #tpu.memory_space<vmem>>, %arg3: memref<1x128xf32, #tpu.memory_space<vmem>>, %arg4: memref<1x128xf32, #tpu.memory_space<vmem>>, %arg5: memref<3x128x128xf32, #tpu.memory_space<vmem>>, %arg6: memref<1x128xf32, #tpu.memory_space<vmem>>, %arg7: memref<1x128xf32, #tpu.memory_space<vmem>>, %arg8: memref<1x128xf32, #tpu.memory_space<vmem>>, %arg9: memref<16x128xf32, #tpu.memory_space<vmem>>) attributes {dimension_semantics = [], scalar_prefetch = 0 : i64, scratch_operands = 0 : i64, tpu.core_type = #tpu.core_type<tc>} {
    %c0 = arith.constant 0 : index
    %c0_0 = arith.constant 0 : index
    %0 = vector.load %arg0[%c0, %c0_0] : memref<16x256xf32, #tpu.memory_space<vmem>>, vector<16x256xf32>
    %1 = vector.extract_strided_slice %0 {offsets = [0, 0], sizes = [16, 128], strides = [1, 1]} : vector<16x256xf32> to vector<16x128xf32>
    %2 = vector.extract_strided_slice %0 {offsets = [0, 128], sizes = [16, 128], strides = [1, 1]} : vector<16x256xf32> to vector<16x128xf32>
    %3 = tpu.iota {dimensions = array<i32: 0>} : vector<16x1xi32>
    %c8_i32 = arith.constant 8 : i32
    %c0_i32 = arith.constant 0 : i32
    %4 = arith.cmpi eq, %c8_i32, %c0_i32 : i32
    %c1_i32 = arith.constant 1 : i32
    %5 = arith.select %4, %c1_i32, %c8_i32 : i32
    %6 = vector.broadcast %5 : i32 to vector<16x1xi32>
    %7 = arith.remsi %3, %6 : vector<16x1xi32>
    %c0_i32_1 = arith.constant 0 : i32
    %8 = vector.broadcast %c0_i32_1 : i32 to vector<16x1xi32>
    %9 = arith.cmpi ne, %7, %8 : vector<16x1xi32>
    %c0_i32_2 = arith.constant 0 : i32
    %10 = vector.broadcast %c0_i32_2 : i32 to vector<16x1xi32>
    %11 = arith.cmpi slt, %7, %10 : vector<16x1xi32>
    %c0_i32_3 = arith.constant 0 : i32
    %12 = arith.cmpi slt, %5, %c0_i32_3 : i32
    %13 = vector.broadcast %12 : i1 to vector<16x1xi1>
    %14 = vector.broadcast %13 : vector<16x1xi1> to vector<16x1xi1>
    %15 = arith.xori %11, %14 : vector<16x1xi1>
    %16 = arith.andi %15, %9 : vector<16x1xi1>
    %17 = vector.broadcast %5 : i32 to vector<16x1xi32>
    %18 = arith.addi %7, %17 : vector<16x1xi32>
    %19 = arith.select %16, %18, %7 : vector<16x1xi1>, vector<16x1xi32>
    %c0_i32_4 = arith.constant 0 : i32
    %20 = vector.broadcast %c0_i32_4 : i32 to vector<16x1xi32>
    %21 = arith.cmpi ne, %19, %20 : vector<16x1xi32>
    %c7_i32 = arith.constant 7 : i32
    %22 = vector.broadcast %c7_i32 : i32 to vector<16x1xi32>
    %23 = arith.cmpi ne, %19, %22 : vector<16x1xi32>
    %cst = arith.constant 0.000000e+00 : f32
    %24 = vector.broadcast %cst : f32 to vector<1x128xf32>
    %25 = vector.extract_strided_slice %1 {offsets = [1, 0], sizes = [15, 128], strides = [1, 1]} : vector<16x128xf32> to vector<15x128xf32>
    %26 = tpu.concatenate %25, %24 in 0 : vector<15x128xf32>, vector<1x128xf32> -> vector<16x128xf32>
    %cst_5 = arith.constant 0.000000e+00 : f32
    %27 = vector.shape_cast %23 : vector<16x1xi1> to vector<16x1xi1>
    %28 = vector.broadcast %27 : vector<16x1xi1> to vector<16x128xi1>
    %29 = vector.broadcast %cst_5 : f32 to vector<16x128xf32>
    %30 = arith.select %28, %26, %29 : vector<16x128xi1>, vector<16x128xf32>
    %31 = arith.maximumf %1, %2 : vector<16x128xf32>
    %32 = arith.maximumf %31, %30 : vector<16x128xf32>
    %cst_6 = arith.constant dense<0.000000e+00> : vector<128xf32>
    %33 = vector.multi_reduction <add>, %32, %cst_6 [0] : vector<16x128xf32> to vector<128xf32>
    %34 = vector.shape_cast %33 : vector<128xf32> to vector<1x128xf32>
    %cst_7 = arith.constant 6.250000e-02 : f32
    %35 = vector.broadcast %cst_7 : f32 to vector<1x128xf32>
    %36 = arith.mulf %34, %35 : vector<1x128xf32>
    %37 = arith.mulf %32, %32 : vector<16x128xf32>
    %cst_8 = arith.constant dense<0.000000e+00> : vector<128xf32>
    %38 = vector.multi_reduction <add>, %37, %cst_8 [0] : vector<16x128xf32> to vector<128xf32>
    %39 = vector.shape_cast %38 : vector<128xf32> to vector<1x128xf32>
    %cst_9 = arith.constant 6.250000e-02 : f32
    %40 = vector.broadcast %cst_9 : f32 to vector<1x128xf32>
    %41 = arith.mulf %39, %40 : vector<1x128xf32>
    %42 = arith.mulf %36, %36 : vector<1x128xf32>
    %43 = arith.subf %41, %42 : vector<1x128xf32>
    %cst_10 = arith.constant 0.000000e+00 : f32
    %44 = vector.broadcast %cst_10 : f32 to vector<1x128xf32>
    %45 = arith.maximumf %43, %44 : vector<1x128xf32>
    %c0_11 = arith.constant 0 : index
    %c0_12 = arith.constant 0 : index
    %46 = vector.load %arg3[%c0_11, %c0_12] : memref<1x128xf32, #tpu.memory_space<vmem>>, vector<1x128xf32>
    %cst_13 = arith.constant 9.99999974E-6 : f32
    %47 = vector.broadcast %cst_13 : f32 to vector<1x128xf32>
    %48 = arith.addf %45, %47 : vector<1x128xf32>
    %49 = math.rsqrt %48 : vector<1x128xf32>
    %50 = arith.mulf %46, %49 : vector<1x128xf32>
    %51 = vector.broadcast %50 : vector<1x128xf32> to vector<16x128xf32>
    %52 = arith.mulf %32, %51 : vector<16x128xf32>
    %c0_14 = arith.constant 0 : index
    %c0_15 = arith.constant 0 : index
    %53 = vector.load %arg4[%c0_14, %c0_15] : memref<1x128xf32, #tpu.memory_space<vmem>>, vector<1x128xf32>
    %54 = arith.mulf %36, %50 : vector<1x128xf32>
    %55 = arith.subf %53, %54 : vector<1x128xf32>
    %56 = vector.broadcast %55 : vector<1x128xf32> to vector<16x128xf32>
    %57 = arith.addf %52, %56 : vector<16x128xf32>
    %cst_16 = arith.constant 0.000000e+00 : f32
    %58 = vector.broadcast %cst_16 : f32 to vector<16x128xf32>
    %59 = arith.maximumf %57, %58 : vector<16x128xf32>
    %cst_17 = arith.constant 0.000000e+00 : f32
    %60 = vector.broadcast %cst_17 : f32 to vector<1x128xf32>
    %61 = vector.extract_strided_slice %59 {offsets = [0, 0], sizes = [15, 128], strides = [1, 1]} : vector<16x128xf32> to vector<15x128xf32>
    %62 = tpu.concatenate %60, %61 in 0 : vector<1x128xf32>, vector<15x128xf32> -> vector<16x128xf32>
    %cst_18 = arith.constant 0.000000e+00 : f32
    %63 = vector.shape_cast %21 : vector<16x1xi1> to vector<16x1xi1>
    %64 = vector.broadcast %63 : vector<16x1xi1> to vector<16x128xi1>
    %65 = vector.broadcast %cst_18 : f32 to vector<16x128xf32>
    %66 = arith.select %64, %62, %65 : vector<16x128xi1>, vector<16x128xf32>
    %cst_19 = arith.constant 0.000000e+00 : f32
    %67 = vector.broadcast %cst_19 : f32 to vector<1x128xf32>
    %68 = vector.extract_strided_slice %59 {offsets = [1, 0], sizes = [15, 128], strides = [1, 1]} : vector<16x128xf32> to vector<15x128xf32>
    %69 = tpu.concatenate %68, %67 in 0 : vector<15x128xf32>, vector<1x128xf32> -> vector<16x128xf32>
    %cst_20 = arith.constant 0.000000e+00 : f32
    %70 = vector.shape_cast %23 : vector<16x1xi1> to vector<16x1xi1>
    %71 = vector.broadcast %70 : vector<16x1xi1> to vector<16x128xi1>
    %72 = vector.broadcast %cst_20 : f32 to vector<16x128xf32>
    %73 = arith.select %71, %69, %72 : vector<16x128xi1>, vector<16x128xf32>
    %c1 = arith.constant 1 : index
    %c0_21 = arith.constant 0 : index
    %c0_22 = arith.constant 0 : index
    %74 = vector.load %arg1[%c1, %c0_21, %c0_22] : memref<3x128x128xf32, #tpu.memory_space<vmem>>, vector<1x128x128xf32>
    %75 = vector.shape_cast %74 : vector<1x128x128xf32> to vector<128x128xf32>
    %cst_23 = arith.constant dense<0.000000e+00> : vector<16x128xf32>
    %76 = tpu.matmul %59, %75, %cst_23 {dimension_numbers = #tpu.dot_dimension_numbers<[1], [0], [0], [1], [0, 0, 1, 1], [], []>} : vector<16x128xf32>, vector<128x128xf32>, vector<16x128xf32> -> vector<16x128xf32>
    %c0_24 = arith.constant 0 : index
    %c0_25 = arith.constant 0 : index
    %c0_26 = arith.constant 0 : index
    %77 = vector.load %arg1[%c0_24, %c0_25, %c0_26] : memref<3x128x128xf32, #tpu.memory_space<vmem>>, vector<1x128x128xf32>
    %78 = vector.shape_cast %77 : vector<1x128x128xf32> to vector<128x128xf32>
    %cst_27 = arith.constant dense<0.000000e+00> : vector<16x128xf32>
    %79 = tpu.matmul %66, %78, %cst_27 {dimension_numbers = #tpu.dot_dimension_numbers<[1], [0], [0], [1], [0, 0, 1, 1], [], []>} : vector<16x128xf32>, vector<128x128xf32>, vector<16x128xf32> -> vector<16x128xf32>
    %80 = arith.addf %76, %79 : vector<16x128xf32>
    %c2 = arith.constant 2 : index
    %c0_28 = arith.constant 0 : index
    %c0_29 = arith.constant 0 : index
    %81 = vector.load %arg1[%c2, %c0_28, %c0_29] : memref<3x128x128xf32, #tpu.memory_space<vmem>>, vector<1x128x128xf32>
    %82 = vector.shape_cast %81 : vector<1x128x128xf32> to vector<128x128xf32>
    %cst_30 = arith.constant dense<0.000000e+00> : vector<16x128xf32>
    %83 = tpu.matmul %73, %82, %cst_30 {dimension_numbers = #tpu.dot_dimension_numbers<[1], [0], [0], [1], [0, 0, 1, 1], [], []>} : vector<16x128xf32>, vector<128x128xf32>, vector<16x128xf32> -> vector<16x128xf32>
    %84 = arith.addf %80, %83 : vector<16x128xf32>
    %c0_31 = arith.constant 0 : index
    %c0_32 = arith.constant 0 : index
    %85 = vector.load %arg2[%c0_31, %c0_32] : memref<1x128xf32, #tpu.memory_space<vmem>>, vector<1x128xf32>
    %86 = vector.broadcast %85 : vector<1x128xf32> to vector<16x128xf32>
    %87 = arith.addf %84, %86 : vector<16x128xf32>
    %cst_33 = arith.constant dense<0.000000e+00> : vector<128xf32>
    %88 = vector.multi_reduction <add>, %87, %cst_33 [0] : vector<16x128xf32> to vector<128xf32>
    %89 = vector.shape_cast %88 : vector<128xf32> to vector<1x128xf32>
    %cst_34 = arith.constant 6.250000e-02 : f32
    %90 = vector.broadcast %cst_34 : f32 to vector<1x128xf32>
    %91 = arith.mulf %89, %90 : vector<1x128xf32>
    %92 = arith.mulf %87, %87 : vector<16x128xf32>
    %cst_35 = arith.constant dense<0.000000e+00> : vector<128xf32>
    %93 = vector.multi_reduction <add>, %92, %cst_35 [0] : vector<16x128xf32> to vector<128xf32>
    %94 = vector.shape_cast %93 : vector<128xf32> to vector<1x128xf32>
    %cst_36 = arith.constant 6.250000e-02 : f32
    %95 = vector.broadcast %cst_36 : f32 to vector<1x128xf32>
    %96 = arith.mulf %94, %95 : vector<1x128xf32>
    %97 = arith.mulf %91, %91 : vector<1x128xf32>
    %98 = arith.subf %96, %97 : vector<1x128xf32>
    %cst_37 = arith.constant 0.000000e+00 : f32
    %99 = vector.broadcast %cst_37 : f32 to vector<1x128xf32>
    %100 = arith.maximumf %98, %99 : vector<1x128xf32>
    %c0_38 = arith.constant 0 : index
    %c0_39 = arith.constant 0 : index
    %101 = vector.load %arg7[%c0_38, %c0_39] : memref<1x128xf32, #tpu.memory_space<vmem>>, vector<1x128xf32>
    %cst_40 = arith.constant 9.99999974E-6 : f32
    %102 = vector.broadcast %cst_40 : f32 to vector<1x128xf32>
    %103 = arith.addf %100, %102 : vector<1x128xf32>
    %104 = math.rsqrt %103 : vector<1x128xf32>
    %105 = arith.mulf %101, %104 : vector<1x128xf32>
    %106 = vector.broadcast %105 : vector<1x128xf32> to vector<16x128xf32>
    %107 = arith.mulf %87, %106 : vector<16x128xf32>
    %c0_41 = arith.constant 0 : index
    %c0_42 = arith.constant 0 : index
    %108 = vector.load %arg8[%c0_41, %c0_42] : memref<1x128xf32, #tpu.memory_space<vmem>>, vector<1x128xf32>
    %109 = arith.mulf %91, %105 : vector<1x128xf32>
    %110 = arith.subf %108, %109 : vector<1x128xf32>
    %111 = vector.broadcast %110 : vector<1x128xf32> to vector<16x128xf32>
    %112 = arith.addf %107, %111 : vector<16x128xf32>
    %cst_43 = arith.constant 0.000000e+00 : f32
    %113 = vector.broadcast %cst_43 : f32 to vector<16x128xf32>
    %114 = arith.maximumf %112, %113 : vector<16x128xf32>
    %cst_44 = arith.constant 0.000000e+00 : f32
    %115 = vector.broadcast %cst_44 : f32 to vector<1x128xf32>
    %116 = vector.extract_strided_slice %114 {offsets = [0, 0], sizes = [15, 128], strides = [1, 1]} : vector<16x128xf32> to vector<15x128xf32>
    %117 = tpu.concatenate %115, %116 in 0 : vector<1x128xf32>, vector<15x128xf32> -> vector<16x128xf32>
    %cst_45 = arith.constant 0.000000e+00 : f32
    %118 = vector.shape_cast %21 : vector<16x1xi1> to vector<16x1xi1>
    %119 = vector.broadcast %118 : vector<16x1xi1> to vector<16x128xi1>
    %120 = vector.broadcast %cst_45 : f32 to vector<16x128xf32>
    %121 = arith.select %119, %117, %120 : vector<16x128xi1>, vector<16x128xf32>
    %cst_46 = arith.constant 0.000000e+00 : f32
    %122 = vector.broadcast %cst_46 : f32 to vector<1x128xf32>
    %123 = vector.extract_strided_slice %114 {offsets = [1, 0], sizes = [15, 128], strides = [1, 1]} : vector<16x128xf32> to vector<15x128xf32>
    %124 = tpu.concatenate %123, %122 in 0 : vector<15x128xf32>, vector<1x128xf32> -> vector<16x128xf32>
    %cst_47 = arith.constant 0.000000e+00 : f32
    %125 = vector.shape_cast %23 : vector<16x1xi1> to vector<16x1xi1>
    %126 = vector.broadcast %125 : vector<16x1xi1> to vector<16x128xi1>
    %127 = vector.broadcast %cst_47 : f32 to vector<16x128xf32>
    %128 = arith.select %126, %124, %127 : vector<16x128xi1>, vector<16x128xf32>
    %c1_48 = arith.constant 1 : index
    %c0_49 = arith.constant 0 : index
    %c0_50 = arith.constant 0 : index
    %129 = vector.load %arg5[%c1_48, %c0_49, %c0_50] : memref<3x128x128xf32, #tpu.memory_space<vmem>>, vector<1x128x128xf32>
    %130 = vector.shape_cast %129 : vector<1x128x128xf32> to vector<128x128xf32>
    %cst_51 = arith.constant dense<0.000000e+00> : vector<16x128xf32>
    %131 = tpu.matmul %114, %130, %cst_51 {dimension_numbers = #tpu.dot_dimension_numbers<[1], [0], [0], [1], [0, 0, 1, 1], [], []>} : vector<16x128xf32>, vector<128x128xf32>, vector<16x128xf32> -> vector<16x128xf32>
    %c0_52 = arith.constant 0 : index
    %c0_53 = arith.constant 0 : index
    %c0_54 = arith.constant 0 : index
    %132 = vector.load %arg5[%c0_52, %c0_53, %c0_54] : memref<3x128x128xf32, #tpu.memory_space<vmem>>, vector<1x128x128xf32>
    %133 = vector.shape_cast %132 : vector<1x128x128xf32> to vector<128x128xf32>
    %cst_55 = arith.constant dense<0.000000e+00> : vector<16x128xf32>
    %134 = tpu.matmul %121, %133, %cst_55 {dimension_numbers = #tpu.dot_dimension_numbers<[1], [0], [0], [1], [0, 0, 1, 1], [], []>} : vector<16x128xf32>, vector<128x128xf32>, vector<16x128xf32> -> vector<16x128xf32>
    %135 = arith.addf %131, %134 : vector<16x128xf32>
    %c2_56 = arith.constant 2 : index
    %c0_57 = arith.constant 0 : index
    %c0_58 = arith.constant 0 : index
    %136 = vector.load %arg5[%c2_56, %c0_57, %c0_58] : memref<3x128x128xf32, #tpu.memory_space<vmem>>, vector<1x128x128xf32>
    %137 = vector.shape_cast %136 : vector<1x128x128xf32> to vector<128x128xf32>
    %cst_59 = arith.constant dense<0.000000e+00> : vector<16x128xf32>
    %138 = tpu.matmul %128, %137, %cst_59 {dimension_numbers = #tpu.dot_dimension_numbers<[1], [0], [0], [1], [0, 0, 1, 1], [], []>} : vector<16x128xf32>, vector<128x128xf32>, vector<16x128xf32> -> vector<16x128xf32>
    %139 = arith.addf %135, %138 : vector<16x128xf32>
    %c0_60 = arith.constant 0 : index
    %c0_61 = arith.constant 0 : index
    %140 = vector.load %arg6[%c0_60, %c0_61] : memref<1x128xf32, #tpu.memory_space<vmem>>, vector<1x128xf32>
    %141 = vector.broadcast %140 : vector<1x128xf32> to vector<16x128xf32>
    %142 = arith.addf %139, %141 : vector<16x128xf32>
    %143 = arith.addf %142, %32 : vector<16x128xf32>
    %c0_62 = arith.constant 0 : index
    %c0_63 = arith.constant 0 : index
    %144 = vector.load %arg9[%c0_62, %c0_63] : memref<16x128xf32, #tpu.memory_space<vmem>>, vector<16x128xf32>
    tpu.vector_store %arg9[%c0_62, %c0_63], %143 {strides = array<i32>} : memref<16x128xf32, #tpu.memory_space<vmem>>, vector<16x128xf32>,
    return
  }
}

module attributes {stable_mosaic.version = 11 : i64} {
  func.func @kernel(%arg0: memref<8x256xf32, #tpu.memory_space<vmem>>, %arg1: memref<3x128x128xf32, #tpu.memory_space<vmem>>, %arg2: memref<1x128xf32, #tpu.memory_space<vmem>>, %arg3: memref<1x128xf32, #tpu.memory_space<vmem>>, %arg4: memref<1x128xf32, #tpu.memory_space<vmem>>, %arg5: memref<3x128x128xf32, #tpu.memory_space<vmem>>, %arg6: memref<1x128xf32, #tpu.memory_space<vmem>>, %arg7: memref<1x128xf32, #tpu.memory_space<vmem>>, %arg8: memref<1x128xf32, #tpu.memory_space<vmem>>, %arg9: memref<8x128xf32, #tpu.memory_space<vmem>>) attributes {dimension_semantics = [], scalar_prefetch = 0 : i64, scratch_operands = 0 : i64, tpu.core_type = #tpu.core_type<tc>} {
    %c0 = arith.constant 0 : index
    %c0_0 = arith.constant 0 : index
    %0 = vector.load %arg0[%c0, %c0_0] : memref<8x256xf32, #tpu.memory_space<vmem>>, vector<8x256xf32>
    %1 = vector.extract_strided_slice %0 {offsets = [0, 0], sizes = [8, 128], strides = [1, 1]} : vector<8x256xf32> to vector<8x128xf32>
    %2 = vector.extract_strided_slice %0 {offsets = [0, 128], sizes = [8, 128], strides = [1, 1]} : vector<8x256xf32> to vector<8x128xf32>
    %3 = tpu.iota {dimensions = array<i32: 0>} : vector<8x1xi32>
    %c4_i32 = arith.constant 4 : i32
    %c0_i32 = arith.constant 0 : i32
    %4 = arith.cmpi eq, %c4_i32, %c0_i32 : i32
    %c1_i32 = arith.constant 1 : i32
    %5 = arith.select %4, %c1_i32, %c4_i32 : i32
    %6 = vector.broadcast %5 : i32 to vector<8x1xi32>
    %7 = arith.remsi %3, %6 : vector<8x1xi32>
    %c0_i32_1 = arith.constant 0 : i32
    %8 = vector.broadcast %c0_i32_1 : i32 to vector<8x1xi32>
    %9 = arith.cmpi ne, %7, %8 : vector<8x1xi32>
    %c0_i32_2 = arith.constant 0 : i32
    %10 = vector.broadcast %c0_i32_2 : i32 to vector<8x1xi32>
    %11 = arith.cmpi slt, %7, %10 : vector<8x1xi32>
    %c0_i32_3 = arith.constant 0 : i32
    %12 = arith.cmpi slt, %5, %c0_i32_3 : i32
    %13 = vector.broadcast %12 : i1 to vector<8x1xi1>
    %14 = vector.broadcast %13 : vector<8x1xi1> to vector<8x1xi1>
    %15 = arith.xori %11, %14 : vector<8x1xi1>
    %16 = arith.andi %15, %9 : vector<8x1xi1>
    %17 = vector.broadcast %5 : i32 to vector<8x1xi32>
    %18 = arith.addi %7, %17 : vector<8x1xi32>
    %19 = arith.select %16, %18, %7 : vector<8x1xi1>, vector<8x1xi32>
    %c0_i32_4 = arith.constant 0 : i32
    %20 = vector.broadcast %c0_i32_4 : i32 to vector<8x1xi32>
    %21 = arith.cmpi ne, %19, %20 : vector<8x1xi32>
    %c3_i32 = arith.constant 3 : i32
    %22 = vector.broadcast %c3_i32 : i32 to vector<8x1xi32>
    %23 = arith.cmpi ne, %19, %22 : vector<8x1xi32>
    %cst = arith.constant 0.000000e+00 : f32
    %24 = vector.broadcast %cst : f32 to vector<1x128xf32>
    %25 = vector.extract_strided_slice %1 {offsets = [1, 0], sizes = [7, 128], strides = [1, 1]} : vector<8x128xf32> to vector<7x128xf32>
    %26 = tpu.concatenate %25, %24 in 0 : vector<7x128xf32>, vector<1x128xf32> -> vector<8x128xf32>
    %cst_5 = arith.constant 0.000000e+00 : f32
    %27 = vector.shape_cast %23 : vector<8x1xi1> to vector<8x1xi1>
    %28 = vector.broadcast %27 : vector<8x1xi1> to vector<8x128xi1>
    %29 = vector.broadcast %cst_5 : f32 to vector<8x128xf32>
    %30 = arith.select %28, %26, %29 : vector<8x128xi1>, vector<8x128xf32>
    %31 = arith.maximumf %1, %2 : vector<8x128xf32>
    %32 = arith.maximumf %31, %30 : vector<8x128xf32>
    %cst_6 = arith.constant dense<0.000000e+00> : vector<128xf32>
    %33 = vector.multi_reduction <add>, %32, %cst_6 [0] : vector<8x128xf32> to vector<128xf32>
    %34 = vector.shape_cast %33 : vector<128xf32> to vector<1x128xf32>
    %cst_7 = arith.constant 1.250000e-01 : f32
    %35 = vector.broadcast %cst_7 : f32 to vector<1x128xf32>
    %36 = arith.mulf %34, %35 : vector<1x128xf32>
    %37 = arith.mulf %32, %32 : vector<8x128xf32>
    %cst_8 = arith.constant dense<0.000000e+00> : vector<128xf32>
    %38 = vector.multi_reduction <add>, %37, %cst_8 [0] : vector<8x128xf32> to vector<128xf32>
    %39 = vector.shape_cast %38 : vector<128xf32> to vector<1x128xf32>
    %cst_9 = arith.constant 1.250000e-01 : f32
    %40 = vector.broadcast %cst_9 : f32 to vector<1x128xf32>
    %41 = arith.mulf %39, %40 : vector<1x128xf32>
    %42 = arith.mulf %36, %36 : vector<1x128xf32>
    %43 = arith.subf %41, %42 : vector<1x128xf32>
    %cst_10 = arith.constant 0.000000e+00 : f32
    %44 = vector.broadcast %cst_10 : f32 to vector<1x128xf32>
    %45 = arith.maximumf %43, %44 : vector<1x128xf32>
    %c0_11 = arith.constant 0 : index
    %c0_12 = arith.constant 0 : index
    %46 = vector.load %arg3[%c0_11, %c0_12] : memref<1x128xf32, #tpu.memory_space<vmem>>, vector<1x128xf32>
    %cst_13 = arith.constant 9.99999974E-6 : f32
    %47 = vector.broadcast %cst_13 : f32 to vector<1x128xf32>
    %48 = arith.addf %45, %47 : vector<1x128xf32>
    %49 = math.rsqrt %48 : vector<1x128xf32>
    %50 = arith.mulf %46, %49 : vector<1x128xf32>
    %51 = vector.broadcast %50 : vector<1x128xf32> to vector<8x128xf32>
    %52 = arith.mulf %32, %51 : vector<8x128xf32>
    %c0_14 = arith.constant 0 : index
    %c0_15 = arith.constant 0 : index
    %53 = vector.load %arg4[%c0_14, %c0_15] : memref<1x128xf32, #tpu.memory_space<vmem>>, vector<1x128xf32>
    %54 = arith.mulf %36, %50 : vector<1x128xf32>
    %55 = arith.subf %53, %54 : vector<1x128xf32>
    %56 = vector.broadcast %55 : vector<1x128xf32> to vector<8x128xf32>
    %57 = arith.addf %52, %56 : vector<8x128xf32>
    %cst_16 = arith.constant 0.000000e+00 : f32
    %58 = vector.broadcast %cst_16 : f32 to vector<8x128xf32>
    %59 = arith.maximumf %57, %58 : vector<8x128xf32>
    %cst_17 = arith.constant 0.000000e+00 : f32
    %60 = vector.broadcast %cst_17 : f32 to vector<1x128xf32>
    %61 = vector.extract_strided_slice %59 {offsets = [0, 0], sizes = [7, 128], strides = [1, 1]} : vector<8x128xf32> to vector<7x128xf32>
    %62 = tpu.concatenate %60, %61 in 0 : vector<1x128xf32>, vector<7x128xf32> -> vector<8x128xf32>
    %cst_18 = arith.constant 0.000000e+00 : f32
    %63 = vector.shape_cast %21 : vector<8x1xi1> to vector<8x1xi1>
    %64 = vector.broadcast %63 : vector<8x1xi1> to vector<8x128xi1>
    %65 = vector.broadcast %cst_18 : f32 to vector<8x128xf32>
    %66 = arith.select %64, %62, %65 : vector<8x128xi1>, vector<8x128xf32>
    %cst_19 = arith.constant 0.000000e+00 : f32
    %67 = vector.broadcast %cst_19 : f32 to vector<1x128xf32>
    %68 = vector.extract_strided_slice %59 {offsets = [1, 0], sizes = [7, 128], strides = [1, 1]} : vector<8x128xf32> to vector<7x128xf32>
    %69 = tpu.concatenate %68, %67 in 0 : vector<7x128xf32>, vector<1x128xf32> -> vector<8x128xf32>
    %cst_20 = arith.constant 0.000000e+00 : f32
    %70 = vector.shape_cast %23 : vector<8x1xi1> to vector<8x1xi1>
    %71 = vector.broadcast %70 : vector<8x1xi1> to vector<8x128xi1>
    %72 = vector.broadcast %cst_20 : f32 to vector<8x128xf32>
    %73 = arith.select %71, %69, %72 : vector<8x128xi1>, vector<8x128xf32>
    %c1 = arith.constant 1 : index
    %c0_21 = arith.constant 0 : index
    %c0_22 = arith.constant 0 : index
    %74 = vector.load %arg1[%c1, %c0_21, %c0_22] : memref<3x128x128xf32, #tpu.memory_space<vmem>>, vector<1x128x128xf32>
    %75 = vector.shape_cast %74 : vector<1x128x128xf32> to vector<128x128xf32>
    %cst_23 = arith.constant dense<0.000000e+00> : vector<8x128xf32>
    %76 = tpu.matmul %59, %75, %cst_23 {dimension_numbers = #tpu.dot_dimension_numbers<[1], [0], [0], [1], [0, 0, 1, 1], [], []>} : vector<8x128xf32>, vector<128x128xf32>, vector<8x128xf32> -> vector<8x128xf32>
    %c0_24 = arith.constant 0 : index
    %c0_25 = arith.constant 0 : index
    %c0_26 = arith.constant 0 : index
    %77 = vector.load %arg1[%c0_24, %c0_25, %c0_26] : memref<3x128x128xf32, #tpu.memory_space<vmem>>, vector<1x128x128xf32>
    %78 = vector.shape_cast %77 : vector<1x128x128xf32> to vector<128x128xf32>
    %cst_27 = arith.constant dense<0.000000e+00> : vector<8x128xf32>
    %79 = tpu.matmul %66, %78, %cst_27 {dimension_numbers = #tpu.dot_dimension_numbers<[1], [0], [0], [1], [0, 0, 1, 1], [], []>} : vector<8x128xf32>, vector<128x128xf32>, vector<8x128xf32> -> vector<8x128xf32>
    %80 = arith.addf %76, %79 : vector<8x128xf32>
    %c2 = arith.constant 2 : index
    %c0_28 = arith.constant 0 : index
    %c0_29 = arith.constant 0 : index
    %81 = vector.load %arg1[%c2, %c0_28, %c0_29] : memref<3x128x128xf32, #tpu.memory_space<vmem>>, vector<1x128x128xf32>
    %82 = vector.shape_cast %81 : vector<1x128x128xf32> to vector<128x128xf32>
    %cst_30 = arith.constant dense<0.000000e+00> : vector<8x128xf32>
    %83 = tpu.matmul %73, %82, %cst_30 {dimension_numbers = #tpu.dot_dimension_numbers<[1], [0], [0], [1], [0, 0, 1, 1], [], []>} : vector<8x128xf32>, vector<128x128xf32>, vector<8x128xf32> -> vector<8x128xf32>
    %84 = arith.addf %80, %83 : vector<8x128xf32>
    %c0_31 = arith.constant 0 : index
    %c0_32 = arith.constant 0 : index
    %85 = vector.load %arg2[%c0_31, %c0_32] : memref<1x128xf32, #tpu.memory_space<vmem>>, vector<1x128xf32>
    %86 = vector.broadcast %85 : vector<1x128xf32> to vector<8x128xf32>
    %87 = arith.addf %84, %86 : vector<8x128xf32>
    %cst_33 = arith.constant dense<0.000000e+00> : vector<128xf32>
    %88 = vector.multi_reduction <add>, %87, %cst_33 [0] : vector<8x128xf32> to vector<128xf32>
    %89 = vector.shape_cast %88 : vector<128xf32> to vector<1x128xf32>
    %cst_34 = arith.constant 1.250000e-01 : f32
    %90 = vector.broadcast %cst_34 : f32 to vector<1x128xf32>
    %91 = arith.mulf %89, %90 : vector<1x128xf32>
    %92 = arith.mulf %87, %87 : vector<8x128xf32>
    %cst_35 = arith.constant dense<0.000000e+00> : vector<128xf32>
    %93 = vector.multi_reduction <add>, %92, %cst_35 [0] : vector<8x128xf32> to vector<128xf32>
    %94 = vector.shape_cast %93 : vector<128xf32> to vector<1x128xf32>
    %cst_36 = arith.constant 1.250000e-01 : f32
    %95 = vector.broadcast %cst_36 : f32 to vector<1x128xf32>
    %96 = arith.mulf %94, %95 : vector<1x128xf32>
    %97 = arith.mulf %91, %91 : vector<1x128xf32>
    %98 = arith.subf %96, %97 : vector<1x128xf32>
    %cst_37 = arith.constant 0.000000e+00 : f32
    %99 = vector.broadcast %cst_37 : f32 to vector<1x128xf32>
    %100 = arith.maximumf %98, %99 : vector<1x128xf32>
    %c0_38 = arith.constant 0 : index
    %c0_39 = arith.constant 0 : index
    %101 = vector.load %arg7[%c0_38, %c0_39] : memref<1x128xf32, #tpu.memory_space<vmem>>, vector<1x128xf32>
    %cst_40 = arith.constant 9.99999974E-6 : f32
    %102 = vector.broadcast %cst_40 : f32 to vector<1x128xf32>
    %103 = arith.addf %100, %102 : vector<1x128xf32>
    %104 = math.rsqrt %103 : vector<1x128xf32>
    %105 = arith.mulf %101, %104 : vector<1x128xf32>
    %106 = vector.broadcast %105 : vector<1x128xf32> to vector<8x128xf32>
    %107 = arith.mulf %87, %106 : vector<8x128xf32>
    %c0_41 = arith.constant 0 : index
    %c0_42 = arith.constant 0 : index
    %108 = vector.load %arg8[%c0_41, %c0_42] : memref<1x128xf32, #tpu.memory_space<vmem>>, vector<1x128xf32>
    %109 = arith.mulf %91, %105 : vector<1x128xf32>
    %110 = arith.subf %108, %109 : vector<1x128xf32>
    %111 = vector.broadcast %110 : vector<1x128xf32> to vector<8x128xf32>
    %112 = arith.addf %107, %111 : vector<8x128xf32>
    %cst_43 = arith.constant 0.000000e+00 : f32
    %113 = vector.broadcast %cst_43 : f32 to vector<8x128xf32>
    %114 = arith.maximumf %112, %113 : vector<8x128xf32>
    %cst_44 = arith.constant 0.000000e+00 : f32
    %115 = vector.broadcast %cst_44 : f32 to vector<1x128xf32>
    %116 = vector.extract_strided_slice %114 {offsets = [0, 0], sizes = [7, 128], strides = [1, 1]} : vector<8x128xf32> to vector<7x128xf32>
    %117 = tpu.concatenate %115, %116 in 0 : vector<1x128xf32>, vector<7x128xf32> -> vector<8x128xf32>
    %cst_45 = arith.constant 0.000000e+00 : f32
    %118 = vector.shape_cast %21 : vector<8x1xi1> to vector<8x1xi1>
    %119 = vector.broadcast %118 : vector<8x1xi1> to vector<8x128xi1>
    %120 = vector.broadcast %cst_45 : f32 to vector<8x128xf32>
    %121 = arith.select %119, %117, %120 : vector<8x128xi1>, vector<8x128xf32>
    %cst_46 = arith.constant 0.000000e+00 : f32
    %122 = vector.broadcast %cst_46 : f32 to vector<1x128xf32>
    %123 = vector.extract_strided_slice %114 {offsets = [1, 0], sizes = [7, 128], strides = [1, 1]} : vector<8x128xf32> to vector<7x128xf32>
    %124 = tpu.concatenate %123, %122 in 0 : vector<7x128xf32>, vector<1x128xf32> -> vector<8x128xf32>
    %cst_47 = arith.constant 0.000000e+00 : f32
    %125 = vector.shape_cast %23 : vector<8x1xi1> to vector<8x1xi1>
    %126 = vector.broadcast %125 : vector<8x1xi1> to vector<8x128xi1>
    %127 = vector.broadcast %cst_47 : f32 to vector<8x128xf32>
    %128 = arith.select %126, %124, %127 : vector<8x128xi1>, vector<8x128xf32>
    %c1_48 = arith.constant 1 : index
    %c0_49 = arith.constant 0 : index
    %c0_50 = arith.constant 0 : index
    %129 = vector.load %arg5[%c1_48, %c0_49, %c0_50] : memref<3x128x128xf32, #tpu.memory_space<vmem>>, vector<1x128x128xf32>
    %130 = vector.shape_cast %129 : vector<1x128x128xf32> to vector<128x128xf32>
    %cst_51 = arith.constant dense<0.000000e+00> : vector<8x128xf32>
    %131 = tpu.matmul %114, %130, %cst_51 {dimension_numbers = #tpu.dot_dimension_numbers<[1], [0], [0], [1], [0, 0, 1, 1], [], []>} : vector<8x128xf32>, vector<128x128xf32>, vector<8x128xf32> -> vector<8x128xf32>
    %c0_52 = arith.constant 0 : index
    %c0_53 = arith.constant 0 : index
    %c0_54 = arith.constant 0 : index
    %132 = vector.load %arg5[%c0_52, %c0_53, %c0_54] : memref<3x128x128xf32, #tpu.memory_space<vmem>>, vector<1x128x128xf32>
    %133 = vector.shape_cast %132 : vector<1x128x128xf32> to vector<128x128xf32>
    %cst_55 = arith.constant dense<0.000000e+00> : vector<8x128xf32>
    %134 = tpu.matmul %121, %133, %cst_55 {dimension_numbers = #tpu.dot_dimension_numbers<[1], [0], [0], [1], [0, 0, 1, 1], [], []>} : vector<8x128xf32>, vector<128x128xf32>, vector<8x128xf32> -> vector<8x128xf32>
    %135 = arith.addf %131, %134 : vector<8x128xf32>
    %c2_56 = arith.constant 2 : index
    %c0_57 = arith.constant 0 : index
    %c0_58 = arith.constant 0 : index
    %136 = vector.load %arg5[%c2_56, %c0_57, %c0_58] : memref<3x128x128xf32, #tpu.memory_space<vmem>>, vector<1x128x128xf32>
    %137 = vector.shape_cast %136 : vector<1x128x128xf32> to vector<128x128xf32>
    %cst_59 = arith.constant dense<0.000000e+00> : vector<8x128xf32>
    %138 = tpu.matmul %128, %137, %cst_59 {dimension_numbers = #tpu.dot_dimension_numbers<[1], [0], [0], [1], [0, 0, 1, 1], [], []>} : vector<8x128xf32>, vector<128x128xf32>, vector<8x128xf32> -> vector<8x128xf32>
    %139 = arith.addf %135, %138 : vector<8x128xf32>
    %c0_60 = arith.constant 0 : index
    %c0_61 = arith.constant 0 : index
    %140 = vector.load %arg6[%c0_60, %c0_61] : memref<1x128xf32, #tpu.memory_space<vmem>>, vector<1x128xf32>
    %141 = vector.broadcast %140 : vector<1x128xf32> to vector<8x128xf32>
    %142 = arith.addf %139, %141 : vector<8x128xf32>
    %143 = arith.addf %142, %32 : vector<8x128xf32>
    %c0_62 = arith.constant 0 : index
    %c0_63 = arith.constant 0 : index
    %144 = vector.load %arg9[%c0_62, %c0_63] : memref<8x128xf32, #tpu.memory_space<vmem>>, vector<8x128xf32>
    tpu.vector_store %arg9[%c0_62, %c0_63], %143 {strides = array<i32>} : memref<8x128xf32, #tpu.memory_space<vmem>>, vector<8x128xf32>,
    return
  }
}

module attributes {stable_mosaic.version = 11 : i64} {
  func.func @kernel(%arg0: memref<4x256xf32, #tpu.memory_space<vmem>>, %arg1: memref<3x128x128xf32, #tpu.memory_space<vmem>>, %arg2: memref<1x128xf32, #tpu.memory_space<vmem>>, %arg3: memref<1x128xf32, #tpu.memory_space<vmem>>, %arg4: memref<1x128xf32, #tpu.memory_space<vmem>>, %arg5: memref<3x128x128xf32, #tpu.memory_space<vmem>>, %arg6: memref<1x128xf32, #tpu.memory_space<vmem>>, %arg7: memref<1x128xf32, #tpu.memory_space<vmem>>, %arg8: memref<1x128xf32, #tpu.memory_space<vmem>>, %arg9: memref<4x128xf32, #tpu.memory_space<vmem>>) attributes {dimension_semantics = [], scalar_prefetch = 0 : i64, scratch_operands = 0 : i64, tpu.core_type = #tpu.core_type<tc>} {
    %c0 = arith.constant 0 : index
    %c0_0 = arith.constant 0 : index
    %0 = vector.load %arg0[%c0, %c0_0] : memref<4x256xf32, #tpu.memory_space<vmem>>, vector<4x256xf32>
    %1 = vector.extract_strided_slice %0 {offsets = [0, 0], sizes = [4, 128], strides = [1, 1]} : vector<4x256xf32> to vector<4x128xf32>
    %2 = vector.extract_strided_slice %0 {offsets = [0, 128], sizes = [4, 128], strides = [1, 1]} : vector<4x256xf32> to vector<4x128xf32>
    %3 = tpu.iota {dimensions = array<i32: 0>} : vector<4x1xi32>
    %c2_i32 = arith.constant 2 : i32
    %c0_i32 = arith.constant 0 : i32
    %4 = arith.cmpi eq, %c2_i32, %c0_i32 : i32
    %c1_i32 = arith.constant 1 : i32
    %5 = arith.select %4, %c1_i32, %c2_i32 : i32
    %6 = vector.broadcast %5 : i32 to vector<4x1xi32>
    %7 = arith.remsi %3, %6 : vector<4x1xi32>
    %c0_i32_1 = arith.constant 0 : i32
    %8 = vector.broadcast %c0_i32_1 : i32 to vector<4x1xi32>
    %9 = arith.cmpi ne, %7, %8 : vector<4x1xi32>
    %c0_i32_2 = arith.constant 0 : i32
    %10 = vector.broadcast %c0_i32_2 : i32 to vector<4x1xi32>
    %11 = arith.cmpi slt, %7, %10 : vector<4x1xi32>
    %c0_i32_3 = arith.constant 0 : i32
    %12 = arith.cmpi slt, %5, %c0_i32_3 : i32
    %13 = vector.broadcast %12 : i1 to vector<4x1xi1>
    %14 = vector.broadcast %13 : vector<4x1xi1> to vector<4x1xi1>
    %15 = arith.xori %11, %14 : vector<4x1xi1>
    %16 = arith.andi %15, %9 : vector<4x1xi1>
    %17 = vector.broadcast %5 : i32 to vector<4x1xi32>
    %18 = arith.addi %7, %17 : vector<4x1xi32>
    %19 = arith.select %16, %18, %7 : vector<4x1xi1>, vector<4x1xi32>
    %c0_i32_4 = arith.constant 0 : i32
    %20 = vector.broadcast %c0_i32_4 : i32 to vector<4x1xi32>
    %21 = arith.cmpi ne, %19, %20 : vector<4x1xi32>
    %c1_i32_5 = arith.constant 1 : i32
    %22 = vector.broadcast %c1_i32_5 : i32 to vector<4x1xi32>
    %23 = arith.cmpi ne, %19, %22 : vector<4x1xi32>
    %cst = arith.constant 0.000000e+00 : f32
    %24 = vector.broadcast %cst : f32 to vector<1x128xf32>
    %25 = vector.extract_strided_slice %1 {offsets = [1, 0], sizes = [3, 128], strides = [1, 1]} : vector<4x128xf32> to vector<3x128xf32>
    %26 = tpu.concatenate %25, %24 in 0 : vector<3x128xf32>, vector<1x128xf32> -> vector<4x128xf32>
    %cst_6 = arith.constant 0.000000e+00 : f32
    %27 = vector.shape_cast %23 : vector<4x1xi1> to vector<4x1xi1>
    %28 = vector.broadcast %27 : vector<4x1xi1> to vector<4x128xi1>
    %29 = vector.broadcast %cst_6 : f32 to vector<4x128xf32>
    %30 = arith.select %28, %26, %29 : vector<4x128xi1>, vector<4x128xf32>
    %31 = arith.maximumf %1, %2 : vector<4x128xf32>
    %32 = arith.maximumf %31, %30 : vector<4x128xf32>
    %cst_7 = arith.constant dense<0.000000e+00> : vector<128xf32>
    %33 = vector.multi_reduction <add>, %32, %cst_7 [0] : vector<4x128xf32> to vector<128xf32>
    %34 = vector.shape_cast %33 : vector<128xf32> to vector<1x128xf32>
    %cst_8 = arith.constant 2.500000e-01 : f32
    %35 = vector.broadcast %cst_8 : f32 to vector<1x128xf32>
    %36 = arith.mulf %34, %35 : vector<1x128xf32>
    %37 = arith.mulf %32, %32 : vector<4x128xf32>
    %cst_9 = arith.constant dense<0.000000e+00> : vector<128xf32>
    %38 = vector.multi_reduction <add>, %37, %cst_9 [0] : vector<4x128xf32> to vector<128xf32>
    %39 = vector.shape_cast %38 : vector<128xf32> to vector<1x128xf32>
    %cst_10 = arith.constant 2.500000e-01 : f32
    %40 = vector.broadcast %cst_10 : f32 to vector<1x128xf32>
    %41 = arith.mulf %39, %40 : vector<1x128xf32>
    %42 = arith.mulf %36, %36 : vector<1x128xf32>
    %43 = arith.subf %41, %42 : vector<1x128xf32>
    %cst_11 = arith.constant 0.000000e+00 : f32
    %44 = vector.broadcast %cst_11 : f32 to vector<1x128xf32>
    %45 = arith.maximumf %43, %44 : vector<1x128xf32>
    %c0_12 = arith.constant 0 : index
    %c0_13 = arith.constant 0 : index
    %46 = vector.load %arg3[%c0_12, %c0_13] : memref<1x128xf32, #tpu.memory_space<vmem>>, vector<1x128xf32>
    %cst_14 = arith.constant 9.99999974E-6 : f32
    %47 = vector.broadcast %cst_14 : f32 to vector<1x128xf32>
    %48 = arith.addf %45, %47 : vector<1x128xf32>
    %49 = math.rsqrt %48 : vector<1x128xf32>
    %50 = arith.mulf %46, %49 : vector<1x128xf32>
    %51 = vector.broadcast %50 : vector<1x128xf32> to vector<4x128xf32>
    %52 = arith.mulf %32, %51 : vector<4x128xf32>
    %c0_15 = arith.constant 0 : index
    %c0_16 = arith.constant 0 : index
    %53 = vector.load %arg4[%c0_15, %c0_16] : memref<1x128xf32, #tpu.memory_space<vmem>>, vector<1x128xf32>
    %54 = arith.mulf %36, %50 : vector<1x128xf32>
    %55 = arith.subf %53, %54 : vector<1x128xf32>
    %56 = vector.broadcast %55 : vector<1x128xf32> to vector<4x128xf32>
    %57 = arith.addf %52, %56 : vector<4x128xf32>
    %cst_17 = arith.constant 0.000000e+00 : f32
    %58 = vector.broadcast %cst_17 : f32 to vector<4x128xf32>
    %59 = arith.maximumf %57, %58 : vector<4x128xf32>
    %cst_18 = arith.constant 0.000000e+00 : f32
    %60 = vector.broadcast %cst_18 : f32 to vector<1x128xf32>
    %61 = vector.extract_strided_slice %59 {offsets = [0, 0], sizes = [3, 128], strides = [1, 1]} : vector<4x128xf32> to vector<3x128xf32>
    %62 = tpu.concatenate %60, %61 in 0 : vector<1x128xf32>, vector<3x128xf32> -> vector<4x128xf32>
    %cst_19 = arith.constant 0.000000e+00 : f32
    %63 = vector.shape_cast %21 : vector<4x1xi1> to vector<4x1xi1>
    %64 = vector.broadcast %63 : vector<4x1xi1> to vector<4x128xi1>
    %65 = vector.broadcast %cst_19 : f32 to vector<4x128xf32>
    %66 = arith.select %64, %62, %65 : vector<4x128xi1>, vector<4x128xf32>
    %cst_20 = arith.constant 0.000000e+00 : f32
    %67 = vector.broadcast %cst_20 : f32 to vector<1x128xf32>
    %68 = vector.extract_strided_slice %59 {offsets = [1, 0], sizes = [3, 128], strides = [1, 1]} : vector<4x128xf32> to vector<3x128xf32>
    %69 = tpu.concatenate %68, %67 in 0 : vector<3x128xf32>, vector<1x128xf32> -> vector<4x128xf32>
    %cst_21 = arith.constant 0.000000e+00 : f32
    %70 = vector.shape_cast %23 : vector<4x1xi1> to vector<4x1xi1>
    %71 = vector.broadcast %70 : vector<4x1xi1> to vector<4x128xi1>
    %72 = vector.broadcast %cst_21 : f32 to vector<4x128xf32>
    %73 = arith.select %71, %69, %72 : vector<4x128xi1>, vector<4x128xf32>
    %c1 = arith.constant 1 : index
    %c0_22 = arith.constant 0 : index
    %c0_23 = arith.constant 0 : index
    %74 = vector.load %arg1[%c1, %c0_22, %c0_23] : memref<3x128x128xf32, #tpu.memory_space<vmem>>, vector<1x128x128xf32>
    %75 = vector.shape_cast %74 : vector<1x128x128xf32> to vector<128x128xf32>
    %cst_24 = arith.constant dense<0.000000e+00> : vector<4x128xf32>
    %76 = tpu.matmul %59, %75, %cst_24 {dimension_numbers = #tpu.dot_dimension_numbers<[1], [0], [0], [1], [0, 0, 1, 1], [], []>} : vector<4x128xf32>, vector<128x128xf32>, vector<4x128xf32> -> vector<4x128xf32>
    %c0_25 = arith.constant 0 : index
    %c0_26 = arith.constant 0 : index
    %c0_27 = arith.constant 0 : index
    %77 = vector.load %arg1[%c0_25, %c0_26, %c0_27] : memref<3x128x128xf32, #tpu.memory_space<vmem>>, vector<1x128x128xf32>
    %78 = vector.shape_cast %77 : vector<1x128x128xf32> to vector<128x128xf32>
    %cst_28 = arith.constant dense<0.000000e+00> : vector<4x128xf32>
    %79 = tpu.matmul %66, %78, %cst_28 {dimension_numbers = #tpu.dot_dimension_numbers<[1], [0], [0], [1], [0, 0, 1, 1], [], []>} : vector<4x128xf32>, vector<128x128xf32>, vector<4x128xf32> -> vector<4x128xf32>
    %80 = arith.addf %76, %79 : vector<4x128xf32>
    %c2 = arith.constant 2 : index
    %c0_29 = arith.constant 0 : index
    %c0_30 = arith.constant 0 : index
    %81 = vector.load %arg1[%c2, %c0_29, %c0_30] : memref<3x128x128xf32, #tpu.memory_space<vmem>>, vector<1x128x128xf32>
    %82 = vector.shape_cast %81 : vector<1x128x128xf32> to vector<128x128xf32>
    %cst_31 = arith.constant dense<0.000000e+00> : vector<4x128xf32>
    %83 = tpu.matmul %73, %82, %cst_31 {dimension_numbers = #tpu.dot_dimension_numbers<[1], [0], [0], [1], [0, 0, 1, 1], [], []>} : vector<4x128xf32>, vector<128x128xf32>, vector<4x128xf32> -> vector<4x128xf32>
    %84 = arith.addf %80, %83 : vector<4x128xf32>
    %c0_32 = arith.constant 0 : index
    %c0_33 = arith.constant 0 : index
    %85 = vector.load %arg2[%c0_32, %c0_33] : memref<1x128xf32, #tpu.memory_space<vmem>>, vector<1x128xf32>
    %86 = vector.broadcast %85 : vector<1x128xf32> to vector<4x128xf32>
    %87 = arith.addf %84, %86 : vector<4x128xf32>
    %cst_34 = arith.constant dense<0.000000e+00> : vector<128xf32>
    %88 = vector.multi_reduction <add>, %87, %cst_34 [0] : vector<4x128xf32> to vector<128xf32>
    %89 = vector.shape_cast %88 : vector<128xf32> to vector<1x128xf32>
    %cst_35 = arith.constant 2.500000e-01 : f32
    %90 = vector.broadcast %cst_35 : f32 to vector<1x128xf32>
    %91 = arith.mulf %89, %90 : vector<1x128xf32>
    %92 = arith.mulf %87, %87 : vector<4x128xf32>
    %cst_36 = arith.constant dense<0.000000e+00> : vector<128xf32>
    %93 = vector.multi_reduction <add>, %92, %cst_36 [0] : vector<4x128xf32> to vector<128xf32>
    %94 = vector.shape_cast %93 : vector<128xf32> to vector<1x128xf32>
    %cst_37 = arith.constant 2.500000e-01 : f32
    %95 = vector.broadcast %cst_37 : f32 to vector<1x128xf32>
    %96 = arith.mulf %94, %95 : vector<1x128xf32>
    %97 = arith.mulf %91, %91 : vector<1x128xf32>
    %98 = arith.subf %96, %97 : vector<1x128xf32>
    %cst_38 = arith.constant 0.000000e+00 : f32
    %99 = vector.broadcast %cst_38 : f32 to vector<1x128xf32>
    %100 = arith.maximumf %98, %99 : vector<1x128xf32>
    %c0_39 = arith.constant 0 : index
    %c0_40 = arith.constant 0 : index
    %101 = vector.load %arg7[%c0_39, %c0_40] : memref<1x128xf32, #tpu.memory_space<vmem>>, vector<1x128xf32>
    %cst_41 = arith.constant 9.99999974E-6 : f32
    %102 = vector.broadcast %cst_41 : f32 to vector<1x128xf32>
    %103 = arith.addf %100, %102 : vector<1x128xf32>
    %104 = math.rsqrt %103 : vector<1x128xf32>
    %105 = arith.mulf %101, %104 : vector<1x128xf32>
    %106 = vector.broadcast %105 : vector<1x128xf32> to vector<4x128xf32>
    %107 = arith.mulf %87, %106 : vector<4x128xf32>
    %c0_42 = arith.constant 0 : index
    %c0_43 = arith.constant 0 : index
    %108 = vector.load %arg8[%c0_42, %c0_43] : memref<1x128xf32, #tpu.memory_space<vmem>>, vector<1x128xf32>
    %109 = arith.mulf %91, %105 : vector<1x128xf32>
    %110 = arith.subf %108, %109 : vector<1x128xf32>
    %111 = vector.broadcast %110 : vector<1x128xf32> to vector<4x128xf32>
    %112 = arith.addf %107, %111 : vector<4x128xf32>
    %cst_44 = arith.constant 0.000000e+00 : f32
    %113 = vector.broadcast %cst_44 : f32 to vector<4x128xf32>
    %114 = arith.maximumf %112, %113 : vector<4x128xf32>
    %cst_45 = arith.constant 0.000000e+00 : f32
    %115 = vector.broadcast %cst_45 : f32 to vector<1x128xf32>
    %116 = vector.extract_strided_slice %114 {offsets = [0, 0], sizes = [3, 128], strides = [1, 1]} : vector<4x128xf32> to vector<3x128xf32>
    %117 = tpu.concatenate %115, %116 in 0 : vector<1x128xf32>, vector<3x128xf32> -> vector<4x128xf32>
    %cst_46 = arith.constant 0.000000e+00 : f32
    %118 = vector.shape_cast %21 : vector<4x1xi1> to vector<4x1xi1>
    %119 = vector.broadcast %118 : vector<4x1xi1> to vector<4x128xi1>
    %120 = vector.broadcast %cst_46 : f32 to vector<4x128xf32>
    %121 = arith.select %119, %117, %120 : vector<4x128xi1>, vector<4x128xf32>
    %cst_47 = arith.constant 0.000000e+00 : f32
    %122 = vector.broadcast %cst_47 : f32 to vector<1x128xf32>
    %123 = vector.extract_strided_slice %114 {offsets = [1, 0], sizes = [3, 128], strides = [1, 1]} : vector<4x128xf32> to vector<3x128xf32>
    %124 = tpu.concatenate %123, %122 in 0 : vector<3x128xf32>, vector<1x128xf32> -> vector<4x128xf32>
    %cst_48 = arith.constant 0.000000e+00 : f32
    %125 = vector.shape_cast %23 : vector<4x1xi1> to vector<4x1xi1>
    %126 = vector.broadcast %125 : vector<4x1xi1> to vector<4x128xi1>
    %127 = vector.broadcast %cst_48 : f32 to vector<4x128xf32>
    %128 = arith.select %126, %124, %127 : vector<4x128xi1>, vector<4x128xf32>
    %c1_49 = arith.constant 1 : index
    %c0_50 = arith.constant 0 : index
    %c0_51 = arith.constant 0 : index
    %129 = vector.load %arg5[%c1_49, %c0_50, %c0_51] : memref<3x128x128xf32, #tpu.memory_space<vmem>>, vector<1x128x128xf32>
    %130 = vector.shape_cast %129 : vector<1x128x128xf32> to vector<128x128xf32>
    %cst_52 = arith.constant dense<0.000000e+00> : vector<4x128xf32>
    %131 = tpu.matmul %114, %130, %cst_52 {dimension_numbers = #tpu.dot_dimension_numbers<[1], [0], [0], [1], [0, 0, 1, 1], [], []>} : vector<4x128xf32>, vector<128x128xf32>, vector<4x128xf32> -> vector<4x128xf32>
    %c0_53 = arith.constant 0 : index
    %c0_54 = arith.constant 0 : index
    %c0_55 = arith.constant 0 : index
    %132 = vector.load %arg5[%c0_53, %c0_54, %c0_55] : memref<3x128x128xf32, #tpu.memory_space<vmem>>, vector<1x128x128xf32>
    %133 = vector.shape_cast %132 : vector<1x128x128xf32> to vector<128x128xf32>
    %cst_56 = arith.constant dense<0.000000e+00> : vector<4x128xf32>
    %134 = tpu.matmul %121, %133, %cst_56 {dimension_numbers = #tpu.dot_dimension_numbers<[1], [0], [0], [1], [0, 0, 1, 1], [], []>} : vector<4x128xf32>, vector<128x128xf32>, vector<4x128xf32> -> vector<4x128xf32>
    %135 = arith.addf %131, %134 : vector<4x128xf32>
    %c2_57 = arith.constant 2 : index
    %c0_58 = arith.constant 0 : index
    %c0_59 = arith.constant 0 : index
    %136 = vector.load %arg5[%c2_57, %c0_58, %c0_59] : memref<3x128x128xf32, #tpu.memory_space<vmem>>, vector<1x128x128xf32>
    %137 = vector.shape_cast %136 : vector<1x128x128xf32> to vector<128x128xf32>
    %cst_60 = arith.constant dense<0.000000e+00> : vector<4x128xf32>
    %138 = tpu.matmul %128, %137, %cst_60 {dimension_numbers = #tpu.dot_dimension_numbers<[1], [0], [0], [1], [0, 0, 1, 1], [], []>} : vector<4x128xf32>, vector<128x128xf32>, vector<4x128xf32> -> vector<4x128xf32>
    %139 = arith.addf %135, %138 : vector<4x128xf32>
    %c0_61 = arith.constant 0 : index
    %c0_62 = arith.constant 0 : index
    %140 = vector.load %arg6[%c0_61, %c0_62] : memref<1x128xf32, #tpu.memory_space<vmem>>, vector<1x128xf32>
    %141 = vector.broadcast %140 : vector<1x128xf32> to vector<4x128xf32>
    %142 = arith.addf %139, %141 : vector<4x128xf32>
    %143 = arith.addf %142, %32 : vector<4x128xf32>
    %c0_63 = arith.constant 0 : index
    %c0_64 = arith.constant 0 : index
    %144 = vector.load %arg9[%c0_63, %c0_64] : memref<4x128xf32, #tpu.memory_space<vmem>>, vector<4x128xf32>
    tpu.vector_store %arg9[%c0_63, %c0_64], %143 {strides = array<i32>} : memref<4x128xf32, #tpu.memory_space<vmem>>, vector<4x128xf32>,
    return
  }
}

module attributes {stable_mosaic.version = 11 : i64} {
  func.func @kernel(%arg0: memref<2x256xf32, #tpu.memory_space<vmem>>, %arg1: memref<256x128xf32, #tpu.memory_space<vmem>>, %arg2: memref<1x128xf32, #tpu.memory_space<vmem>>, %arg3: memref<1x128xf32, #tpu.memory_space<vmem>>, %arg4: memref<1x128xf32, #tpu.memory_space<vmem>>, %arg5: memref<128x128xf32, #tpu.memory_space<vmem>>, %arg6: memref<1x128xf32, #tpu.memory_space<vmem>>, %arg7: memref<2x128xf32, #tpu.memory_space<vmem>>) attributes {dimension_semantics = [], scalar_prefetch = 0 : i64, scratch_operands = 0 : i64, tpu.core_type = #tpu.core_type<tc>} {
    %c0 = arith.constant 0 : index
    %c0_0 = arith.constant 0 : index
    %0 = vector.load %arg0[%c0, %c0_0] : memref<2x256xf32, #tpu.memory_space<vmem>>, vector<2x256xf32>
    %c0_1 = arith.constant 0 : index
    %c0_2 = arith.constant 0 : index
    %1 = vector.load %arg1[%c0_1, %c0_2] : memref<256x128xf32, #tpu.memory_space<vmem>>, vector<256x128xf32>
    %cst = arith.constant dense<0.000000e+00> : vector<2x128xf32>
    %2 = tpu.matmul %0, %1, %cst {dimension_numbers = #tpu.dot_dimension_numbers<[1], [0], [0], [1], [0, 0, 1, 1], [], []>} : vector<2x256xf32>, vector<256x128xf32>, vector<2x128xf32> -> vector<2x128xf32>
    %c0_3 = arith.constant 0 : index
    %c0_4 = arith.constant 0 : index
    %3 = vector.load %arg2[%c0_3, %c0_4] : memref<1x128xf32, #tpu.memory_space<vmem>>, vector<1x128xf32>
    %4 = vector.broadcast %3 : vector<1x128xf32> to vector<2x128xf32>
    %5 = arith.addf %2, %4 : vector<2x128xf32>
    %cst_5 = arith.constant dense<0.000000e+00> : vector<128xf32>
    %6 = vector.multi_reduction <add>, %5, %cst_5 [0] : vector<2x128xf32> to vector<128xf32>
    %7 = vector.shape_cast %6 : vector<128xf32> to vector<1x128xf32>
    %cst_6 = arith.constant 5.000000e-01 : f32
    %8 = vector.broadcast %cst_6 : f32 to vector<1x128xf32>
    %9 = arith.mulf %7, %8 : vector<1x128xf32>
    %10 = arith.mulf %5, %5 : vector<2x128xf32>
    %cst_7 = arith.constant dense<0.000000e+00> : vector<128xf32>
    %11 = vector.multi_reduction <add>, %10, %cst_7 [0] : vector<2x128xf32> to vector<128xf32>
    %12 = vector.shape_cast %11 : vector<128xf32> to vector<1x128xf32>
    %cst_8 = arith.constant 5.000000e-01 : f32
    %13 = vector.broadcast %cst_8 : f32 to vector<1x128xf32>
    %14 = arith.mulf %12, %13 : vector<1x128xf32>
    %15 = arith.mulf %9, %9 : vector<1x128xf32>
    %16 = arith.subf %14, %15 : vector<1x128xf32>
    %cst_9 = arith.constant 0.000000e+00 : f32
    %17 = vector.broadcast %cst_9 : f32 to vector<1x128xf32>
    %18 = arith.maximumf %16, %17 : vector<1x128xf32>
    %c0_10 = arith.constant 0 : index
    %c0_11 = arith.constant 0 : index
    %19 = vector.load %arg3[%c0_10, %c0_11] : memref<1x128xf32, #tpu.memory_space<vmem>>, vector<1x128xf32>
    %cst_12 = arith.constant 9.99999974E-6 : f32
    %20 = vector.broadcast %cst_12 : f32 to vector<1x128xf32>
    %21 = arith.addf %18, %20 : vector<1x128xf32>
    %22 = math.rsqrt %21 : vector<1x128xf32>
    %23 = arith.mulf %19, %22 : vector<1x128xf32>
    %24 = vector.broadcast %23 : vector<1x128xf32> to vector<2x128xf32>
    %25 = arith.mulf %5, %24 : vector<2x128xf32>
    %c0_13 = arith.constant 0 : index
    %c0_14 = arith.constant 0 : index
    %26 = vector.load %arg4[%c0_13, %c0_14] : memref<1x128xf32, #tpu.memory_space<vmem>>, vector<1x128xf32>
    %27 = arith.mulf %9, %23 : vector<1x128xf32>
    %28 = arith.subf %26, %27 : vector<1x128xf32>
    %29 = vector.broadcast %28 : vector<1x128xf32> to vector<2x128xf32>
    %30 = arith.addf %25, %29 : vector<2x128xf32>
    %cst_15 = arith.constant 0.000000e+00 : f32
    %31 = vector.broadcast %cst_15 : f32 to vector<2x128xf32>
    %32 = arith.maximumf %30, %31 : vector<2x128xf32>
    %c0_16 = arith.constant 0 : index
    %c0_17 = arith.constant 0 : index
    %33 = vector.load %arg5[%c0_16, %c0_17] : memref<128x128xf32, #tpu.memory_space<vmem>>, vector<128x128xf32>
    %cst_18 = arith.constant dense<0.000000e+00> : vector<2x128xf32>
    %34 = tpu.matmul %32, %33, %cst_18 {dimension_numbers = #tpu.dot_dimension_numbers<[1], [0], [0], [1], [0, 0, 1, 1], [], []>} : vector<2x128xf32>, vector<128x128xf32>, vector<2x128xf32> -> vector<2x128xf32>
    %c0_19 = arith.constant 0 : index
    %c0_20 = arith.constant 0 : index
    %35 = vector.load %arg6[%c0_19, %c0_20] : memref<1x128xf32, #tpu.memory_space<vmem>>, vector<1x128xf32>
    %36 = vector.broadcast %35 : vector<1x128xf32> to vector<2x128xf32>
    %37 = arith.addf %34, %36 : vector<2x128xf32>
    %c0_21 = arith.constant 0 : index
    %c0_22 = arith.constant 0 : index
    %38 = vector.load %arg7[%c0_21, %c0_22] : memref<2x128xf32, #tpu.memory_space<vmem>>, vector<2x128xf32>
    tpu.vector_store %arg7[%c0_21, %c0_22], %37 {strides = array<i32>} : memref<2x128xf32, #tpu.memory_space<vmem>>, vector<2x128xf32>,
    return
  }
}

</mosaic_0001>

<llo_original>
// kernel: dpcnn_forward.9
$region0: #{dpcnn_forward.9}
  #allocation0 [shape = 'u32[]', space=smem, size = 0x4, offset = 0x4, fixed_abs, tag = 'smem constant byte address 0x4 - core index']
  #allocation1 [shape = 'u32[144,128]{1,0:T(1,128)}', space=vmem, size = 0x12000, scoped, tag = 'internal scratch']
  %s0 = inlined_call_operand.vmem [shape: f32[32,128], index: 0, kind: input, shape index: {}]
  %s1 = inlined_call_operand.vmem [shape: f32[1,128], index: 1, kind: input, shape index: {}]
  %s2 = inlined_call_operand.vmem [shape: f32[1,128], index: 2, kind: input, shape index: {}]
  %s3 = inlined_call_operand.vmem [shape: f32[1,2,128], index: 3, kind: output, shape index: {}]
  %s4 = sld [smem:[#allocation0]]
  $region22: #{dpcnn_forward.9} parent=0
    _
  %s6 = ssub.s32 1, %s4
  %s7 = scalar_select 0, %s6, %s4
  // Predicated region
  $region2: #{dpcnn_forward.9} parent=0 // pred_check
    _
  $region3: #{dpcnn_forward.9} parent=0 // pred_check_branch
    %9 = sbr.rel (0) target = $region5
  $region4: #{dpcnn_forward.9} parent=0 // pred_region
    _
  $region5: #{dpcnn_forward.9} parent=0 // pred_fallthru
    _
  // Predicated region
  $region6: #{dpcnn_forward.9} parent=0 // pred_check
    _
  $region7: #{dpcnn_forward.9} parent=0 // pred_check_branch
    %11 = sbr.rel (0) target = $region9
  $region8: #{dpcnn_forward.9} parent=0 // pred_region
    _
  $region9: #{dpcnn_forward.9} parent=0 // pred_fallthru
    _
  // Predicated region
  $region10: #{dpcnn_forward.9} parent=0 // pred_check
    _
  $region11: #{dpcnn_forward.9} parent=0 // pred_check_branch
    %13 = sbr.rel (0) target = $region13
  $region12: #{dpcnn_forward.9} parent=0 // pred_region
    _
  $region13: #{dpcnn_forward.9} parent=0 // pred_fallthru
    _
  %v14 = vld [vmem:[%s0] sm:$0xff]
  %v15 = vld [vmem:[%s0 + $0x8] sm:$0xff]
  %v16 = vld [vmem:[%s0 + $0x10] sm:$0xff]
  %v17 = vld [vmem:[%s0 + $0x18] sm:$0xff]
  %v18 = vld [vmem:[%s1] sm:$0x1]
  %v20 = vlaneseq
  %v21 = vshrl.u32 %v20, 7
  %v22 = vsub.s32 0, %v21
  %v23 = vrot.slane %v18, %v22
  %v25 = vmul.f32 %v14, %v23
  %v26 = vmul.f32 %v15, %v23
  %v27 = vmul.f32 %v16, %v23
  %v28 = vmul.f32 %v17, %v23
  %v29 = vld [vmem:[%s2] sm:$0x1]
  %v31 = vlaneseq
  %v32 = vshrl.u32 %v31, 7
  %v33 = vsub.s32 0, %v32
  %v34 = vrot.slane %v29, %v33
  %v36 = vadd.f32 %v25, %v34
  %v37 = vadd.f32 %v26, %v34
  %v38 = vadd.f32 %v27, %v34
  %v39 = vadd.f32 %v28, %v34
  %v40 = vmax.f32 %v36, 0.0
  %v41 = vmax.f32 %v37, 0.0
  %v42 = vmax.f32 %v38, 0.0
  %v43 = vmax.f32 %v39, 0.0
  %v44 = vadd.f32 %v40, %v41
  %v45 = vadd.f32 %v44, %v42
  %v46 = vadd.f32 %v45, %v43
  %v47 = vrot.slane %v46, 4
  %v48 = vadd.f32 %v46, %v47
  %v49 = vrot.slane %v48, 2
  %v50 = vadd.f32 %v48, %v49
  %v51 = vrot.slane %v50, 1
  %v52 = vadd.f32 %v50, %v51
  %v53 = vmul.f32 %v40, %v40
  %v54 = vmul.f32 %v41, %v41
  %v55 = vmul.f32 %v42, %v42
  %v56 = vmul.f32 %v43, %v43
  %v57 = vadd.f32 %v53, %v54
  %v58 = vadd.f32 %v57, %v55
  %v59 = vadd.f32 %v58, %v56
  %v60 = vrot.slane %v59, 4
  %v61 = vadd.f32 %v59, %v60
  %v62 = vrot.slane %v61, 2
  %v63 = vadd.f32 %v61, %v62
  %v64 = vrot.slane %v63, 1
  %v65 = vadd.f32 %v63, %v64
  %vm66 = vcmask 1040384
  %v67 = vsel %vm66, %v52, %v65
  %68 = vst [vmem:[%s3] sm:$0x3] %v67
  // Predicated region
  $region14: #{dpcnn_forward.9} parent=0 // pred_check
    _
  $region15: #{dpcnn_forward.9} parent=0 // pred_check_branch
    %70 = sbr.rel (0) target = $region17
  $region16: #{dpcnn_forward.9} parent=0 // pred_region
    _
  $region17: #{dpcnn_forward.9} parent=0 // pred_fallthru
    _
  // Predicated region
  $region18: #{dpcnn_forward.9} parent=0 // pred_check
    _
  $region19: #{dpcnn_forward.9} parent=0 // pred_check_branch
    %72 = sbr.rel (0) target = $region21
  $region20: #{dpcnn_forward.9} parent=0 // pred_region
    _
  $region21: #{dpcnn_forward.9} parent=0 // pred_fallthru
    _

// kernel: dpcnn_forward.8
$region0: #{dpcnn_forward.8}
  #allocation0 [shape = 'u32[]', space=smem, size = 0x4, offset = 0x4, fixed_abs, tag = 'smem constant byte address 0x4 - core index']
  #allocation1 [shape = 'u32[144,128]{1,0:T(1,128)}', space=vmem, size = 0x12000, scoped, tag = 'internal scratch']
  %s0 = inlined_call_operand.vmem [shape: f32[32,128], index: 0, kind: input, shape index: {}]
  %s1 = inlined_call_operand.vmem [shape: f32[3,128,128], index: 1, kind: input, shape index: {}]
  %s2 = inlined_call_operand.vmem [shape: f32[1,128], index: 2, kind: input, shape index: {}]
  %s3 = inlined_call_operand.vmem [shape: f32[32,128], index: 3, kind: output, shape index: {0}]
  %s4 = inlined_call_operand.vmem [shape: f32[1,2,128], index: 4, kind: output, shape index: {1}]
  %5 = xla_tuple %s3, %s4
  %s6 = sld [smem:[#allocation0]]
  $region30: #{dpcnn_forward.8} parent=0
    _
  %s8 = ssub.s32 1, %s6
  %s9 = scalar_select 0, %s8, %s6
  // Predicated region
  $region2: #{dpcnn_forward.8} parent=0 // pred_check
    _
  $region3: #{dpcnn_forward.8} parent=0 // pred_check_branch
    %11 = sbr.rel (0) target = $region5
  $region4: #{dpcnn_forward.8} parent=0 // pred_region
    _
  $region5: #{dpcnn_forward.8} parent=0 // pred_fallthru
    _
  // Predicated region
  $region6: #{dpcnn_forward.8} parent=0 // pred_check
    _
  $region7: #{dpcnn_forward.8} parent=0 // pred_check_branch
    %13 = sbr.rel (0) target = $region9
  $region8: #{dpcnn_forward.8} parent=0 // pred_region
    _
  $region9: #{dpcnn_forward.8} parent=0 // pred_fallthru
    _
  // Predicated region
  $region10: #{dpcnn_forward.8} parent=0 // pred_check
    _
  $region11: #{dpcnn_forward.8} parent=0 // pred_check_branch
    %15 = sbr.rel (0) target = $region13
  $region12: #{dpcnn_forward.8} parent=0 // pred_region
    _
  $region13: #{dpcnn_forward.8} parent=0 // pred_fallthru
    _
  %v16 = vld [vmem:[%s0] sm:$0xff]
  %v17 = vld [vmem:[%s0 + $0x8] sm:$0xff]
  %v18 = vld [vmem:[%s0 + $0x10] sm:$0xff]
  %v19 = vld [vmem:[%s0 + $0x18] sm:$0xff]
  %v20 = vlaneseq
  %v21 = vshrl.u32 %v20, 7
  %v22 = vadd.s32 %v21, 8
  %v23 = vadd.s32 %v21, 16
  %v24 = vadd.s32 %v21, 24
  %vm25 = vcmp.lt.s32.totalorder %v21, 0
  %v26 = vsub.s32 0, %v21
  %v27 = vsel %vm25, %v26, %v21
  %v28 = vshrl.u32 %v27, 4
  %v29 = vand.u32 %v27, 15
  %v30 = vsub.s32 0, %v29
  %v31 = vsel %vm25, %v30, %v29
  %vm32 = vcmp.lt.s32.totalorder %v22, 0
  %v33 = vsub.s32 0, %v22
  %v34 = vsel %vm32, %v33, %v22
  %v35 = vshrl.u32 %v34, 4
  %v36 = vand.u32 %v34, 15
  %v37 = vsub.s32 0, %v36
  %v38 = vsel %vm32, %v37, %v36
  %vm39 = vcmp.lt.s32.totalorder %v23, 0
  %v40 = vsub.s32 0, %v23
  %v41 = vsel %vm39, %v40, %v23
  %v42 = vshrl.u32 %v41, 4
  %v43 = vand.u32 %v41, 15
  %v44 = vsub.s32 0, %v43
  %v45 = vsel %vm39, %v44, %v43
  %vm46 = vcmp.lt.s32.totalorder %v24, 0
  %v47 = vsub.s32 0, %v24
  %v48 = vsel %vm46, %v47, %v24
  %v49 = vshrl.u32 %v48, 4
  %v50 = vand.u32 %v48, 15
  %v51 = vsub.s32 0, %v50
  %v52 = vsel %vm46, %v51, %v50
  %vm53 = vcmp.ne.s32.totalorder %v31, 0
  %vm54 = vcmp.ne.s32.totalorder %v38, 0
  %vm55 = vcmp.ne.s32.totalorder %v45, 0
  %vm56 = vcmp.ne.s32.totalorder %v52, 0
  %vm57 = vcmp.lt.s32.totalorder %v31, 0
  %vm58 = vcmp.lt.s32.totalorder %v38, 0
  %vm59 = vcmp.lt.s32.totalorder %v45, 0
  %vm60 = vcmp.lt.s32.totalorder %v52, 0
  %vm61 = vmand %vm57, %vm53
  %vm62 = vmand %vm58, %vm54
  %vm63 = vmand %vm59, %vm55
  %vm64 = vmand %vm60, %vm56
  %v65 = vadd.s32 %v31, 16
  %v66 = vadd.s32 %v38, 16
  %v67 = vadd.s32 %v45, 16
  %v68 = vadd.s32 %v52, 16
  %v69 = vsel %vm61, %v65, %v31
  %v70 = vsel %vm62, %v66, %v38
  %v71 = vsel %vm63, %v67, %v45
  %v72 = vsel %vm64, %v68, %v52
  %vm73 = vcmp.ne.s32.totalorder %v69, 0
  %vm74 = vcmp.ne.s32.totalorder %v70, 0
  %vm75 = vcmp.ne.s32.totalorder %v71, 0
  %vm76 = vcmp.ne.s32.totalorder %v72, 0
  %vm77 = vcmp.ne.s32.totalorder %v69, 15
  %vm78 = vcmp.ne.s32.totalorder %v70, 15
  %vm79 = vcmp.ne.s32.totalorder %v71, 15
  %vm80 = vcmp.ne.s32.totalorder %v72, 15
  %vm85 = vcmask 1040384
  %v86 = vrot.slane %v16, 7
  %v87 = vrot.slane %v17, 7
  %v88 = vsel %vm85, %v86, %v87
  %v89 = vrot.slane %v18, 7
  %v90 = vsel %vm85, %v87, %v89
  %v91 = vrot.slane %v19, 7
  %v92 = vsel %vm85, %v89, %v91
  %v97 = vsel %vm85, 0.0, %v86
  %v98 = vsel %vm73, 1, 0
  %v99 = vsel %vm74, 1, 0
  %v100 = vsel %vm75, 1, 0
  %v101 = vsel %vm76, 1, 0
  %vm102 = vcmp.eq.s32.totalorder %v98, 1
  %vm103 = vcmp.eq.s32.totalorder %v99, 1
  %vm104 = vcmp.eq.s32.totalorder %v100, 1
  %vm105 = vcmp.eq.s32.totalorder %v101, 1
  %v106 = vsel %vm102, %v97, 0.0
  %v107 = vsel %vm103, %v88, 0.0
  %v108 = vsel %vm104, %v90, 0.0
  %v109 = vsel %vm105, %v92, 0.0
  %vm110 = vcmask 1046528
  %v111 = vrot.slane %v16, 1
  %v112 = vrot.slane %v17, 1
  %v113 = vsel %vm110, %v111, %v112
  %v114 = vrot.slane %v18, 1
  %v115 = vsel %vm110, %v112, %v114
  %v116 = vrot.slane %v19, 1
  %v117 = vsel %vm110, %v114, %v116
  %v122 = vsel %vm110, %v116, 0.0
  %v123 = vsel %vm77, 1, 0
  %v124 = vsel %vm78, 1, 0
  %v125 = vsel %vm79, 1, 0
  %v126 = vsel %vm80, 1, 0
  %vm127 = vcmp.eq.s32.totalorder %v123, 1
  %vm128 = vcmp.eq.s32.totalorder %v124, 1
  %vm129 = vcmp.eq.s32.totalorder %v125, 1
  %vm130 = vcmp.eq.s32.totalorder %v126, 1
  %v131 = vsel %vm127, %v113, 0.0
  %v132 = vsel %vm128, %v115, 0.0
  %v133 = vsel %vm129, %v117, 0.0
  %v134 = vsel %vm130, %v122, 0.0
  %s135 = scalar_lea.vmem %s1, 128
  %v136 = vld [vmem:[%s135] sm:$0xff]
  %v137 = vld [vmem:[%s135 + $0x8] sm:$0xff]
  %v138 = vld [vmem:[%s135 + $0x10] sm:$0xff]
  %v139 = vld [vmem:[%s135 + $0x18] sm:$0xff]
  %v140 = vld [vmem:[%s135 + $0x20] sm:$0xff]
  %v141 = vld [vmem:[%s135 + $0x28] sm:$0xff]
  %v142 = vld [vmem:[%s135 + $0x30] sm:$0xff]
  %v143 = vld [vmem:[%s135 + $0x38] sm:$0xff]
  %v144 = vld [vmem:[%s135 + $0x40] sm:$0xff]
  %v145 = vld [vmem:[%s135 + $0x48] sm:$0xff]
  %v146 = vld [vmem:[%s135 + $0x50] sm:$0xff]
  %v147 = vld [vmem:[%s135 + $0x58] sm:$0xff]
  %v148 = vld [vmem:[%s135 + $0x60] sm:$0xff]
  %v149 = vld [vmem:[%s135 + $0x68] sm:$0xff]
  %v150 = vld [vmem:[%s135 + $0x70] sm:$0xff]
  %v151 = vld [vmem:[%s135 + $0x78] sm:$0xff]
  %v152 = vld [vmem:[%s1] sm:$0xff]
  %v153 = vld [vmem:[%s1 + $0x8] sm:$0xff]
  %v154 = vld [vmem:[%s1 + $0x10] sm:$0xff]
  %v155 = vld [vmem:[%s1 + $0x18] sm:$0xff]
  %v156 = vld [vmem:[%s1 + $0x20] sm:$0xff]
  %v157 = vld [vmem:[%s1 + $0x28] sm:$0xff]
  %v158 = vld [vmem:[%s1 + $0x30] sm:$0xff]
  %v159 = vld [vmem:[%s1 + $0x38] sm:$0xff]
  %v160 = vld [vmem:[%s1 + $0x40] sm:$0xff]
  %v161 = vld [vmem:[%s1 + $0x48] sm:$0xff]
  %v162 = vld [vmem:[%s1 + $0x50] sm:$0xff]
  %v163 = vld [vmem:[%s1 + $0x58] sm:$0xff]
  %v164 = vld [vmem:[%s1 + $0x60] sm:$0xff]
  %v165 = vld [vmem:[%s1 + $0x68] sm:$0xff]
  %v166 = vld [vmem:[%s1 + $0x70] sm:$0xff]
  %v167 = vld [vmem:[%s1 + $0x78] sm:$0xff]
  %168 = vmatprep.subr.mxu0 0.0
  %169 = vmatpush1.msra.mxu0 %v152
  %170 = vmatprep.subr.mxu0 0.0
  %171 = vmatpush1.msra.mxu0 %v153
  %172 = vmatprep.subr.mxu0 0.0
  %173 = vmatpush1.msra.mxu0 %v154
  %174 = vmatprep.subr.mxu0 0.0
  %175 = vmatpush1.msra.mxu0 %v155
  %176 = vmatprep.subr.mxu0 0.0
  %177 = vmatpush1.msra.mxu0 %v156
  %178 = vmatprep.subr.mxu0 0.0
  %179 = vmatpush1.msra.mxu0 %v157
  %180 = vmatprep.subr.mxu0 0.0
  %181 = vmatpush1.msra.mxu0 %v158
  %182 = vmatprep.subr.mxu0 0.0
  %183 = vmatpush1.msra.mxu0 %v159
  %184 = vmatprep.subr.mxu0 0.0
  %185 = vmatpush1.msra.mxu0 %v160
  %186 = vmatprep.subr.mxu0 0.0
  %187 = vmatpush1.msra.mxu0 %v161
  %188 = vmatprep.subr.mxu0 0.0
  %189 = vmatpush1.msra.mxu0 %v162
  %190 = vmatprep.subr.mxu0 0.0
  %191 = vmatpush1.msra.mxu0 %v163
  %192 = vmatprep.subr.mxu0 0.0
  %193 = vmatpush1.msra.mxu0 %v164
  %194 = vmatprep.subr.mxu0 0.0
  %195 = vmatpush1.msra.mxu0 %v165
  %196 = vmatprep.subr.mxu0 0.0
  %197 = vmatpush1.msra.mxu0 %v166
  %198 = vmatprep.subr.mxu0 0.0
  %199 = vmatpush1.msra.mxu0 %v167
  %200 = vmatprep.subr.mxu0 0.0
  %201 = vmatpush1.msra.mxu0 0.0
  %202 = vmatprep.subr.mxu0 0.0
  %203 = vmatpush1.msra.mxu0 0.0
  %204 = vmatprep.subr.mxu0 0.0
  %205 = vmatpush1.msra.mxu0 0.0
  %206 = vmatprep.subr.mxu0 0.0
  %207 = vmatpush1.msra.mxu0 0.0
  %208 = vmatprep.subr.mxu0 0.0
  %209 = vmatpush1.msra.mxu0 0.0
  %210 = vmatprep.subr.mxu0 0.0
  %211 = vmatpush1.msra.mxu0 0.0
  %212 = vmatprep.subr.mxu0 0.0
  %213 = vmatpush1.msra.mxu0 0.0
  %214 = vmatprep.subr.mxu0 0.0
  %215 = vmatpush1.msra.mxu0 0.0
  %216 = vmatprep.subr.mxu0 0.0
  %217 = vmatpush1.msra.mxu0 0.0
  %218 = vmatprep.subr.mxu0 0.0
  %219 = vmatpush1.msra.mxu0 0.0
  %220 = vmatprep.subr.mxu0 0.0
  %221 = vmatpush1.msra.mxu0 0.0
  %222 = vmatprep.subr.mxu0 0.0
  %223 = vmatpush1.msra.mxu0 0.0
  %224 = vmatprep.subr.mxu0 0.0
  %225 = vmatpush1.msra.mxu0 0.0
  %226 = vmatprep.subr.mxu0 0.0
  %227 = vmatpush1.msra.mxu0 0.0
  %228 = vmatprep.subr.mxu0 0.0
  %229 = vmatpush1.msra.mxu0 0.0
  %230 = vmatprep.subr.mxu0 0.0
  %231 = vmatpush1.msra.mxu0 0.0
  %232 = vmatprep.mubr.f32.mxu0 0.0
  %233 = vmatmul.mubr.f32.gmra.mrb[0].mxu0 %v106
  %v234 = vpop.f32.mrb[0].mxu0
  %v235 = vadd.f32 0.0, %v234
  %v236 = vpop.f32.mrb[0].mxu0
  %237 = vmatprep.mubr.f32.mxu0 0.0
  %238 = vmatmul.mubr.f32.gmra.mrb[0].mxu0 %v107
  %v239 = vpop.f32.mrb[0].mxu0
  %v240 = vadd.f32 0.0, %v239
  %v241 = vpop.f32.mrb[0].mxu0
  %242 = vmatprep.mubr.f32.mxu0 0.0
  %243 = vmatmul.mubr.f32.gmra.mrb[0].mxu0 %v108
  %v244 = vpop.f32.mrb[0].mxu0
  %v245 = vadd.f32 0.0, %v244
  %v246 = vpop.f32.mrb[0].mxu0
  %247 = vmatprep.mubr.f32.mxu0 0.0
  %248 = vmatmul.mubr.f32.gmra.mrb[0].mxu0 %v109
  %v249 = vpop.f32.mrb[0].mxu0
  %v250 = vadd.f32 0.0, %v249
  %v251 = vpop.f32.mrb[0].mxu0
  %252 = vdwg.mxu0
  %253 = vmatprep.subr.mxu0 0.0
  %254 = vmatpush1.msra.mxu0 %v136
  %255 = vmatprep.subr.mxu0 0.0
  %256 = vmatpush1.msra.mxu0 %v137
  %257 = vmatprep.subr.mxu0 0.0
  %258 = vmatpush1.msra.mxu0 %v138
  %259 = vmatprep.subr.mxu0 0.0
  %260 = vmatpush1.msra.mxu0 %v139
  %261 = vmatprep.subr.mxu0 0.0
  %262 = vmatpush1.msra.mxu0 %v140
  %263 = vmatprep.subr.mxu0 0.0
  %264 = vmatpush1.msra.mxu0 %v141
  %265 = vmatprep.subr.mxu0 0.0
  %266 = vmatpush1.msra.mxu0 %v142
  %267 = vmatprep.subr.mxu0 0.0
  %268 = vmatpush1.msra.mxu0 %v143
  %269 = vmatprep.subr.mxu0 0.0
  %270 = vmatpush1.msra.mxu0 %v144
  %271 = vmatprep.subr.mxu0 0.0
  %272 = vmatpush1.msra.mxu0 %v145
  %273 = vmatprep.subr.mxu0 0.0
  %274 = vmatpush1.msra.mxu0 %v146
  %275 = vmatprep.subr.mxu0 0.0
  %276 = vmatpush1.msra.mxu0 %v147
  %277 = vmatprep.subr.mxu0 0.0
  %278 = vmatpush1.msra.mxu0 %v148
  %279 = vmatprep.subr.mxu0 0.0
  %280 = vmatpush1.msra.mxu0 %v149
  %281 = vmatprep.subr.mxu0 0.0
  %282 = vmatpush1.msra.mxu0 %v150
  %283 = vmatprep.subr.mxu0 0.0
  %284 = vmatpush1.msra.mxu0 %v151
  %285 = vmatprep.subr.mxu0 0.0
  %286 = vmatpush1.msra.mxu0 0.0
  %287 = vmatprep.subr.mxu0 0.0
  %288 = vmatpush1.msra.mxu0 0.0
  %289 = vmatprep.subr.mxu0 0.0
  %290 = vmatpush1.msra.mxu0 0.0
  %291 = vmatprep.subr.mxu0 0.0
  %292 = vmatpush1.msra.mxu0 0.0
  %293 = vmatprep.subr.mxu0 0.0
  %294 = vmatpush1.msra.mxu0 0.0
  %295 = vmatprep.subr.mxu0 0.0
  %296 = vmatpush1.msra.mxu0 0.0
  %297 = vmatprep.subr.mxu0 0.0
  %298 = vmatpush1.msra.mxu0 0.0
  %299 = vmatprep.subr.mxu0 0.0
  %300 = vmatpush1.msra.mxu0 0.0
  %301 = vmatprep.subr.mxu0 0.0
  %302 = vmatpush1.msra.mxu0 0.0
  %303 = vmatprep.subr.mxu0 0.0
  %304 = vmatpush1.msra.mxu0 0.0
  %305 = vmatprep.subr.mxu0 0.0
  %306 = vmatpush1.msra.mxu0 0.0
  %307 = vmatprep.subr.mxu0 0.0
  %308 = vmatpush1.msra.mxu0 0.0
  %309 = vmatprep.subr.mxu0 0.0
  %310 = vmatpush1.msra.mxu0 0.0
  %311 = vmatprep.subr.mxu0 0.0
  %312 = vmatpush1.msra.mxu0 0.0
  %313 = vmatprep.subr.mxu0 0.0
  %314 = vmatpush1.msra.mxu0 0.0
  %315 = vmatprep.subr.mxu0 0.0
  %316 = vmatpush1.msra.mxu0 0.0
  %317 = vmatprep.mubr.f32.mxu0 0.0
  %318 = vmatmul.mubr.f32.gmra.mrb[0].mxu0 %v16
  %v319 = vpop.f32.mrb[0].mxu0
  %v320 = vadd.f32 %v235, %v319
  %v321 = vpop.f32.mrb[0].mxu0
  %322 = vmatprep.mubr.f32.mxu0 0.0
  %323 = vmatmul.mubr.f32.gmra.mrb[0].mxu0 %v17
  %v324 = vpop.f32.mrb[0].mxu0
  %v325 = vadd.f32 %v240, %v324
  %v326 = vpop.f32.mrb[0].mxu0
  %327 = vmatprep.mubr.f32.mxu0 0.0
  %328 = vmatmul.mubr.f32.gmra.mrb[0].mxu0 %v18
  %v329 = vpop.f32.mrb[0].mxu0
  %v330 = vadd.f32 %v245, %v329
  %v331 = vpop.f32.mrb[0].mxu0
  %332 = vmatprep.mubr.f32.mxu0 0.0
  %333 = vmatmul.mubr.f32.gmra.mrb[0].mxu0 %v19
  %v334 = vpop.f32.mrb[0].mxu0
  %v335 = vadd.f32 %v250, %v334
  %v336 = vpop.f32.mrb[0].mxu0
  %337 = vdwg.mxu0
  %s338 = scalar_lea.vmem %s1, 256
  %v339 = vld [vmem:[%s338] sm:$0xff]
  %v340 = vld [vmem:[%s338 + $0x8] sm:$0xff]
  %v341 = vld [vmem:[%s338 + $0x10] sm:$0xff]
  %v342 = vld [vmem:[%s338 + $0x18] sm:$0xff]
  %v343 = vld [vmem:[%s338 + $0x20] sm:$0xff]
  %v344 = vld [vmem:[%s338 + $0x28] sm:$0xff]
  %v345 = vld [vmem:[%s338 + $0x30] sm:$0xff]
  %v346 = vld [vmem:[%s338 + $0x38] sm:$0xff]
  %v347 = vld [vmem:[%s338 + $0x40] sm:$0xff]
  %v348 = vld [vmem:[%s338 + $0x48] sm:$0xff]
  %v349 = vld [vmem:[%s338 + $0x50] sm:$0xff]
  %v350 = vld [vmem:[%s338 + $0x58] sm:$0xff]
  %v351 = vld [vmem:[%s338 + $0x60] sm:$0xff]
  %v352 = vld [vmem:[%s338 + $0x68] sm:$0xff]
  %v353 = vld [vmem:[%s338 + $0x70] sm:$0xff]
  %v354 = vld [vmem:[%s338 + $0x78] sm:$0xff]
  %355 = vmatprep.subr.mxu0 0.0
  %356 = vmatpush1.msra.mxu0 %v339
  %357 = vmatprep.subr.mxu0 0.0
  %358 = vmatpush1.msra.mxu0 %v340
  %359 = vmatprep.subr.mxu0 0.0
  %360 = vmatpush1.msra.mxu0 %v341
  %361 = vmatprep.subr.mxu0 0.0
  %362 = vmatpush1.msra.mxu0 %v342
  %363 = vmatprep.subr.mxu0 0.0
  %364 = vmatpush1.msra.mxu0 %v343
  %365 = vmatprep.subr.mxu0 0.0
  %366 = vmatpush1.msra.mxu0 %v344
  %367 = vmatprep.subr.mxu0 0.0
  %368 = vmatpush1.msra.mxu0 %v345
  %369 = vmatprep.subr.mxu0 0.0
  %370 = vmatpush1.msra.mxu0 %v346
  %371 = vmatprep.subr.mxu0 0.0
  %372 = vmatpush1.msra.mxu0 %v347
  %373 = vmatprep.subr.mxu0 0.0
  %374 = vmatpush1.msra.mxu0 %v348
  %375 = vmatprep.subr.mxu0 0.0
  %376 = vmatpush1.msra.mxu0 %v349
  %377 = vmatprep.subr.mxu0 0.0
  %378 = vmatpush1.msra.mxu0 %v350
  %379 = vmatprep.subr.mxu0 0.0
  %380 = vmatpush1.msra.mxu0 %v351
  %381 = vmatprep.subr.mxu0 0.0
  %382 = vmatpush1.msra.mxu0 %v352
  %383 = vmatprep.subr.mxu0 0.0
  %384 = vmatpush1.msra.mxu0 %v353
  %385 = vmatprep.subr.mxu0 0.0
  %386 = vmatpush1.msra.mxu0 %v354
  %387 = vmatprep.subr.mxu0 0.0
  %388 = vmatpush1.msra.mxu0 0.0
  %389 = vmatprep.subr.mxu0 0.0
  %390 = vmatpush1.msra.mxu0 0.0
  %391 = vmatprep.subr.mxu0 0.0
  %392 = vmatpush1.msra.mxu0 0.0
  %393 = vmatprep.subr.mxu0 0.0
  %394 = vmatpush1.msra.mxu0 0.0
  %395 = vmatprep.subr.mxu0 0.0
  %396 = vmatpush1.msra.mxu0 0.0
  %397 = vmatprep.subr.mxu0 0.0
  %398 = vmatpush1.msra.mxu0 0.0
  %399 = vmatprep.subr.mxu0 0.0
  %400 = vmatpush1.msra.mxu0 0.0
  %401 = vmatprep.subr.mxu0 0.0
  %402 = vmatpush1.msra.mxu0 0.0
  %403 = vmatprep.subr.mxu0 0.0
  %404 = vmatpush1.msra.mxu0 0.0
  %405 = vmatprep.subr.mxu0 0.0
  %406 = vmatpush1.msra.mxu0 0.0
  %407 = vmatprep.subr.mxu0 0.0
  %408 = vmatpush1.msra.mxu0 0.0
  %409 = vmatprep.subr.mxu0 0.0
  %410 = vmatpush1.msra.mxu0 0.0
  %411 = vmatprep.subr.mxu0 0.0
  %412 = vmatpush1.msra.mxu0 0.0
  %413 = vmatprep.subr.mxu0 0.0
  %414 = vmatpush1.msra.mxu0 0.0
  %415 = vmatprep.subr.mxu0 0.0
  %416 = vmatpush1.msra.mxu0 0.0
  %417 = vmatprep.subr.mxu0 0.0
  %418 = vmatpush1.msra.mxu0 0.0
  %419 = vmatprep.mubr.f32.mxu0 0.0
  %420 = vmatmul.mubr.f32.gmra.mrb[0].mxu0 %v131
  %v421 = vpop.f32.mrb[0].mxu0
  %v422 = vadd.f32 0.0, %v421
  %v423 = vpop.f32.mrb[0].mxu0
  %424 = vmatprep.mubr.f32.mxu0 0.0
  %425 = vmatmul.mubr.f32.gmra.mrb[0].mxu0 %v132
  %v426 = vpop.f32.mrb[0].mxu0
  %v427 = vadd.f32 0.0, %v426
  %v428 = vpop.f32.mrb[0].mxu0
  %429 = vmatprep.mubr.f32.mxu0 0.0
  %430 = vmatmul.mubr.f32.gmra.mrb[0].mxu0 %v133
  %v431 = vpop.f32.mrb[0].mxu0
  %v432 = vadd.f32 0.0, %v431
  %v433 = vpop.f32.mrb[0].mxu0
  %434 = vmatprep.mubr.f32.mxu0 0.0
  %435 = vmatmul.mubr.f32.gmra.mrb[0].mxu0 %v134
  %v436 = vpop.f32.mrb[0].mxu0
  %v437 = vadd.f32 0.0, %v436
  %v438 = vpop.f32.mrb[0].mxu0
  %439 = vdwg.mxu0
  %v440 = vadd.f32 %v320, %v422
  %v441 = vadd.f32 %v325, %v427
  %v442 = vadd.f32 %v330, %v432
  %v443 = vadd.f32 %v335, %v437
  %v444 = vld [vmem:[%s2] sm:$0x1]
  %v446 = vlaneseq
  %v447 = vshrl.u32 %v446, 7
  %v448 = vsub.s32 0, %v447
  %v449 = vrot.slane %v444, %v448
  %v451 = vadd.f32 %v440, %v449
  %v452 = vadd.f32 %v441, %v449
  %v453 = vadd.f32 %v442, %v449
  %v454 = vadd.f32 %v443, %v449
  %455 = vst [vmem:[%s3] sm:$0xff] %v451
  %456 = vst [vmem:[%s3 + $0x8] sm:$0xff] %v452
  %457 = vst [vmem:[%s3 + $0x10] sm:$0xff] %v453
  %458 = vst [vmem:[%s3 + $0x18] sm:$0xff] %v454
  %v459 = vadd.f32 %v451, %v452
  %v460 = vadd.f32 %v459, %v453
  %v461 = vadd.f32 %v460, %v454
  %v462 = vrot.slane %v461, 4
  %v463 = vadd.f32 %v461, %v462
  %v464 = vrot.slane %v463, 2
  %v465 = vadd.f32 %v463, %v464
  %v466 = vrot.slane %v465, 1
  %v467 = vadd.f32 %v465, %v466
  %v468 = vmul.f32 %v451, %v451
  %v469 = vmul.f32 %v452, %v452
  %v470 = vmul.f32 %v453, %v453
  %v471 = vmul.f32 %v454, %v454
  %v472 = vadd.f32 %v468, %v469
  %v473 = vadd.f32 %v472, %v470
  %v474 = vadd.f32 %v473, %v471
  %v475 = vrot.slane %v474, 4
  %v476 = vadd.f32 %v474, %v475
  %v477 = vrot.slane %v476, 2
  %v478 = vadd.f32 %v476, %v477
  %v479 = vrot.slane %v478, 1
  %v480 = vadd.f32 %v478, %v479
  %v481 = vsel %vm85, %v467, %v480
  %482 = vst [vmem:[%s4] sm:$0x3] %v481
  // Predicated region
  $region14: #{dpcnn_forward.8} parent=0 // pred_check
    _
  $region15: #{dpcnn_forward.8} parent=0 // pred_check_branch
    %484 = sbr.rel (0) target = $region17
  $region16: #{dpcnn_forward.8} parent=0 // pred_region
    _
  $region17: #{dpcnn_forward.8} parent=0 // pred_fallthru
    _
  // Predicated region
  $region18: #{dpcnn_forward.8} parent=0 // pred_check
    _
  $region19: #{dpcnn_forward.8} parent=0 // pred_check_branch
    %486 = sbr.rel (0) target = $region21
  $region20: #{dpcnn_forward.8} parent=0 // pred_region
    _
  $region21: #{dpcnn_forward.8} parent=0 // pred_fallthru
    _
  // Predicated region
  $region22: #{dpcnn_forward.8} parent=0 // pred_check
    _
  $region23: #{dpcnn_forward.8} parent=0 // pred_check_branch
    %488 = sbr.rel (0) target = $region25
  $region24: #{dpcnn_forward.8} parent=0 // pred_region
    _
  $region25: #{dpcnn_forward.8} parent=0 // pred_fallthru
    _
  // Predicated region
  $region26: #{dpcnn_forward.8} parent=0 // pred_check
    _
  $region27: #{dpcnn_forward.8} parent=0 // pred_check_branch
    %490 = sbr.rel (0) target = $region29
  $region28: #{dpcnn_forward.8} parent=0 // pred_region
    _
  $region29: #{dpcnn_forward.8} parent=0 // pred_fallthru
    _

// kernel: dpcnn_forward.11
$region0: #{dpcnn_forward.11}
  #allocation0 [shape = 'u32[]', space=smem, size = 0x4, offset = 0x4, fixed_abs, tag = 'smem constant byte address 0x4 - core index']
  #allocation1 [shape = 'u32[144,128]{1,0:T(1,128)}', space=vmem, size = 0x12000, scoped, tag = 'internal scratch']
  %s0 = inlined_call_operand.vmem [shape: f32[32,128], index: 0, kind: input, shape index: {}]
  %s1 = inlined_call_operand.vmem [shape: f32[1,128], index: 1, kind: input, shape index: {}]
  %s2 = inlined_call_operand.vmem [shape: f32[1,128], index: 2, kind: input, shape index: {}]
  %s3 = inlined_call_operand.vmem [shape: f32[3,128,128], index: 3, kind: input, shape index: {}]
  %s4 = inlined_call_operand.vmem [shape: f32[1,128], index: 4, kind: input, shape index: {}]
  %s5 = inlined_call_operand.vmem [shape: f32[32,128], index: 5, kind: output, shape index: {}]
  %s6 = sld [smem:[#allocation0]]
  $region30: #{dpcnn_forward.11} parent=0
    _
  %s8 = ssub.s32 1, %s6
  %s9 = scalar_select 0, %s8, %s6
  // Predicated region
  $region2: #{dpcnn_forward.11} parent=0 // pred_check
    _
  $region3: #{dpcnn_forward.11} parent=0 // pred_check_branch
    %11 = sbr.rel (0) target = $region5
  $region4: #{dpcnn_forward.11} parent=0 // pred_region
    _
  $region5: #{dpcnn_forward.11} parent=0 // pred_fallthru
    _
  // Predicated region
  $region6: #{dpcnn_forward.11} parent=0 // pred_check
    _
  $region7: #{dpcnn_forward.11} parent=0 // pred_check_branch
    %13 = sbr.rel (0) target = $region9
  $region8: #{dpcnn_forward.11} parent=0 // pred_region
    _
  $region9: #{dpcnn_forward.11} parent=0 // pred_fallthru
    _
  // Predicated region
  $region10: #{dpcnn_forward.11} parent=0 // pred_check
    _
  $region11: #{dpcnn_forward.11} parent=0 // pred_check_branch
    %15 = sbr.rel (0) target = $region13
  $region12: #{dpcnn_forward.11} parent=0 // pred_region
    _
  $region13: #{dpcnn_forward.11} parent=0 // pred_fallthru
    _
  // Predicated region
  $region14: #{dpcnn_forward.11} parent=0 // pred_check
    _
  $region15: #{dpcnn_forward.11} parent=0 // pred_check_branch
    %17 = sbr.rel (0) target = $region17
  $region16: #{dpcnn_forward.11} parent=0 // pred_region
    _
  $region17: #{dpcnn_forward.11} parent=0 // pred_fallthru
    _
  // Predicated region
  $region18: #{dpcnn_forward.11} parent=0 // pred_check
    _
  $region19: #{dpcnn_forward.11} parent=0 // pred_check_branch
    %19 = sbr.rel (0) target = $region21
  $region20: #{dpcnn_forward.11} parent=0 // pred_region
    _
  $region21: #{dpcnn_forward.11} parent=0 // pred_fallthru
    _
  %v20 = vld [vmem:[%s0] sm:$0xff]
  %v21 = vld [vmem:[%s0 + $0x8] sm:$0xff]
  %v22 = vld [vmem:[%s0 + $0x10] sm:$0xff]
  %v23 = vld [vmem:[%s0 + $0x18] sm:$0xff]
  %v24 = vld [vmem:[%s1] sm:$0x1]
  %v26 = vlaneseq
  %v27 = vshrl.u32 %v26, 7
  %v28 = vsub.s32 0, %v27
  %v29 = vrot.slane %v24, %v28
  %v31 = vmul.f32 %v20, %v29
  %v32 = vmul.f32 %v21, %v29
  %v33 = vmul.f32 %v22, %v29
  %v34 = vmul.f32 %v23, %v29
  %v35 = vld [vmem:[%s2] sm:$0x1]
  %v37 = vlaneseq
  %v38 = vshrl.u32 %v37, 7
  %v39 = vsub.s32 0, %v38
  %v40 = vrot.slane %v35, %v39
  %v42 = vadd.f32 %v31, %v40
  %v43 = vadd.f32 %v32, %v40
  %v44 = vadd.f32 %v33, %v40
  %v45 = vadd.f32 %v34, %v40
  %v46 = vmax.f32 %v42, 0.0
  %v47 = vmax.f32 %v43, 0.0
  %v48 = vmax.f32 %v44, 0.0
  %v49 = vmax.f32 %v45, 0.0
  %v50 = vlaneseq
  %v51 = vshrl.u32 %v50, 7
  %v52 = vadd.s32 %v51, 8
  %v53 = vadd.s32 %v51, 16
  %v54 = vadd.s32 %v51, 24
  %vm55 = vcmp.lt.s32.totalorder %v51, 0
  %v56 = vsub.s32 0, %v51
  %v57 = vsel %vm55, %v56, %v51
  %v58 = vshrl.u32 %v57, 4
  %v59 = vand.u32 %v57, 15
  %v60 = vsub.s32 0, %v59
  %v61 = vsel %vm55, %v60, %v59
  %vm62 = vcmp.lt.s32.totalorder %v52, 0
  %v63 = vsub.s32 0, %v52
  %v64 = vsel %vm62, %v63, %v52
  %v65 = vshrl.u32 %v64, 4
  %v66 = vand.u32 %v64, 15
  %v67 = vsub.s32 0, %v66
  %v68 = vsel %vm62, %v67, %v66
  %vm69 = vcmp.lt.s32.totalorder %v53, 0
  %v70 = vsub.s32 0, %v53
  %v71 = vsel %vm69, %v70, %v53
  %v72 = vshrl.u32 %v71, 4
  %v73 = vand.u32 %v71, 15
  %v74 = vsub.s32 0, %v73
  %v75 = vsel %vm69, %v74, %v73
  %vm76 = vcmp.lt.s32.totalorder %v54, 0
  %v77 = vsub.s32 0, %v54
  %v78 = vsel %vm76, %v77, %v54
  %v79 = vshrl.u32 %v78, 4
  %v80 = vand.u32 %v78, 15
  %v81 = vsub.s32 0, %v80
  %v82 = vsel %vm76, %v81, %v80
  %vm83 = vcmp.ne.s32.totalorder %v61, 0
  %vm84 = vcmp.ne.s32.totalorder %v68, 0
  %vm85 = vcmp.ne.s32.totalorder %v75, 0
  %vm86 = vcmp.ne.s32.totalorder %v82, 0
  %vm87 = vcmp.lt.s32.totalorder %v61, 0
  %vm88 = vcmp.lt.s32.totalorder %v68, 0
  %vm89 = vcmp.lt.s32.totalorder %v75, 0
  %vm90 = vcmp.lt.s32.totalorder %v82, 0
  %vm91 = vmand %vm87, %vm83
  %vm92 = vmand %vm88, %vm84
  %vm93 = vmand %vm89, %vm85
  %vm94 = vmand %vm90, %vm86
  %v95 = vadd.s32 %v61, 16
  %v96 = vadd.s32 %v68, 16
  %v97 = vadd.s32 %v75, 16
  %v98 = vadd.s32 %v82, 16
  %v99 = vsel %vm91, %v95, %v61
  %v100 = vsel %vm92, %v96, %v68
  %v101 = vsel %vm93, %v97, %v75
  %v102 = vsel %vm94, %v98, %v82
  %vm103 = vcmp.ne.s32.totalorder %v99, 0
  %vm104 = vcmp.ne.s32.totalorder %v100, 0
  %vm105 = vcmp.ne.s32.totalorder %v101, 0
  %vm106 = vcmp.ne.s32.totalorder %v102, 0
  %vm107 = vcmp.ne.s32.totalorder %v99, 15
  %vm108 = vcmp.ne.s32.totalorder %v100, 15
  %vm109 = vcmp.ne.s32.totalorder %v101, 15
  %vm110 = vcmp.ne.s32.totalorder %v102, 15
  %vm115 = vcmask 1040384
  %v116 = vrot.slane %v46, 7
  %v117 = vrot.slane %v47, 7
  %v118 = vsel %vm115, %v116, %v117
  %v119 = vrot.slane %v48, 7
  %v120 = vsel %vm115, %v117, %v119
  %v121 = vrot.slane %v49, 7
  %v122 = vsel %vm115, %v119, %v121
  %v127 = vsel %vm115, 0.0, %v116
  %v128 = vsel %vm103, 1, 0
  %v129 = vsel %vm104, 1, 0
  %v130 = vsel %vm105, 1, 0
  %v131 = vsel %vm106, 1, 0
  %vm132 = vcmp.eq.s32.totalorder %v128, 1
  %vm133 = vcmp.eq.s32.totalorder %v129, 1
  %vm134 = vcmp.eq.s32.totalorder %v130, 1
  %vm135 = vcmp.eq.s32.totalorder %v131, 1
  %v136 = vsel %vm132, %v127, 0.0
  %v137 = vsel %vm133, %v118, 0.0
  %v138 = vsel %vm134, %v120, 0.0
  %v139 = vsel %vm135, %v122, 0.0
  %vm140 = vcmask 1046528
  %v141 = vrot.slane %v46, 1
  %v142 = vrot.slane %v47, 1
  %v143 = vsel %vm140, %v141, %v142
  %v144 = vrot.slane %v48, 1
  %v145 = vsel %vm140, %v142, %v144
  %v146 = vrot.slane %v49, 1
  %v147 = vsel %vm140, %v144, %v146
  %v152 = vsel %vm140, %v146, 0.0
  %v153 = vsel %vm107, 1, 0
  %v154 = vsel %vm108, 1, 0
  %v155 = vsel %vm109, 1, 0
  %v156 = vsel %vm110, 1, 0
  %vm157 = vcmp.eq.s32.totalorder %v153, 1
  %vm158 = vcmp.eq.s32.totalorder %v154, 1
  %vm159 = vcmp.eq.s32.totalorder %v155, 1
  %vm160 = vcmp.eq.s32.totalorder %v156, 1
  %v161 = vsel %vm157, %v143, 0.0
  %v162 = vsel %vm158, %v145, 0.0
  %v163 = vsel %vm159, %v147, 0.0
  %v164 = vsel %vm160, %v152, 0.0
  %s165 = scalar_lea.vmem %s3, 128
  %v166 = vld [vmem:[%s165] sm:$0xff]
  %v167 = vld [vmem:[%s165 + $0x8] sm:$0xff]
  %v168 = vld [vmem:[%s165 + $0x10] sm:$0xff]
  %v169 = vld [vmem:[%s165 + $0x18] sm:$0xff]
  %v170 = vld [vmem:[%s165 + $0x20] sm:$0xff]
  %v171 = vld [vmem:[%s165 + $0x28] sm:$0xff]
  %v172 = vld [vmem:[%s165 + $0x30] sm:$0xff]
  %v173 = vld [vmem:[%s165 + $0x38] sm:$0xff]
  %v174 = vld [vmem:[%s165 + $0x40] sm:$0xff]
  %v175 = vld [vmem:[%s165 + $0x48] sm:$0xff]
  %v176 = vld [vmem:[%s165 + $0x50] sm:$0xff]
  %v177 = vld [vmem:[%s165 + $0x58] sm:$0xff]
  %v178 = vld [vmem:[%s165 + $0x60] sm:$0xff]
  %v179 = vld [vmem:[%s165 + $0x68] sm:$0xff]
  %v180 = vld [vmem:[%s165 + $0x70] sm:$0xff]
  %v181 = vld [vmem:[%s165 + $0x78] sm:$0xff]
  %v182 = vld [vmem:[%s3] sm:$0xff]
  %v183 = vld [vmem:[%s3 + $0x8] sm:$0xff]
  %v184 = vld [vmem:[%s3 + $0x10] sm:$0xff]
  %v185 = vld [vmem:[%s3 + $0x18] sm:$0xff]
  %v186 = vld [vmem:[%s3 + $0x20] sm:$0xff]
  %v187 = vld [vmem:[%s3 + $0x28] sm:$0xff]
  %v188 = vld [vmem:[%s3 + $0x30] sm:$0xff]
  %v189 = vld [vmem:[%s3 + $0x38] sm:$0xff]
  %v190 = vld [vmem:[%s3 + $0x40] sm:$0xff]
  %v191 = vld [vmem:[%s3 + $0x48] sm:$0xff]
  %v192 = vld [vmem:[%s3 + $0x50] sm:$0xff]
  %v193 = vld [vmem:[%s3 + $0x58] sm:$0xff]
  %v194 = vld [vmem:[%s3 + $0x60] sm:$0xff]
  %v195 = vld [vmem:[%s3 + $0x68] sm:$0xff]
  %v196 = vld [vmem:[%s3 + $0x70] sm:$0xff]
  %v197 = vld [vmem:[%s3 + $0x78] sm:$0xff]
  %198 = vmatprep.subr.mxu0 0.0
  %199 = vmatpush1.msra.mxu0 %v182
  %200 = vmatprep.subr.mxu0 0.0
  %201 = vmatpush1.msra.mxu0 %v183
  %202 = vmatprep.subr.mxu0 0.0
  %203 = vmatpush1.msra.mxu0 %v184
  %204 = vmatprep.subr.mxu0 0.0
  %205 = vmatpush1.msra.mxu0 %v185
  %206 = vmatprep.subr.mxu0 0.0
  %207 = vmatpush1.msra.mxu0 %v186
  %208 = vmatprep.subr.mxu0 0.0
  %209 = vmatpush1.msra.mxu0 %v187
  %210 = vmatprep.subr.mxu0 0.0
  %211 = vmatpush1.msra.mxu0 %v188
  %212 = vmatprep.subr.mxu0 0.0
  %213 = vmatpush1.msra.mxu0 %v189
  %214 = vmatprep.subr.mxu0 0.0
  %215 = vmatpush1.msra.mxu0 %v190
  %216 = vmatprep.subr.mxu0 0.0
  %217 = vmatpush1.msra.mxu0 %v191
  %218 = vmatprep.subr.mxu0 0.0
  %219 = vmatpush1.msra.mxu0 %v192
  %220 = vmatprep.subr.mxu0 0.0
  %221 = vmatpush1.msra.mxu0 %v193
  %222 = vmatprep.subr.mxu0 0.0
  %223 = vmatpush1.msra.mxu0 %v194
  %224 = vmatprep.subr.mxu0 0.0
  %225 = vmatpush1.msra.mxu0 %v195
  %226 = vmatprep.subr.mxu0 0.0
  %227 = vmatpush1.msra.mxu0 %v196
  %228 = vmatprep.subr.mxu0 0.0
  %229 = vmatpush1.msra.mxu0 %v197
  %230 = vmatprep.subr.mxu0 0.0
  %231 = vmatpush1.msra.mxu0 0.0
  %232 = vmatprep.subr.mxu0 0.0
  %233 = vmatpush1.msra.mxu0 0.0
  %234 = vmatprep.subr.mxu0 0.0
  %235 = vmatpush1.msra.mxu0 0.0
  %236 = vmatprep.subr.mxu0 0.0
  %237 = vmatpush1.msra.mxu0 0.0
  %238 = vmatprep.subr.mxu0 0.0
  %239 = vmatpush1.msra.mxu0 0.0
  %240 = vmatprep.subr.mxu0 0.0
  %241 = vmatpush1.msra.mxu0 0.0
  %242 = vmatprep.subr.mxu0 0.0
  %243 = vmatpush1.msra.mxu0 0.0
  %244 = vmatprep.subr.mxu0 0.0
  %245 = vmatpush1.msra.mxu0 0.0
  %246 = vmatprep.subr.mxu0 0.0
  %247 = vmatpush1.msra.mxu0 0.0
  %248 = vmatprep.subr.mxu0 0.0
  %249 = vmatpush1.msra.mxu0 0.0
  %250 = vmatprep.subr.mxu0 0.0
  %251 = vmatpush1.msra.mxu0 0.0
  %252 = vmatprep.subr.mxu0 0.0
  %253 = vmatpush1.msra.mxu0 0.0
  %254 = vmatprep.subr.mxu0 0.0
  %255 = vmatpush1.msra.mxu0 0.0
  %256 = vmatprep.subr.mxu0 0.0
  %257 = vmatpush1.msra.mxu0 0.0
  %258 = vmatprep.subr.mxu0 0.0
  %259 = vmatpush1.msra.mxu0 0.0
  %260 = vmatprep.subr.mxu0 0.0
  %261 = vmatpush1.msra.mxu0 0.0
  %262 = vmatprep.mubr.f32.mxu0 0.0
  %263 = vmatmul.mubr.f32.gmra.mrb[0].mxu0 %v136
  %v264 = vpop.f32.mrb[0].mxu0
  %v265 = vadd.f32 0.0, %v264
  %v266 = vpop.f32.mrb[0].mxu0
  %267 = vmatprep.mubr.f32.mxu0 0.0
  %268 = vmatmul.mubr.f32.gmra.mrb[0].mxu0 %v137
  %v269 = vpop.f32.mrb[0].mxu0
  %v270 = vadd.f32 0.0, %v269
  %v271 = vpop.f32.mrb[0].mxu0
  %272 = vmatprep.mubr.f32.mxu0 0.0
  %273 = vmatmul.mubr.f32.gmra.mrb[0].mxu0 %v138
  %v274 = vpop.f32.mrb[0].mxu0
  %v275 = vadd.f32 0.0, %v274
  %v276 = vpop.f32.mrb[0].mxu0
  %277 = vmatprep.mubr.f32.mxu0 0.0
  %278 = vmatmul.mubr.f32.gmra.mrb[0].mxu0 %v139
  %v279 = vpop.f32.mrb[0].mxu0
  %v280 = vadd.f32 0.0, %v279
  %v281 = vpop.f32.mrb[0].mxu0
  %282 = vdwg.mxu0
  %283 = vmatprep.subr.mxu0 0.0
  %284 = vmatpush1.msra.mxu0 %v166
  %285 = vmatprep.subr.mxu0 0.0
  %286 = vmatpush1.msra.mxu0 %v167
  %287 = vmatprep.subr.mxu0 0.0
  %288 = vmatpush1.msra.mxu0 %v168
  %289 = vmatprep.subr.mxu0 0.0
  %290 = vmatpush1.msra.mxu0 %v169
  %291 = vmatprep.subr.mxu0 0.0
  %292 = vmatpush1.msra.mxu0 %v170
  %293 = vmatprep.subr.mxu0 0.0
  %294 = vmatpush1.msra.mxu0 %v171
  %295 = vmatprep.subr.mxu0 0.0
  %296 = vmatpush1.msra.mxu0 %v172
  %297 = vmatprep.subr.mxu0 0.0
  %298 = vmatpush1.msra.mxu0 %v173
  %299 = vmatprep.subr.mxu0 0.0
  %300 = vmatpush1.msra.mxu0 %v174
  %301 = vmatprep.subr.mxu0 0.0
  %302 = vmatpush1.msra.mxu0 %v175
  %303 = vmatprep.subr.mxu0 0.0
  %304 = vmatpush1.msra.mxu0 %v176
  %305 = vmatprep.subr.mxu0 0.0
  %306 = vmatpush1.msra.mxu0 %v177
  %307 = vmatprep.subr.mxu0 0.0
  %308 = vmatpush1.msra.mxu0 %v178
  %309 = vmatprep.subr.mxu0 0.0
  %310 = vmatpush1.msra.mxu0 %v179
  %311 = vmatprep.subr.mxu0 0.0
  %312 = vmatpush1.msra.mxu0 %v180
  %313 = vmatprep.subr.mxu0 0.0
  %314 = vmatpush1.msra.mxu0 %v181
  %315 = vmatprep.subr.mxu0 0.0
  %316 = vmatpush1.msra.mxu0 0.0
  %317 = vmatprep.subr.mxu0 0.0
  %318 = vmatpush1.msra.mxu0 0.0
  %319 = vmatprep.subr.mxu0 0.0
  %320 = vmatpush1.msra.mxu0 0.0
  %321 = vmatprep.subr.mxu0 0.0
  %322 = vmatpush1.msra.mxu0 0.0
  %323 = vmatprep.subr.mxu0 0.0
  %324 = vmatpush1.msra.mxu0 0.0
  %325 = vmatprep.subr.mxu0 0.0
  %326 = vmatpush1.msra.mxu0 0.0
  %327 = vmatprep.subr.mxu0 0.0
  %328 = vmatpush1.msra.mxu0 0.0
  %329 = vmatprep.subr.mxu0 0.0
  %330 = vmatpush1.msra.mxu0 0.0
  %331 = vmatprep.subr.mxu0 0.0
  %332 = vmatpush1.msra.mxu0 0.0
  %333 = vmatprep.subr.mxu0 0.0
  %334 = vmatpush1.msra.mxu0 0.0
  %335 = vmatprep.subr.mxu0 0.0
  %336 = vmatpush1.msra.mxu0 0.0
  %337 = vmatprep.subr.mxu0 0.0
  %338 = vmatpush1.msra.mxu0 0.0
  %339 = vmatprep.subr.mxu0 0.0
  %340 = vmatpush1.msra.mxu0 0.0
  %341 = vmatprep.subr.mxu0 0.0
  %342 = vmatpush1.msra.mxu0 0.0
  %343 = vmatprep.subr.mxu0 0.0
  %344 = vmatpush1.msra.mxu0 0.0
  %345 = vmatprep.subr.mxu0 0.0
  %346 = vmatpush1.msra.mxu0 0.0
  %347 = vmatprep.mubr.f32.mxu0 0.0
  %348 = vmatmul.mubr.f32.gmra.mrb[0].mxu0 %v46
  %v349 = vpop.f32.mrb[0].mxu0
  %v350 = vadd.f32 %v265, %v349
  %v351 = vpop.f32.mrb[0].mxu0
  %352 = vmatprep.mubr.f32.mxu0 0.0
  %353 = vmatmul.mubr.f32.gmra.mrb[0].mxu0 %v47
  %v354 = vpop.f32.mrb[0].mxu0
  %v355 = vadd.f32 %v270, %v354
  %v356 = vpop.f32.mrb[0].mxu0
  %357 = vmatprep.mubr.f32.mxu0 0.0
  %358 = vmatmul.mubr.f32.gmra.mrb[0].mxu0 %v48
  %v359 = vpop.f32.mrb[0].mxu0
  %v360 = vadd.f32 %v275, %v359
  %v361 = vpop.f32.mrb[0].mxu0
  %362 = vmatprep.mubr.f32.mxu0 0.0
  %363 = vmatmul.mubr.f32.gmra.mrb[0].mxu0 %v49
  %v364 = vpop.f32.mrb[0].mxu0
  %v365 = vadd.f32 %v280, %v364
  %v366 = vpop.f32.mrb[0].mxu0
  %367 = vdwg.mxu0
  %s368 = scalar_lea.vmem %s3, 256
  %v369 = vld [vmem:[%s368] sm:$0xff]
  %v370 = vld [vmem:[%s368 + $0x8] sm:$0xff]
  %v371 = vld [vmem:[%s368 + $0x10] sm:$0xff]
  %v372 = vld [vmem:[%s368 + $0x18] sm:$0xff]
  %v373 = vld [vmem:[%s368 + $0x20] sm:$0xff]
  %v374 = vld [vmem:[%s368 + $0x28] sm:$0xff]
  %v375 = vld [vmem:[%s368 + $0x30] sm:$0xff]
  %v376 = vld [vmem:[%s368 + $0x38] sm:$0xff]
  %v377 = vld [vmem:[%s368 + $0x40] sm:$0xff]
  %v378 = vld [vmem:[%s368 + $0x48] sm:$0xff]
  %v379 = vld [vmem:[%s368 + $0x50] sm:$0xff]
  %v380 = vld [vmem:[%s368 + $0x58] sm:$0xff]
  %v381 = vld [vmem:[%s368 + $0x60] sm:$0xff]
  %v382 = vld [vmem:[%s368 + $0x68] sm:$0xff]
  %v383 = vld [vmem:[%s368 + $0x70] sm:$0xff]
  %v384 = vld [vmem:[%s368 + $0x78] sm:$0xff]
  %385 = vmatprep.subr.mxu0 0.0
  %386 = vmatpush1.msra.mxu0 %v369
  %387 = vmatprep.subr.mxu0 0.0
  %388 = vmatpush1.msra.mxu0 %v370
  %389 = vmatprep.subr.mxu0 0.0
  %390 = vmatpush1.msra.mxu0 %v371
  %391 = vmatprep.subr.mxu0 0.0
  %392 = vmatpush1.msra.mxu0 %v372
  %393 = vmatprep.subr.mxu0 0.0
  %394 = vmatpush1.msra.mxu0 %v373
  %395 = vmatprep.subr.mxu0 0.0
  %396 = vmatpush1.msra.mxu0 %v374
  %397 = vmatprep.subr.mxu0 0.0
  %398 = vmatpush1.msra.mxu0 %v375
  %399 = vmatprep.subr.mxu0 0.0
  %400 = vmatpush1.msra.mxu0 %v376
  %401 = vmatprep.subr.mxu0 0.0
  %402 = vmatpush1.msra.mxu0 %v377
  %403 = vmatprep.subr.mxu0 0.0
  %404 = vmatpush1.msra.mxu0 %v378
  %405 = vmatprep.subr.mxu0 0.0
  %406 = vmatpush1.msra.mxu0 %v379
  %407 = vmatprep.subr.mxu0 0.0
  %408 = vmatpush1.msra.mxu0 %v380
  %409 = vmatprep.subr.mxu0 0.0
  %410 = vmatpush1.msra.mxu0 %v381
  %411 = vmatprep.subr.mxu0 0.0
  %412 = vmatpush1.msra.mxu0 %v382
  %413 = vmatprep.subr.mxu0 0.0
  %414 = vmatpush1.msra.mxu0 %v383
  %415 = vmatprep.subr.mxu0 0.0
  %416 = vmatpush1.msra.mxu0 %v384
  %417 = vmatprep.subr.mxu0 0.0
  %418 = vmatpush1.msra.mxu0 0.0
  %419 = vmatprep.subr.mxu0 0.0
  %420 = vmatpush1.msra.mxu0 0.0
  %421 = vmatprep.subr.mxu0 0.0
  %422 = vmatpush1.msra.mxu0 0.0
  %423 = vmatprep.subr.mxu0 0.0
  %424 = vmatpush1.msra.mxu0 0.0
  %425 = vmatprep.subr.mxu0 0.0
  %426 = vmatpush1.msra.mxu0 0.0
  %427 = vmatprep.subr.mxu0 0.0
  %428 = vmatpush1.msra.mxu0 0.0
  %429 = vmatprep.subr.mxu0 0.0
  %430 = vmatpush1.msra.mxu0 0.0
  %431 = vmatprep.subr.mxu0 0.0
  %432 = vmatpush1.msra.mxu0 0.0
  %433 = vmatprep.subr.mxu0 0.0
  %434 = vmatpush1.msra.mxu0 0.0
  %435 = vmatprep.subr.mxu0 0.0
  %436 = vmatpush1.msra.mxu0 0.0
  %437 = vmatprep.subr.mxu0 0.0
  %438 = vmatpush1.msra.mxu0 0.0
  %439 = vmatprep.subr.mxu0 0.0
  %440 = vmatpush1.msra.mxu0 0.0
  %441 = vmatprep.subr.mxu0 0.0
  %442 = vmatpush1.msra.mxu0 0.0
  %443 = vmatprep.subr.mxu0 0.0
  %444 = vmatpush1.msra.mxu0 0.0
  %445 = vmatprep.subr.mxu0 0.0
  %446 = vmatpush1.msra.mxu0 0.0
  %447 = vmatprep.subr.mxu0 0.0
  %448 = vmatpush1.msra.mxu0 0.0
  %449 = vmatprep.mubr.f32.mxu0 0.0
  %450 = vmatmul.mubr.f32.gmra.mrb[0].mxu0 %v161
  %v451 = vpop.f32.mrb[0].mxu0
  %v452 = vadd.f32 0.0, %v451
  %v453 = vpop.f32.mrb[0].mxu0
  %454 = vmatprep.mubr.f32.mxu0 0.0
  %455 = vmatmul.mubr.f32.gmra.mrb[0].mxu0 %v162
  %v456 = vpop.f32.mrb[0].mxu0
  %v457 = vadd.f32 0.0, %v456
  %v458 = vpop.f32.mrb[0].mxu0
  %459 = vmatprep.mubr.f32.mxu0 0.0
  %460 = vmatmul.mubr.f32.gmra.mrb[0].mxu0 %v163
  %v461 = vpop.f32.mrb[0].mxu0
  %v462 = vadd.f32 0.0, %v461
  %v463 = vpop.f32.mrb[0].mxu0
  %464 = vmatprep.mubr.f32.mxu0 0.0
  %465 = vmatmul.mubr.f32.gmra.mrb[0].mxu0 %v164
  %v466 = vpop.f32.mrb[0].mxu0
  %v467 = vadd.f32 0.0, %v466
  %v468 = vpop.f32.mrb[0].mxu0
  %469 = vdwg.mxu0
  %v470 = vadd.f32 %v350, %v452
  %v471 = vadd.f32 %v355, %v457
  %v472 = vadd.f32 %v360, %v462
  %v473 = vadd.f32 %v365, %v467
  %v474 = vld [vmem:[%s4] sm:$0x1]
  %v476 = vlaneseq
  %v477 = vshrl.u32 %v476, 7
  %v478 = vsub.s32 0, %v477
  %v479 = vrot.slane %v474, %v478
  %v481 = vadd.f32 %v470, %v479
  %v482 = vadd.f32 %v471, %v479
  %v483 = vadd.f32 %v472, %v479
  %v484 = vadd.f32 %v473, %v479
  %485 = vst [vmem:[%s5] sm:$0xff] %v481
  %486 = vst [vmem:[%s5 + $0x8] sm:$0xff] %v482
  %487 = vst [vmem:[%s5 + $0x10] sm:$0xff] %v483
  %488 = vst [vmem:[%s5 + $0x18] sm:$0xff] %v484
  // Predicated region
  $region22: #{dpcnn_forward.11} parent=0 // pred_check
    _
  $region23: #{dpcnn_forward.11} parent=0 // pred_check_branch
    %490 = sbr.rel (0) target = $region25
  $region24: #{dpcnn_forward.11} parent=0 // pred_region
    _
  $region25: #{dpcnn_forward.11} parent=0 // pred_fallthru
    _
  // Predicated region
  $region26: #{dpcnn_forward.11} parent=0 // pred_check
    _
  $region27: #{dpcnn_forward.11} parent=0 // pred_check_branch
    %492 = sbr.rel (0) target = $region29
  $region28: #{dpcnn_forward.11} parent=0 // pred_region
    _
  $region29: #{dpcnn_forward.11} parent=0 // pred_fallthru
    _

// kernel: dpcnn_forward.10
$region0: #{dpcnn_forward.10}
  #allocation0 [shape = 'u32[]', space=smem, size = 0x4, offset = 0x4, fixed_abs, tag = 'smem constant byte address 0x4 - core index']
  #allocation1 [shape = 'u32[144,128]{1,0:T(1,128)}', space=vmem, size = 0x12000, scoped, tag = 'internal scratch']
  %s0 = inlined_call_operand.vmem [shape: f32[32,128], index: 0, kind: input, shape index: {}]
  %s1 = inlined_call_operand.vmem [shape: f32[1,128], index: 1, kind: input, shape index: {}]
  %s2 = inlined_call_operand.vmem [shape: f32[1,128], index: 2, kind: input, shape index: {}]
  %s3 = inlined_call_operand.vmem [shape: f32[1,128], index: 3, kind: input, shape index: {}]
  %s4 = inlined_call_operand.vmem [shape: f32[1,128], index: 4, kind: input, shape index: {}]
  %s5 = inlined_call_operand.vmem [shape: f32[3,128,128], index: 5, kind: input, shape index: {}]
  %s6 = inlined_call_operand.vmem [shape: f32[1,128], index: 6, kind: input, shape index: {}]
  %s7 = inlined_call_operand.vmem [shape: f32[32,128], index: 7, kind: output, shape index: {0}]
  %s8 = inlined_call_operand.vmem [shape: f32[1,2,128], index: 8, kind: output, shape index: {1}]
  %9 = xla_tuple %s7, %s8
  %s10 = sld [smem:[#allocation0]]
  $region46: #{dpcnn_forward.10} parent=0
    _
  %s12 = ssub.s32 1, %s10
  %s13 = scalar_select 0, %s12, %s10
  // Predicated region
  $region2: #{dpcnn_forward.10} parent=0 // pred_check
    _
  $region3: #{dpcnn_forward.10} parent=0 // pred_check_branch
    %15 = sbr.rel (0) target = $region5
  $region4: #{dpcnn_forward.10} parent=0 // pred_region
    _
  $region5: #{dpcnn_forward.10} parent=0 // pred_fallthru
    _
  // Predicated region
  $region6: #{dpcnn_forward.10} parent=0 // pred_check
    _
  $region7: #{dpcnn_forward.10} parent=0 // pred_check_branch
    %17 = sbr.rel (0) target = $region9
  $region8: #{dpcnn_forward.10} parent=0 // pred_region
    _
  $region9: #{dpcnn_forward.10} parent=0 // pred_fallthru
    _
  // Predicated region
  $region10: #{dpcnn_forward.10} parent=0 // pred_check
    _
  $region11: #{dpcnn_forward.10} parent=0 // pred_check_branch
    %19 = sbr.rel (0) target = $region13
  $region12: #{dpcnn_forward.10} parent=0 // pred_region
    _
  $region13: #{dpcnn_forward.10} parent=0 // pred_fallthru
    _
  // Predicated region
  $region14: #{dpcnn_forward.10} parent=0 // pred_check
    _
  $region15: #{dpcnn_forward.10} parent=0 // pred_check_branch
    %21 = sbr.rel (0) target = $region17
  $region16: #{dpcnn_forward.10} parent=0 // pred_region
    _
  $region17: #{dpcnn_forward.10} parent=0 // pred_fallthru
    _
  // Predicated region
  $region18: #{dpcnn_forward.10} parent=0 // pred_check
    _
  $region19: #{dpcnn_forward.10} parent=0 // pred_check_branch
    %23 = sbr.rel (0) target = $region21
  $region20: #{dpcnn_forward.10} parent=0 // pred_region
    _
  $region21: #{dpcnn_forward.10} parent=0 // pred_fallthru
    _
  // Predicated region
  $region22: #{dpcnn_forward.10} parent=0 // pred_check
    _
  $region23: #{dpcnn_forward.10} parent=0 // pred_check_branch
    %25 = sbr.rel (0) target = $region25
  $region24: #{dpcnn_forward.10} parent=0 // pred_region
    _
  $region25: #{dpcnn_forward.10} parent=0 // pred_fallthru
    _
  // Predicated region
  $region26: #{dpcnn_forward.10} parent=0 // pred_check
    _
  $region27: #{dpcnn_forward.10} parent=0 // pred_check_branch
    %27 = sbr.rel (0) target = $region29
  $region28: #{dpcnn_forward.10} parent=0 // pred_region
    _
  $region29: #{dpcnn_forward.10} parent=0 // pred_fallthru
    _
  %v28 = vld [vmem:[%s0] sm:$0xff]
  %v29 = vld [vmem:[%s0 + $0x8] sm:$0xff]
  %v30 = vld [vmem:[%s0 + $0x10] sm:$0xff]
  %v31 = vld [vmem:[%s0 + $0x18] sm:$0xff]
  %v32 = vld [vmem:[%s1] sm:$0x1]
  %v34 = vlaneseq
  %v35 = vshrl.u32 %v34, 7
  %v36 = vsub.s32 0, %v35
  %v37 = vrot.slane %v32, %v36
  %v39 = vmul.f32 %v28, %v37
  %v40 = vmul.f32 %v29, %v37
  %v41 = vmul.f32 %v30, %v37
  %v42 = vmul.f32 %v31, %v37
  %v43 = vld [vmem:[%s2] sm:$0x1]
  %v45 = vlaneseq
  %v46 = vshrl.u32 %v45, 7
  %v47 = vsub.s32 0, %v46
  %v48 = vrot.slane %v43, %v47
  %v50 = vadd.f32 %v39, %v48
  %v51 = vadd.f32 %v40, %v48
  %v52 = vadd.f32 %v41, %v48
  %v53 = vadd.f32 %v42, %v48
  %v54 = vmax.f32 %v50, 0.0
  %v55 = vmax.f32 %v51, 0.0
  %v56 = vmax.f32 %v52, 0.0
  %v57 = vmax.f32 %v53, 0.0
  %v58 = vld [vmem:[%s3] sm:$0x1]
  %v60 = vlaneseq
  %v61 = vshrl.u32 %v60, 7
  %v62 = vsub.s32 0, %v61
  %v63 = vrot.slane %v58, %v62
  %v65 = vmul.f32 %v54, %v63
  %v66 = vmul.f32 %v55, %v63
  %v67 = vmul.f32 %v56, %v63
  %v68 = vmul.f32 %v57, %v63
  %v69 = vld [vmem:[%s4] sm:$0x1]
  %v71 = vlaneseq
  %v72 = vshrl.u32 %v71, 7
  %v73 = vsub.s32 0, %v72
  %v74 = vrot.slane %v69, %v73
  %v76 = vadd.f32 %v65, %v74
  %v77 = vadd.f32 %v66, %v74
  %v78 = vadd.f32 %v67, %v74
  %v79 = vadd.f32 %v68, %v74
  %v80 = vmax.f32 %v76, 0.0
  %v81 = vmax.f32 %v77, 0.0
  %v82 = vmax.f32 %v78, 0.0
  %v83 = vmax.f32 %v79, 0.0
  %v84 = vlaneseq
  %v85 = vshrl.u32 %v84, 7
  %v86 = vadd.s32 %v85, 8
  %v87 = vadd.s32 %v85, 16
  %v88 = vadd.s32 %v85, 24
  %vm89 = vcmp.lt.s32.totalorder %v85, 0
  %v90 = vsub.s32 0, %v85
  %v91 = vsel %vm89, %v90, %v85
  %v92 = vshrl.u32 %v91, 4
  %v93 = vand.u32 %v91, 15
  %v94 = vsub.s32 0, %v93
  %v95 = vsel %vm89, %v94, %v93
  %vm96 = vcmp.lt.s32.totalorder %v86, 0
  %v97 = vsub.s32 0, %v86
  %v98 = vsel %vm96, %v97, %v86
  %v99 = vshrl.u32 %v98, 4
  %v100 = vand.u32 %v98, 15
  %v101 = vsub.s32 0, %v100
  %v102 = vsel %vm96, %v101, %v100
  %vm103 = vcmp.lt.s32.totalorder %v87, 0
  %v104 = vsub.s32 0, %v87
  %v105 = vsel %vm103, %v104, %v87
  %v106 = vshrl.u32 %v105, 4
  %v107 = vand.u32 %v105, 15
  %v108 = vsub.s32 0, %v107
  %v109 = vsel %vm103, %v108, %v107
  %vm110 = vcmp.lt.s32.totalorder %v88, 0
  %v111 = vsub.s32 0, %v88
  %v112 = vsel %vm110, %v111, %v88
  %v113 = vshrl.u32 %v112, 4
  %v114 = vand.u32 %v112, 15
  %v115 = vsub.s32 0, %v114
  %v116 = vsel %vm110, %v115, %v114
  %vm117 = vcmp.ne.s32.totalorder %v95, 0
  %vm118 = vcmp.ne.s32.totalorder %v102, 0
  %vm119 = vcmp.ne.s32.totalorder %v109, 0
  %vm120 = vcmp.ne.s32.totalorder %v116, 0
  %vm121 = vcmp.lt.s32.totalorder %v95, 0
  %vm122 = vcmp.lt.s32.totalorder %v102, 0
  %vm123 = vcmp.lt.s32.totalorder %v109, 0
  %vm124 = vcmp.lt.s32.totalorder %v116, 0
  %vm125 = vmand %vm121, %vm117
  %vm126 = vmand %vm122, %vm118
  %vm127 = vmand %vm123, %vm119
  %vm128 = vmand %vm124, %vm120
  %v129 = vadd.s32 %v95, 16
  %v130 = vadd.s32 %v102, 16
  %v131 = vadd.s32 %v109, 16
  %v132 = vadd.s32 %v116, 16
  %v133 = vsel %vm125, %v129, %v95
  %v134 = vsel %vm126, %v130, %v102
  %v135 = vsel %vm127, %v131, %v109
  %v136 = vsel %vm128, %v132, %v116
  %vm137 = vcmp.ne.s32.totalorder %v133, 0
  %vm138 = vcmp.ne.s32.totalorder %v134, 0
  %vm139 = vcmp.ne.s32.totalorder %v135, 0
  %vm140 = vcmp.ne.s32.totalorder %v136, 0
  %vm141 = vcmp.ne.s32.totalorder %v133, 15
  %vm142 = vcmp.ne.s32.totalorder %v134, 15
  %vm143 = vcmp.ne.s32.totalorder %v135, 15
  %vm144 = vcmp.ne.s32.totalorder %v136, 15
  %vm149 = vcmask 1040384
  %v150 = vrot.slane %v80, 7
  %v151 = vrot.slane %v81, 7
  %v152 = vsel %vm149, %v150, %v151
  %v153 = vrot.slane %v82, 7
  %v154 = vsel %vm149, %v151, %v153
  %v155 = vrot.slane %v83, 7
  %v156 = vsel %vm149, %v153, %v155
  %v161 = vsel %vm149, 0.0, %v150
  %v162 = vsel %vm137, 1, 0
  %v163 = vsel %vm138, 1, 0
  %v164 = vsel %vm139, 1, 0
  %v165 = vsel %vm140, 1, 0
  %vm166 = vcmp.eq.s32.totalorder %v162, 1
  %vm167 = vcmp.eq.s32.totalorder %v163, 1
  %vm168 = vcmp.eq.s32.totalorder %v164, 1
  %vm169 = vcmp.eq.s32.totalorder %v165, 1
  %v170 = vsel %vm166, %v161, 0.0
  %v171 = vsel %vm167, %v152, 0.0
  %v172 = vsel %vm168, %v154, 0.0
  %v173 = vsel %vm169, %v156, 0.0
  %vm174 = vcmask 1046528
  %v175 = vrot.slane %v80, 1
  %v176 = vrot.slane %v81, 1
  %v177 = vsel %vm174, %v175, %v176
  %v178 = vrot.slane %v82, 1
  %v179 = vsel %vm174, %v176, %v178
  %v180 = vrot.slane %v83, 1
  %v181 = vsel %vm174, %v178, %v180
  %v186 = vsel %vm174, %v180, 0.0
  %v187 = vsel %vm141, 1, 0
  %v188 = vsel %vm142, 1, 0
  %v189 = vsel %vm143, 1, 0
  %v190 = vsel %vm144, 1, 0
  %vm191 = vcmp.eq.s32.totalorder %v187, 1
  %vm192 = vcmp.eq.s32.totalorder %v188, 1
  %vm193 = vcmp.eq.s32.totalorder %v189, 1
  %vm194 = vcmp.eq.s32.totalorder %v190, 1
  %v195 = vsel %vm191, %v177, 0.0
  %v196 = vsel %vm192, %v179, 0.0
  %v197 = vsel %vm193, %v181, 0.0
  %v198 = vsel %vm194, %v186, 0.0
  %s199 = scalar_lea.vmem %s5, 128
  %v200 = vld [vmem:[%s199] sm:$0xff]
  %v201 = vld [vmem:[%s199 + $0x8] sm:$0xff]
  %v202 = vld [vmem:[%s199 + $0x10] sm:$0xff]
  %v203 = vld [vmem:[%s199 + $0x18] sm:$0xff]
  %v204 = vld [vmem:[%s199 + $0x20] sm:$0xff]
  %v205 = vld [vmem:[%s199 + $0x28] sm:$0xff]
  %v206 = vld [vmem:[%s199 + $0x30] sm:$0xff]
  %v207 = vld [vmem:[%s199 + $0x38] sm:$0xff]
  %v208 = vld [vmem:[%s199 + $0x40] sm:$0xff]
  %v209 = vld [vmem:[%s199 + $0x48] sm:$0xff]
  %v210 = vld [vmem:[%s199 + $0x50] sm:$0xff]
  %v211 = vld [vmem:[%s199 + $0x58] sm:$0xff]
  %v212 = vld [vmem:[%s199 + $0x60] sm:$0xff]
  %v213 = vld [vmem:[%s199 + $0x68] sm:$0xff]
  %v214 = vld [vmem:[%s199 + $0x70] sm:$0xff]
  %v215 = vld [vmem:[%s199 + $0x78] sm:$0xff]
  %v216 = vld [vmem:[%s5] sm:$0xff]
  %v217 = vld [vmem:[%s5 + $0x8] sm:$0xff]
  %v218 = vld [vmem:[%s5 + $0x10] sm:$0xff]
  %v219 = vld [vmem:[%s5 + $0x18] sm:$0xff]
  %v220 = vld [vmem:[%s5 + $0x20] sm:$0xff]
  %v221 = vld [vmem:[%s5 + $0x28] sm:$0xff]
  %v222 = vld [vmem:[%s5 + $0x30] sm:$0xff]
  %v223 = vld [vmem:[%s5 + $0x38] sm:$0xff]
  %v224 = vld [vmem:[%s5 + $0x40] sm:$0xff]
  %v225 = vld [vmem:[%s5 + $0x48] sm:$0xff]
  %v226 = vld [vmem:[%s5 + $0x50] sm:$0xff]
  %v227 = vld [vmem:[%s5 + $0x58] sm:$0xff]
  %v228 = vld [vmem:[%s5 + $0x60] sm:$0xff]
  %v229 = vld [vmem:[%s5 + $0x68] sm:$0xff]
  %v230 = vld [vmem:[%s5 + $0x70] sm:$0xff]
  %v231 = vld [vmem:[%s5 + $0x78] sm:$0xff]
  %232 = vmatprep.subr.mxu0 0.0
  %233 = vmatpush1.msra.mxu0 %v216
  %234 = vmatprep.subr.mxu0 0.0
  %235 = vmatpush1.msra.mxu0 %v217
  %236 = vmatprep.subr.mxu0 0.0
  %237 = vmatpush1.msra.mxu0 %v218
  %238 = vmatprep.subr.mxu0 0.0
  %239 = vmatpush1.msra.mxu0 %v219
  %240 = vmatprep.subr.mxu0 0.0
  %241 = vmatpush1.msra.mxu0 %v220
  %242 = vmatprep.subr.mxu0 0.0
  %243 = vmatpush1.msra.mxu0 %v221
  %244 = vmatprep.subr.mxu0 0.0
  %245 = vmatpush1.msra.mxu0 %v222
  %246 = vmatprep.subr.mxu0 0.0
  %247 = vmatpush1.msra.mxu0 %v223
  %248 = vmatprep.subr.mxu0 0.0
  %249 = vmatpush1.msra.mxu0 %v224
  %250 = vmatprep.subr.mxu0 0.0
  %251 = vmatpush1.msra.mxu0 %v225
  %252 = vmatprep.subr.mxu0 0.0
  %253 = vmatpush1.msra.mxu0 %v226
  %254 = vmatprep.subr.mxu0 0.0
  %255 = vmatpush1.msra.mxu0 %v227
  %256 = vmatprep.subr.mxu0 0.0
  %257 = vmatpush1.msra.mxu0 %v228
  %258 = vmatprep.subr.mxu0 0.0
  %259 = vmatpush1.msra.mxu0 %v229
  %260 = vmatprep.subr.mxu0 0.0
  %261 = vmatpush1.msra.mxu0 %v230
  %262 = vmatprep.subr.mxu0 0.0
  %263 = vmatpush1.msra.mxu0 %v231
  %264 = vmatprep.subr.mxu0 0.0
  %265 = vmatpush1.msra.mxu0 0.0
  %266 = vmatprep.subr.mxu0 0.0
  %267 = vmatpush1.msra.mxu0 0.0
  %268 = vmatprep.subr.mxu0 0.0
  %269 = vmatpush1.msra.mxu0 0.0
  %270 = vmatprep.subr.mxu0 0.0
  %271 = vmatpush1.msra.mxu0 0.0
  %272 = vmatprep.subr.mxu0 0.0
  %273 = vmatpush1.msra.mxu0 0.0
  %274 = vmatprep.subr.mxu0 0.0
  %275 = vmatpush1.msra.mxu0 0.0
  %276 = vmatprep.subr.mxu0 0.0
  %277 = vmatpush1.msra.mxu0 0.0
  %278 = vmatprep.subr.mxu0 0.0
  %279 = vmatpush1.msra.mxu0 0.0
  %280 = vmatprep.subr.mxu0 0.0
  %281 = vmatpush1.msra.mxu0 0.0
  %282 = vmatprep.subr.mxu0 0.0
  %283 = vmatpush1.msra.mxu0 0.0
  %284 = vmatprep.subr.mxu0 0.0
  %285 = vmatpush1.msra.mxu0 0.0
  %286 = vmatprep.subr.mxu0 0.0
  %287 = vmatpush1.msra.mxu0 0.0
  %288 = vmatprep.subr.mxu0 0.0
  %289 = vmatpush1.msra.mxu0 0.0
  %290 = vmatprep.subr.mxu0 0.0
  %291 = vmatpush1.msra.mxu0 0.0
  %292 = vmatprep.subr.mxu0 0.0
  %293 = vmatpush1.msra.mxu0 0.0
  %294 = vmatprep.subr.mxu0 0.0
  %295 = vmatpush1.msra.mxu0 0.0
  %296 = vmatprep.mubr.f32.mxu0 0.0
  %297 = vmatmul.mubr.f32.gmra.mrb[0].mxu0 %v170
  %v298 = vpop.f32.mrb[0].mxu0
  %v299 = vadd.f32 0.0, %v298
  %v300 = vpop.f32.mrb[0].mxu0
  %301 = vmatprep.mubr.f32.mxu0 0.0
  %302 = vmatmul.mubr.f32.gmra.mrb[0].mxu0 %v171
  %v303 = vpop.f32.mrb[0].mxu0
  %v304 = vadd.f32 0.0, %v303
  %v305 = vpop.f32.mrb[0].mxu0
  %306 = vmatprep.mubr.f32.mxu0 0.0
  %307 = vmatmul.mubr.f32.gmra.mrb[0].mxu0 %v172
  %v308 = vpop.f32.mrb[0].mxu0
  %v309 = vadd.f32 0.0, %v308
  %v310 = vpop.f32.mrb[0].mxu0
  %311 = vmatprep.mubr.f32.mxu0 0.0
  %312 = vmatmul.mubr.f32.gmra.mrb[0].mxu0 %v173
  %v313 = vpop.f32.mrb[0].mxu0
  %v314 = vadd.f32 0.0, %v313
  %v315 = vpop.f32.mrb[0].mxu0
  %316 = vdwg.mxu0
  %317 = vmatprep.subr.mxu0 0.0
  %318 = vmatpush1.msra.mxu0 %v200
  %319 = vmatprep.subr.mxu0 0.0
  %320 = vmatpush1.msra.mxu0 %v201
  %321 = vmatprep.subr.mxu0 0.0
  %322 = vmatpush1.msra.mxu0 %v202
  %323 = vmatprep.subr.mxu0 0.0
  %324 = vmatpush1.msra.mxu0 %v203
  %325 = vmatprep.subr.mxu0 0.0
  %326 = vmatpush1.msra.mxu0 %v204
  %327 = vmatprep.subr.mxu0 0.0
  %328 = vmatpush1.msra.mxu0 %v205
  %329 = vmatprep.subr.mxu0 0.0
  %330 = vmatpush1.msra.mxu0 %v206
  %331 = vmatprep.subr.mxu0 0.0
  %332 = vmatpush1.msra.mxu0 %v207
  %333 = vmatprep.subr.mxu0 0.0
  %334 = vmatpush1.msra.mxu0 %v208
  %335 = vmatprep.subr.mxu0 0.0
  %336 = vmatpush1.msra.mxu0 %v209
  %337 = vmatprep.subr.mxu0 0.0
  %338 = vmatpush1.msra.mxu0 %v210
  %339 = vmatprep.subr.mxu0 0.0
  %340 = vmatpush1.msra.mxu0 %v211
  %341 = vmatprep.subr.mxu0 0.0
  %342 = vmatpush1.msra.mxu0 %v212
  %343 = vmatprep.subr.mxu0 0.0
  %344 = vmatpush1.msra.mxu0 %v213
  %345 = vmatprep.subr.mxu0 0.0
  %346 = vmatpush1.msra.mxu0 %v214
  %347 = vmatprep.subr.mxu0 0.0
  %348 = vmatpush1.msra.mxu0 %v215
  %349 = vmatprep.subr.mxu0 0.0
  %350 = vmatpush1.msra.mxu0 0.0
  %351 = vmatprep.subr.mxu0 0.0
  %352 = vmatpush1.msra.mxu0 0.0
  %353 = vmatprep.subr.mxu0 0.0
  %354 = vmatpush1.msra.mxu0 0.0
  %355 = vmatprep.subr.mxu0 0.0
  %356 = vmatpush1.msra.mxu0 0.0
  %357 = vmatprep.subr.mxu0 0.0
  %358 = vmatpush1.msra.mxu0 0.0
  %359 = vmatprep.subr.mxu0 0.0
  %360 = vmatpush1.msra.mxu0 0.0
  %361 = vmatprep.subr.mxu0 0.0
  %362 = vmatpush1.msra.mxu0 0.0
  %363 = vmatprep.subr.mxu0 0.0
  %364 = vmatpush1.msra.mxu0 0.0
  %365 = vmatprep.subr.mxu0 0.0
  %366 = vmatpush1.msra.mxu0 0.0
  %367 = vmatprep.subr.mxu0 0.0
  %368 = vmatpush1.msra.mxu0 0.0
  %369 = vmatprep.subr.mxu0 0.0
  %370 = vmatpush1.msra.mxu0 0.0
  %371 = vmatprep.subr.mxu0 0.0
  %372 = vmatpush1.msra.mxu0 0.0
  %373 = vmatprep.subr.mxu0 0.0
  %374 = vmatpush1.msra.mxu0 0.0
  %375 = vmatprep.subr.mxu0 0.0
  %376 = vmatpush1.msra.mxu0 0.0
  %377 = vmatprep.subr.mxu0 0.0
  %378 = vmatpush1.msra.mxu0 0.0
  %379 = vmatprep.subr.mxu0 0.0
  %380 = vmatpush1.msra.mxu0 0.0
  %381 = vmatprep.mubr.f32.mxu0 0.0
  %382 = vmatmul.mubr.f32.gmra.mrb[0].mxu0 %v80
  %v383 = vpop.f32.mrb[0].mxu0
  %v384 = vadd.f32 %v299, %v383
  %v385 = vpop.f32.mrb[0].mxu0
  %386 = vmatprep.mubr.f32.mxu0 0.0
  %387 = vmatmul.mubr.f32.gmra.mrb[0].mxu0 %v81
  %v388 = vpop.f32.mrb[0].mxu0
  %v389 = vadd.f32 %v304, %v388
  %v390 = vpop.f32.mrb[0].mxu0
  %391 = vmatprep.mubr.f32.mxu0 0.0
  %392 = vmatmul.mubr.f32.gmra.mrb[0].mxu0 %v82
  %v393 = vpop.f32.mrb[0].mxu0
  %v394 = vadd.f32 %v309, %v393
  %v395 = vpop.f32.mrb[0].mxu0
  %396 = vmatprep.mubr.f32.mxu0 0.0
  %397 = vmatmul.mubr.f32.gmra.mrb[0].mxu0 %v83
  %v398 = vpop.f32.mrb[0].mxu0
  %v399 = vadd.f32 %v314, %v398
  %v400 = vpop.f32.mrb[0].mxu0
  %401 = vdwg.mxu0
  %s402 = scalar_lea.vmem %s5, 256
  %v403 = vld [vmem:[%s402] sm:$0xff]
  %v404 = vld [vmem:[%s402 + $0x8] sm:$0xff]
  %v405 = vld [vmem:[%s402 + $0x10] sm:$0xff]
  %v406 = vld [vmem:[%s402 + $0x18] sm:$0xff]
  %v407 = vld [vmem:[%s402 + $0x20] sm:$0xff]
  %v408 = vld [vmem:[%s402 + $0x28] sm:$0xff]
  %v409 = vld [vmem:[%s402 + $0x30] sm:$0xff]
  %v410 = vld [vmem:[%s402 + $0x38] sm:$0xff]
  %v411 = vld [vmem:[%s402 + $0x40] sm:$0xff]
  %v412 = vld [vmem:[%s402 + $0x48] sm:$0xff]
  %v413 = vld [vmem:[%s402 + $0x50] sm:$0xff]
  %v414 = vld [vmem:[%s402 + $0x58] sm:$0xff]
  %v415 = vld [vmem:[%s402 + $0x60] sm:$0xff]
  %v416 = vld [vmem:[%s402 + $0x68] sm:$0xff]
  %v417 = vld [vmem:[%s402 + $0x70] sm:$0xff]
  %v418 = vld [vmem:[%s402 + $0x78] sm:$0xff]
  %419 = vmatprep.subr.mxu0 0.0
  %420 = vmatpush1.msra.mxu0 %v403
  %421 = vmatprep.subr.mxu0 0.0
  %422 = vmatpush1.msra.mxu0 %v404
  %423 = vmatprep.subr.mxu0 0.0
  %424 = vmatpush1.msra.mxu0 %v405
  %425 = vmatprep.subr.mxu0 0.0
  %426 = vmatpush1.msra.mxu0 %v406
  %427 = vmatprep.subr.mxu0 0.0
  %428 = vmatpush1.msra.mxu0 %v407
  %429 = vmatprep.subr.mxu0 0.0
  %430 = vmatpush1.msra.mxu0 %v408
  %431 = vmatprep.subr.mxu0 0.0
  %432 = vmatpush1.msra.mxu0 %v409
  %433 = vmatprep.subr.mxu0 0.0
  %434 = vmatpush1.msra.mxu0 %v410
  %435 = vmatprep.subr.mxu0 0.0
  %436 = vmatpush1.msra.mxu0 %v411
  %437 = vmatprep.subr.mxu0 0.0
  %438 = vmatpush1.msra.mxu0 %v412
  %439 = vmatprep.subr.mxu0 0.0
  %440 = vmatpush1.msra.mxu0 %v413
  %441 = vmatprep.subr.mxu0 0.0
  %442 = vmatpush1.msra.mxu0 %v414
  %443 = vmatprep.subr.mxu0 0.0
  %444 = vmatpush1.msra.mxu0 %v415
  %445 = vmatprep.subr.mxu0 0.0
  %446 = vmatpush1.msra.mxu0 %v416
  %447 = vmatprep.subr.mxu0 0.0
  %448 = vmatpush1.msra.mxu0 %v417
  %449 = vmatprep.subr.mxu0 0.0
  %450 = vmatpush1.msra.mxu0 %v418
  %451 = vmatprep.subr.mxu0 0.0
  %452 = vmatpush1.msra.mxu0 0.0
  %453 = vmatprep.subr.mxu0 0.0
  %454 = vmatpush1.msra.mxu0 0.0
  %455 = vmatprep.subr.mxu0 0.0
  %456 = vmatpush1.msra.mxu0 0.0
  %457 = vmatprep.subr.mxu0 0.0
  %458 = vmatpush1.msra.mxu0 0.0
  %459 = vmatprep.subr.mxu0 0.0
  %460 = vmatpush1.msra.mxu0 0.0
  %461 = vmatprep.subr.mxu0 0.0
  %462 = vmatpush1.msra.mxu0 0.0
  %463 = vmatprep.subr.mxu0 0.0
  %464 = vmatpush1.msra.mxu0 0.0
  %465 = vmatprep.subr.mxu0 0.0
  %466 = vmatpush1.msra.mxu0 0.0
  %467 = vmatprep.subr.mxu0 0.0
  %468 = vmatpush1.msra.mxu0 0.0
  %469 = vmatprep.subr.mxu0 0.0
  %470 = vmatpush1.msra.mxu0 0.0
  %471 = vmatprep.subr.mxu0 0.0
  %472 = vmatpush1.msra.mxu0 0.0
  %473 = vmatprep.subr.mxu0 0.0
  %474 = vmatpush1.msra.mxu0 0.0
  %475 = vmatprep.subr.mxu0 0.0
  %476 = vmatpush1.msra.mxu0 0.0
  %477 = vmatprep.subr.mxu0 0.0
  %478 = vmatpush1.msra.mxu0 0.0
  %479 = vmatprep.subr.mxu0 0.0
  %480 = vmatpush1.msra.mxu0 0.0
  %481 = vmatprep.subr.mxu0 0.0
  %482 = vmatpush1.msra.mxu0 0.0
  %483 = vmatprep.mubr.f32.mxu0 0.0
  %484 = vmatmul.mubr.f32.gmra.mrb[0].mxu0 %v195
  %v485 = vpop.f32.mrb[0].mxu0
  %v486 = vadd.f32 0.0, %v485
  %v487 = vpop.f32.mrb[0].mxu0
  %488 = vmatprep.mubr.f32.mxu0 0.0
  %489 = vmatmul.mubr.f32.gmra.mrb[0].mxu0 %v196
  %v490 = vpop.f32.mrb[0].mxu0
  %v491 = vadd.f32 0.0, %v490
  %v492 = vpop.f32.mrb[0].mxu0
  %493 = vmatprep.mubr.f32.mxu0 0.0
  %494 = vmatmul.mubr.f32.gmra.mrb[0].mxu0 %v197
  %v495 = vpop.f32.mrb[0].mxu0
  %v496 = vadd.f32 0.0, %v495
  %v497 = vpop.f32.mrb[0].mxu0
  %498 = vmatprep.mubr.f32.mxu0 0.0
  %499 = vmatmul.mubr.f32.gmra.mrb[0].mxu0 %v198
  %v500 = vpop.f32.mrb[0].mxu0
  %v501 = vadd.f32 0.0, %v500
  %v502 = vpop.f32.mrb[0].mxu0
  %503 = vdwg.mxu0
  %v504 = vadd.f32 %v384, %v486
  %v505 = vadd.f32 %v389, %v491
  %v506 = vadd.f32 %v394, %v496
  %v507 = vadd.f32 %v399, %v501
  %v508 = vld [vmem:[%s6] sm:$0x1]
  %v510 = vlaneseq
  %v511 = vshrl.u32 %v510, 7
  %v512 = vsub.s32 0, %v511
  %v513 = vrot.slane %v508, %v512
  %v515 = vadd.f32 %v504, %v513
  %v516 = vadd.f32 %v505, %v513
  %v517 = vadd.f32 %v506, %v513
  %v518 = vadd.f32 %v507, %v513
  %519 = vst [vmem:[%s7] sm:$0xff] %v515
  %520 = vst [vmem:[%s7 + $0x8] sm:$0xff] %v516
  %521 = vst [vmem:[%s7 + $0x10] sm:$0xff] %v517
  %522 = vst [vmem:[%s7 + $0x18] sm:$0xff] %v518
  %v523 = vadd.f32 %v515, %v516
  %v524 = vadd.f32 %v523, %v517
  %v525 = vadd.f32 %v524, %v518
  %v526 = vrot.slane %v525, 4
  %v527 = vadd.f32 %v525, %v526
  %v528 = vrot.slane %v527, 2
  %v529 = vadd.f32 %v527, %v528
  %v530 = vrot.slane %v529, 1
  %v531 = vadd.f32 %v529, %v530
  %v532 = vmul.f32 %v515, %v515
  %v533 = vmul.f32 %v516, %v516
  %v534 = vmul.f32 %v517, %v517
  %v535 = vmul.f32 %v518, %v518
  %v536 = vadd.f32 %v532, %v533
  %v537 = vadd.f32 %v536, %v534
  %v538 = vadd.f32 %v537, %v535
  %v539 = vrot.slane %v538, 4
  %v540 = vadd.f32 %v538, %v539
  %v541 = vrot.slane %v540, 2
  %v542 = vadd.f32 %v540, %v541
  %v543 = vrot.slane %v542, 1
  %v544 = vadd.f32 %v542, %v543
  %v545 = vsel %vm149, %v531, %v544
  %546 = vst [vmem:[%s8] sm:$0x3] %v545
  // Predicated region
  $region30: #{dpcnn_forward.10} parent=0 // pred_check
    _
  $region31: #{dpcnn_forward.10} parent=0 // pred_check_branch
    %548 = sbr.rel (0) target = $region33
  $region32: #{dpcnn_forward.10} parent=0 // pred_region
    _
  $region33: #{dpcnn_forward.10} parent=0 // pred_fallthru
    _
  // Predicated region
  $region34: #{dpcnn_forward.10} parent=0 // pred_check
    _
  $region35: #{dpcnn_forward.10} parent=0 // pred_check_branch
    %550 = sbr.rel (0) target = $region37
  $region36: #{dpcnn_forward.10} parent=0 // pred_region
    _
  $region37: #{dpcnn_forward.10} parent=0 // pred_fallthru
    _
  // Predicated region
  $region38: #{dpcnn_forward.10} parent=0 // pred_check
    _
  $region39: #{dpcnn_forward.10} parent=0 // pred_check_branch
    %552 = sbr.rel (0) target = $region41
  $region40: #{dpcnn_forward.10} parent=0 // pred_region
    _
  $region41: #{dpcnn_forward.10} parent=0 // pred_fallthru
    _
  // Predicated region
  $region42: #{dpcnn_forward.10} parent=0 // pred_check
    _
  $region43: #{dpcnn_forward.10} parent=0 // pred_check_branch
    %554 = sbr.rel (0) target = $region45
  $region44: #{dpcnn_forward.10} parent=0 // pred_region
    _
  $region45: #{dpcnn_forward.10} parent=0 // pred_fallthru
    _

// kernel: dpcnn_forward.12
$region0: #{dpcnn_forward.12}
  #allocation0 [shape = 'u32[]', space=smem, size = 0x4, offset = 0x4, fixed_abs, tag = 'smem constant byte address 0x4 - core index']
  #allocation1 [shape = 'u32[144,128]{1,0:T(1,128)}', space=vmem, size = 0x12000, scoped, tag = 'internal scratch']
  %s0 = inlined_call_operand.vmem [shape: f32[16,256], index: 0, kind: input, shape index: {}]
  %s1 = inlined_call_operand.vmem [shape: f32[3,128,128], index: 1, kind: input, shape index: {}]
  %s2 = inlined_call_operand.vmem [shape: f32[1,128], index: 2, kind: input, shape index: {}]
  %s3 = inlined_call_operand.vmem [shape: f32[1,128], index: 3, kind: input, shape index: {}]
  %s4 = inlined_call_operand.vmem [shape: f32[1,128], index: 4, kind: input, shape index: {}]
  %s5 = inlined_call_operand.vmem [shape: f32[3,128,128], index: 5, kind: input, shape index: {}]
  %s6 = inlined_call_operand.vmem [shape: f32[1,128], index: 6, kind: input, shape index: {}]
  %s7 = inlined_call_operand.vmem [shape: f32[1,128], index: 7, kind: input, shape index: {}]
  %s8 = inlined_call_operand.vmem [shape: f32[1,128], index: 8, kind: input, shape index: {}]
  %s9 = inlined_call_operand.vmem [shape: f32[16,128], index: 9, kind: output, shape index: {}]
  %s10 = sld [smem:[#allocation0]]
  $region46: #{dpcnn_forward.12} parent=0
    _
  %s12 = ssub.s32 1, %s10
  %s13 = scalar_select 0, %s12, %s10
  // Predicated region
  $region2: #{dpcnn_forward.12} parent=0 // pred_check
    _
  $region3: #{dpcnn_forward.12} parent=0 // pred_check_branch
    %15 = sbr.rel (0) target = $region5
  $region4: #{dpcnn_forward.12} parent=0 // pred_region
    _
  $region5: #{dpcnn_forward.12} parent=0 // pred_fallthru
    _
  // Predicated region
  $region6: #{dpcnn_forward.12} parent=0 // pred_check
    _
  $region7: #{dpcnn_forward.12} parent=0 // pred_check_branch
    %17 = sbr.rel (0) target = $region9
  $region8: #{dpcnn_forward.12} parent=0 // pred_region
    _
  $region9: #{dpcnn_forward.12} parent=0 // pred_fallthru
    _
  // Predicated region
  $region10: #{dpcnn_forward.12} parent=0 // pred_check
    _
  $region11: #{dpcnn_forward.12} parent=0 // pred_check_branch
    %19 = sbr.rel (0) target = $region13
  $region12: #{dpcnn_forward.12} parent=0 // pred_region
    _
  $region13: #{dpcnn_forward.12} parent=0 // pred_fallthru
    _
  // Predicated region
  $region14: #{dpcnn_forward.12} parent=0 // pred_check
    _
  $region15: #{dpcnn_forward.12} parent=0 // pred_check_branch
    %21 = sbr.rel (0) target = $region17
  $region16: #{dpcnn_forward.12} parent=0 // pred_region
    _
  $region17: #{dpcnn_forward.12} parent=0 // pred_fallthru
    _
  // Predicated region
  $region18: #{dpcnn_forward.12} parent=0 // pred_check
    _
  $region19: #{dpcnn_forward.12} parent=0 // pred_check_branch
    %23 = sbr.rel (0) target = $region21
  $region20: #{dpcnn_forward.12} parent=0 // pred_region
    _
  $region21: #{dpcnn_forward.12} parent=0 // pred_fallthru
    _
  // Predicated region
  $region22: #{dpcnn_forward.12} parent=0 // pred_check
    _
  $region23: #{dpcnn_forward.12} parent=0 // pred_check_branch
    %25 = sbr.rel (0) target = $region25
  $region24: #{dpcnn_forward.12} parent=0 // pred_region
    _
  $region25: #{dpcnn_forward.12} parent=0 // pred_fallthru
    _
  // Predicated region
  $region26: #{dpcnn_forward.12} parent=0 // pred_check
    _
  $region27: #{dpcnn_forward.12} parent=0 // pred_check_branch
    %27 = sbr.rel (0) target = $region29
  $region28: #{dpcnn_forward.12} parent=0 // pred_region
    _
  $region29: #{dpcnn_forward.12} parent=0 // pred_fallthru
    _
  // Predicated region
  $region30: #{dpcnn_forward.12} parent=0 // pred_check
    _
  $region31: #{dpcnn_forward.12} parent=0 // pred_check_branch
    %29 = sbr.rel (0) target = $region33
  $region32: #{dpcnn_forward.12} parent=0 // pred_region
    _
  $region33: #{dpcnn_forward.12} parent=0 // pred_fallthru
    _
  // Predicated region
  $region34: #{dpcnn_forward.12} parent=0 // pred_check
    _
  $region35: #{dpcnn_forward.12} parent=0 // pred_check_branch
    %31 = sbr.rel (0) target = $region37
  $region36: #{dpcnn_forward.12} parent=0 // pred_region
    _
  $region37: #{dpcnn_forward.12} parent=0 // pred_fallthru
    _
  %v32 = vld [vmem:[%s0] sm:$0xff]
  %v33 = vld [vmem:[%s0 + $0x8] sm:$0xff]
  %v34 = vld [vmem:[%s0 + $0x10] sm:$0xff]
  %v35 = vld [vmem:[%s0 + $0x18] sm:$0xff]
  %v36 = vlaneseq
  %v37 = vshrl.u32 %v36, 7
  %v38 = vadd.s32 %v37, 8
  %vm39 = vcmp.lt.s32.totalorder %v37, 0
  %v40 = vsub.s32 0, %v37
  %v41 = vsel %vm39, %v40, %v37
  %v42 = vshrl.u32 %v41, 3
  %v43 = vand.u32 %v41, 7
  %v44 = vsub.s32 0, %v43
  %v45 = vsel %vm39, %v44, %v43
  %vm46 = vcmp.lt.s32.totalorder %v38, 0
  %v47 = vsub.s32 0, %v38
  %v48 = vsel %vm46, %v47, %v38
  %v49 = vshrl.u32 %v48, 3
  %v50 = vand.u32 %v48, 7
  %v51 = vsub.s32 0, %v50
  %v52 = vsel %vm46, %v51, %v50
  %vm53 = vcmp.ne.s32.totalorder %v45, 0
  %vm54 = vcmp.ne.s32.totalorder %v52, 0
  %vm55 = vcmp.lt.s32.totalorder %v45, 0
  %vm56 = vcmp.lt.s32.totalorder %v52, 0
  %vm57 = vmand %vm55, %vm53
  %vm58 = vmand %vm56, %vm54
  %v59 = vadd.s32 %v45, 8
  %v60 = vadd.s32 %v52, 8
  %v61 = vsel %vm57, %v59, %v45
  %v62 = vsel %vm58, %v60, %v52
  %vm63 = vcmp.ne.s32.totalorder %v61, 0
  %vm64 = vcmp.ne.s32.totalorder %v62, 0
  %vm65 = vcmp.ne.s32.totalorder %v61, 7
  %vm66 = vcmp.ne.s32.totalorder %v62, 7
  %vm69 = vcmask 1046528
  %v70 = vrot.slane %v32, 1
  %v71 = vrot.slane %v34, 1
  %v72 = vsel %vm69, %v70, %v71
  %v75 = vsel %vm69, %v71, 0.0
  %v76 = vsel %vm65, 1, 0
  %v77 = vsel %vm66, 1, 0
  %vm78 = vcmp.eq.s32.totalorder %v76, 1
  %vm79 = vcmp.eq.s32.totalorder %v77, 1
  %v80 = vsel %vm78, %v72, 0.0
  %v81 = vsel %vm79, %v75, 0.0
  %v82 = vmax.f32 %v32, %v33
  %v83 = vmax.f32 %v34, %v35
  %v84 = vmax.f32 %v82, %v80
  %v85 = vmax.f32 %v83, %v81
  %v86 = vadd.f32 %v84, %v85
  %v87 = vrot.slane %v86, 4
  %v88 = vadd.f32 %v86, %v87
  %v89 = vrot.slane %v88, 2
  %v90 = vadd.f32 %v88, %v89
  %v91 = vrot.slane %v90, 1
  %v92 = vadd.f32 %v90, %v91
  %v93 = vmul.f32 %v92, 0.0625
  %v94 = vmul.f32 %v84, %v84
  %v95 = vmul.f32 %v85, %v85
  %v96 = vadd.f32 %v94, %v95
  %v97 = vrot.slane %v96, 4
  %v98 = vadd.f32 %v96, %v97
  %v99 = vrot.slane %v98, 2
  %v100 = vadd.f32 %v98, %v99
  %v101 = vrot.slane %v100, 1
  %v102 = vadd.f32 %v100, %v101
  %v103 = vmul.f32 %v102, 0.0625
  %v104 = vmul.f32 %v93, %v93
  %v105 = vsub.f32 %v103, %v104
  %v106 = vmax.f32 %v105, 0.0
  %v107 = vld [vmem:[%s3] sm:$0x1]
  %v108 = vadd.f32 %v106, 1e-05
  %v109 = vrsqrt.pop %v108
  %v110 = vmul.f32 %v107, %v109
  %v112 = vlaneseq
  %v113 = vshrl.u32 %v112, 7
  %v114 = vsub.s32 0, %v113
  %v115 = vrot.slane %v110, %v114
  %v117 = vmul.f32 %v84, %v115
  %v118 = vmul.f32 %v85, %v115
  %v119 = vld [vmem:[%s4] sm:$0x1]
  %v120 = vmul.f32 %v93, %v110
  %v121 = vsub.f32 %v119, %v120
  %v123 = vlaneseq
  %v124 = vshrl.u32 %v123, 7
  %v125 = vsub.s32 0, %v124
  %v126 = vrot.slane %v121, %v125
  %v128 = vadd.f32 %v117, %v126
  %v129 = vadd.f32 %v118, %v126
  %v130 = vmax.f32 %v128, 0.0
  %v131 = vmax.f32 %v129, 0.0
  %vm134 = vcmask 1040384
  %v135 = vrot.slane %v130, 7
  %v136 = vrot.slane %v131, 7
  %v137 = vsel %vm134, %v135, %v136
  %v140 = vsel %vm134, 0.0, %v135
  %v141 = vsel %vm63, 1, 0
  %v142 = vsel %vm64, 1, 0
  %vm143 = vcmp.eq.s32.totalorder %v141, 1
  %vm144 = vcmp.eq.s32.totalorder %v142, 1
  %v145 = vsel %vm143, %v140, 0.0
  %v146 = vsel %vm144, %v137, 0.0
  %v147 = vrot.slane %v130, 1
  %v148 = vrot.slane %v131, 1
  %v149 = vsel %vm69, %v147, %v148
  %v152 = vsel %vm69, %v148, 0.0
  %v153 = vsel %vm78, %v149, 0.0
  %v154 = vsel %vm79, %v152, 0.0
  %s155 = scalar_lea.vmem %s1, 128
  %v156 = vld [vmem:[%s155] sm:$0xff]
  %v157 = vld [vmem:[%s155 + $0x8] sm:$0xff]
  %v158 = vld [vmem:[%s155 + $0x10] sm:$0xff]
  %v159 = vld [vmem:[%s155 + $0x18] sm:$0xff]
  %v160 = vld [vmem:[%s155 + $0x20] sm:$0xff]
  %v161 = vld [vmem:[%s155 + $0x28] sm:$0xff]
  %v162 = vld [vmem:[%s155 + $0x30] sm:$0xff]
  %v163 = vld [vmem:[%s155 + $0x38] sm:$0xff]
  %v164 = vld [vmem:[%s155 + $0x40] sm:$0xff]
  %v165 = vld [vmem:[%s155 + $0x48] sm:$0xff]
  %v166 = vld [vmem:[%s155 + $0x50] sm:$0xff]
  %v167 = vld [vmem:[%s155 + $0x58] sm:$0xff]
  %v168 = vld [vmem:[%s155 + $0x60] sm:$0xff]
  %v169 = vld [vmem:[%s155 + $0x68] sm:$0xff]
  %v170 = vld [vmem:[%s155 + $0x70] sm:$0xff]
  %v171 = vld [vmem:[%s155 + $0x78] sm:$0xff]
  %v172 = vld [vmem:[%s1] sm:$0xff]
  %v173 = vld [vmem:[%s1 + $0x8] sm:$0xff]
  %v174 = vld [vmem:[%s1 + $0x10] sm:$0xff]
  %v175 = vld [vmem:[%s1 + $0x18] sm:$0xff]
  %v176 = vld [vmem:[%s1 + $0x20] sm:$0xff]
  %v177 = vld [vmem:[%s1 + $0x28] sm:$0xff]
  %v178 = vld [vmem:[%s1 + $0x30] sm:$0xff]
  %v179 = vld [vmem:[%s1 + $0x38] sm:$0xff]
  %v180 = vld [vmem:[%s1 + $0x40] sm:$0xff]
  %v181 = vld [vmem:[%s1 + $0x48] sm:$0xff]
  %v182 = vld [vmem:[%s1 + $0x50] sm:$0xff]
  %v183 = vld [vmem:[%s1 + $0x58] sm:$0xff]
  %v184 = vld [vmem:[%s1 + $0x60] sm:$0xff]
  %v185 = vld [vmem:[%s1 + $0x68] sm:$0xff]
  %v186 = vld [vmem:[%s1 + $0x70] sm:$0xff]
  %v187 = vld [vmem:[%s1 + $0x78] sm:$0xff]
  %188 = vmatprep.subr.mxu0 0.0
  %189 = vmatpush1.msra.mxu0 %v172
  %190 = vmatprep.subr.mxu0 0.0
  %191 = vmatpush1.msra.mxu0 %v173
  %192 = vmatprep.subr.mxu0 0.0
  %193 = vmatpush1.msra.mxu0 %v174
  %194 = vmatprep.subr.mxu0 0.0
  %195 = vmatpush1.msra.mxu0 %v175
  %196 = vmatprep.subr.mxu0 0.0
  %197 = vmatpush1.msra.mxu0 %v176
  %198 = vmatprep.subr.mxu0 0.0
  %199 = vmatpush1.msra.mxu0 %v177
  %200 = vmatprep.subr.mxu0 0.0
  %201 = vmatpush1.msra.mxu0 %v178
  %202 = vmatprep.subr.mxu0 0.0
  %203 = vmatpush1.msra.mxu0 %v179
  %204 = vmatprep.subr.mxu0 0.0
  %205 = vmatpush1.msra.mxu0 %v180
  %206 = vmatprep.subr.mxu0 0.0
  %207 = vmatpush1.msra.mxu0 %v181
  %208 = vmatprep.subr.mxu0 0.0
  %209 = vmatpush1.msra.mxu0 %v182
  %210 = vmatprep.subr.mxu0 0.0
  %211 = vmatpush1.msra.mxu0 %v183
  %212 = vmatprep.subr.mxu0 0.0
  %213 = vmatpush1.msra.mxu0 %v184
  %214 = vmatprep.subr.mxu0 0.0
  %215 = vmatpush1.msra.mxu0 %v185
  %216 = vmatprep.subr.mxu0 0.0
  %217 = vmatpush1.msra.mxu0 %v186
  %218 = vmatprep.subr.mxu0 0.0
  %219 = vmatpush1.msra.mxu0 %v187
  %220 = vmatprep.subr.mxu0 0.0
  %221 = vmatpush1.msra.mxu0 0.0
  %222 = vmatprep.subr.mxu0 0.0
  %223 = vmatpush1.msra.mxu0 0.0
  %224 = vmatprep.subr.mxu0 0.0
  %225 = vmatpush1.msra.mxu0 0.0
  %226 = vmatprep.subr.mxu0 0.0
  %227 = vmatpush1.msra.mxu0 0.0
  %228 = vmatprep.subr.mxu0 0.0
  %229 = vmatpush1.msra.mxu0 0.0
  %230 = vmatprep.subr.mxu0 0.0
  %231 = vmatpush1.msra.mxu0 0.0
  %232 = vmatprep.subr.mxu0 0.0
  %233 = vmatpush1.msra.mxu0 0.0
  %234 = vmatprep.subr.mxu0 0.0
  %235 = vmatpush1.msra.mxu0 0.0
  %236 = vmatprep.subr.mxu0 0.0
  %237 = vmatpush1.msra.mxu0 0.0
  %238 = vmatprep.subr.mxu0 0.0
  %239 = vmatpush1.msra.mxu0 0.0
  %240 = vmatprep.subr.mxu0 0.0
  %241 = vmatpush1.msra.mxu0 0.0
  %242 = vmatprep.subr.mxu0 0.0
  %243 = vmatpush1.msra.mxu0 0.0
  %244 = vmatprep.subr.mxu0 0.0
  %245 = vmatpush1.msra.mxu0 0.0
  %246 = vmatprep.subr.mxu0 0.0
  %247 = vmatpush1.msra.mxu0 0.0
  %248 = vmatprep.subr.mxu0 0.0
  %249 = vmatpush1.msra.mxu0 0.0
  %250 = vmatprep.subr.mxu0 0.0
  %251 = vmatpush1.msra.mxu0 0.0
  %252 = vmatprep.mubr.f32.mxu0 0.0
  %253 = vmatmul.mubr.f32.gmra.mrb[0].mxu0 %v145
  %v254 = vpop.f32.mrb[0].mxu0
  %v255 = vadd.f32 0.0, %v254
  %v256 = vpop.f32.mrb[0].mxu0
  %257 = vmatprep.mubr.f32.mxu0 0.0
  %258 = vmatmul.mubr.f32.gmra.mrb[0].mxu0 %v146
  %v259 = vpop.f32.mrb[0].mxu0
  %v260 = vadd.f32 0.0, %v259
  %v261 = vpop.f32.mrb[0].mxu0
  %262 = vdwg.mxu0
  %263 = vmatprep.subr.mxu0 0.0
  %264 = vmatpush1.msra.mxu0 %v156
  %265 = vmatprep.subr.mxu0 0.0
  %266 = vmatpush1.msra.mxu0 %v157
  %267 = vmatprep.subr.mxu0 0.0
  %268 = vmatpush1.msra.mxu0 %v158
  %269 = vmatprep.subr.mxu0 0.0
  %270 = vmatpush1.msra.mxu0 %v159
  %271 = vmatprep.subr.mxu0 0.0
  %272 = vmatpush1.msra.mxu0 %v160
  %273 = vmatprep.subr.mxu0 0.0
  %274 = vmatpush1.msra.mxu0 %v161
  %275 = vmatprep.subr.mxu0 0.0
  %276 = vmatpush1.msra.mxu0 %v162
  %277 = vmatprep.subr.mxu0 0.0
  %278 = vmatpush1.msra.mxu0 %v163
  %279 = vmatprep.subr.mxu0 0.0
  %280 = vmatpush1.msra.mxu0 %v164
  %281 = vmatprep.subr.mxu0 0.0
  %282 = vmatpush1.msra.mxu0 %v165
  %283 = vmatprep.subr.mxu0 0.0
  %284 = vmatpush1.msra.mxu0 %v166
  %285 = vmatprep.subr.mxu0 0.0
  %286 = vmatpush1.msra.mxu0 %v167
  %287 = vmatprep.subr.mxu0 0.0
  %288 = vmatpush1.msra.mxu0 %v168
  %289 = vmatprep.subr.mxu0 0.0
  %290 = vmatpush1.msra.mxu0 %v169
  %291 = vmatprep.subr.mxu0 0.0
  %292 = vmatpush1.msra.mxu0 %v170
  %293 = vmatprep.subr.mxu0 0.0
  %294 = vmatpush1.msra.mxu0 %v171
  %295 = vmatprep.subr.mxu0 0.0
  %296 = vmatpush1.msra.mxu0 0.0
  %297 = vmatprep.subr.mxu0 0.0
  %298 = vmatpush1.msra.mxu0 0.0
  %299 = vmatprep.subr.mxu0 0.0
  %300 = vmatpush1.msra.mxu0 0.0
  %301 = vmatprep.subr.mxu0 0.0
  %302 = vmatpush1.msra.mxu0 0.0
  %303 = vmatprep.subr.mxu0 0.0
  %304 = vmatpush1.msra.mxu0 0.0
  %305 = vmatprep.subr.mxu0 0.0
  %306 = vmatpush1.msra.mxu0 0.0
  %307 = vmatprep.subr.mxu0 0.0
  %308 = vmatpush1.msra.mxu0 0.0
  %309 = vmatprep.subr.mxu0 0.0
  %310 = vmatpush1.msra.mxu0 0.0
  %311 = vmatprep.subr.mxu0 0.0
  %312 = vmatpush1.msra.mxu0 0.0
  %313 = vmatprep.subr.mxu0 0.0
  %314 = vmatpush1.msra.mxu0 0.0
  %315 = vmatprep.subr.mxu0 0.0
  %316 = vmatpush1.msra.mxu0 0.0
  %317 = vmatprep.subr.mxu0 0.0
  %318 = vmatpush1.msra.mxu0 0.0
  %319 = vmatprep.subr.mxu0 0.0
  %320 = vmatpush1.msra.mxu0 0.0
  %321 = vmatprep.subr.mxu0 0.0
  %322 = vmatpush1.msra.mxu0 0.0
  %323 = vmatprep.subr.mxu0 0.0
  %324 = vmatpush1.msra.mxu0 0.0
  %325 = vmatprep.subr.mxu0 0.0
  %326 = vmatpush1.msra.mxu0 0.0
  %327 = vmatprep.mubr.f32.mxu0 0.0
  %328 = vmatmul.mubr.f32.gmra.mrb[0].mxu0 %v130
  %v329 = vpop.f32.mrb[0].mxu0
  %v330 = vadd.f32 %v255, %v329
  %v331 = vpop.f32.mrb[0].mxu0
  %332 = vmatprep.mubr.f32.mxu0 0.0
  %333 = vmatmul.mubr.f32.gmra.mrb[0].mxu0 %v131
  %v334 = vpop.f32.mrb[0].mxu0
  %v335 = vadd.f32 %v260, %v334
  %v336 = vpop.f32.mrb[0].mxu0
  %337 = vdwg.mxu0
  %s338 = scalar_lea.vmem %s1, 256
  %v339 = vld [vmem:[%s338] sm:$0xff]
  %v340 = vld [vmem:[%s338 + $0x8] sm:$0xff]
  %v341 = vld [vmem:[%s338 + $0x10] sm:$0xff]
  %v342 = vld [vmem:[%s338 + $0x18] sm:$0xff]
  %v343 = vld [vmem:[%s338 + $0x20] sm:$0xff]
  %v344 = vld [vmem:[%s338 + $0x28] sm:$0xff]
  %v345 = vld [vmem:[%s338 + $0x30] sm:$0xff]
  %v346 = vld [vmem:[%s338 + $0x38] sm:$0xff]
  %v347 = vld [vmem:[%s338 + $0x40] sm:$0xff]
  %v348 = vld [vmem:[%s338 + $0x48] sm:$0xff]
  %v349 = vld [vmem:[%s338 + $0x50] sm:$0xff]
  %v350 = vld [vmem:[%s338 + $0x58] sm:$0xff]
  %v351 = vld [vmem:[%s338 + $0x60] sm:$0xff]
  %v352 = vld [vmem:[%s338 + $0x68] sm:$0xff]
  %v353 = vld [vmem:[%s338 + $0x70] sm:$0xff]
  %v354 = vld [vmem:[%s338 + $0x78] sm:$0xff]
  %355 = vmatprep.subr.mxu0 0.0
  %356 = vmatpush1.msra.mxu0 %v339
  %357 = vmatprep.subr.mxu0 0.0
  %358 = vmatpush1.msra.mxu0 %v340
  %359 = vmatprep.subr.mxu0 0.0
  %360 = vmatpush1.msra.mxu0 %v341
  %361 = vmatprep.subr.mxu0 0.0
  %362 = vmatpush1.msra.mxu0 %v342
  %363 = vmatprep.subr.mxu0 0.0
  %364 = vmatpush1.msra.mxu0 %v343
  %365 = vmatprep.subr.mxu0 0.0
  %366 = vmatpush1.msra.mxu0 %v344
  %367 = vmatprep.subr.mxu0 0.0
  %368 = vmatpush1.msra.mxu0 %v345
  %369 = vmatprep.subr.mxu0 0.0
  %370 = vmatpush1.msra.mxu0 %v346
  %371 = vmatprep.subr.mxu0 0.0
  %372 = vmatpush1.msra.mxu0 %v347
  %373 = vmatprep.subr.mxu0 0.0
  %374 = vmatpush1.msra.mxu0 %v348
  %375 = vmatprep.subr.mxu0 0.0
  %376 = vmatpush1.msra.mxu0 %v349
  %377 = vmatprep.subr.mxu0 0.0
  %378 = vmatpush1.msra.mxu0 %v350
  %379 = vmatprep.subr.mxu0 0.0
  %380 = vmatpush1.msra.mxu0 %v351
  %381 = vmatprep.subr.mxu0 0.0
  %382 = vmatpush1.msra.mxu0 %v352
  %383 = vmatprep.subr.mxu0 0.0
  %384 = vmatpush1.msra.mxu0 %v353
  %385 = vmatprep.subr.mxu0 0.0
  %386 = vmatpush1.msra.mxu0 %v354
  %387 = vmatprep.subr.mxu0 0.0
  %388 = vmatpush1.msra.mxu0 0.0
  %389 = vmatprep.subr.mxu0 0.0
  %390 = vmatpush1.msra.mxu0 0.0
  %391 = vmatprep.subr.mxu0 0.0
  %392 = vmatpush1.msra.mxu0 0.0
  %393 = vmatprep.subr.mxu0 0.0
  %394 = vmatpush1.msra.mxu0 0.0
  %395 = vmatprep.subr.mxu0 0.0
  %396 = vmatpush1.msra.mxu0 0.0
  %397 = vmatprep.subr.mxu0 0.0
  %398 = vmatpush1.msra.mxu0 0.0
  %399 = vmatprep.subr.mxu0 0.0
  %400 = vmatpush1.msra.mxu0 0.0
  %401 = vmatprep.subr.mxu0 0.0
  %402 = vmatpush1.msra.mxu0 0.0
  %403 = vmatprep.subr.mxu0 0.0
  %404 = vmatpush1.msra.mxu0 0.0
  %405 = vmatprep.subr.mxu0 0.0
  %406 = vmatpush1.msra.mxu0 0.0
  %407 = vmatprep.subr.mxu0 0.0
  %408 = vmatpush1.msra.mxu0 0.0
  %409 = vmatprep.subr.mxu0 0.0
  %410 = vmatpush1.msra.mxu0 0.0
  %411 = vmatprep.subr.mxu0 0.0
  %412 = vmatpush1.msra.mxu0 0.0
  %413 = vmatprep.subr.mxu0 0.0
  %414 = vmatpush1.msra.mxu0 0.0
  %415 = vmatprep.subr.mxu0 0.0
  %416 = vmatpush1.msra.mxu0 0.0
  %417 = vmatprep.subr.mxu0 0.0
  %418 = vmatpush1.msra.mxu0 0.0
  %419 = vmatprep.mubr.f32.mxu0 0.0
  %420 = vmatmul.mubr.f32.gmra.mrb[0].mxu0 %v153
  %v421 = vpop.f32.mrb[0].mxu0
  %v422 = vadd.f32 0.0, %v421
  %v423 = vpop.f32.mrb[0].mxu0
  %424 = vmatprep.mubr.f32.mxu0 0.0
  %425 = vmatmul.mubr.f32.gmra.mrb[0].mxu0 %v154
  %v426 = vpop.f32.mrb[0].mxu0
  %v427 = vadd.f32 0.0, %v426
  %v428 = vpop.f32.mrb[0].mxu0
  %429 = vdwg.mxu0
  %v430 = vadd.f32 %v330, %v422
  %v431 = vadd.f32 %v335, %v427
  %v432 = vld [vmem:[%s2] sm:$0x1]
  %v434 = vlaneseq
  %v435 = vshrl.u32 %v434, 7
  %v436 = vsub.s32 0, %v435
  %v437 = vrot.slane %v432, %v436
  %v439 = vadd.f32 %v430, %v437
  %v440 = vadd.f32 %v431, %v437
  %v441 = vadd.f32 %v439, %v440
  %v442 = vrot.slane %v441, 4
  %v443 = vadd.f32 %v441, %v442
  %v444 = vrot.slane %v443, 2
  %v445 = vadd.f32 %v443, %v444
  %v446 = vrot.slane %v445, 1
  %v447 = vadd.f32 %v445, %v446
  %v448 = vmul.f32 %v447, 0.0625
  %v449 = vmul.f32 %v439, %v439
  %v450 = vmul.f32 %v440, %v440
  %v451 = vadd.f32 %v449, %v450
  %v452 = vrot.slane %v451, 4
  %v453 = vadd.f32 %v451, %v452
  %v454 = vrot.slane %v453, 2
  %v455 = vadd.f32 %v453, %v454
  %v456 = vrot.slane %v455, 1
  %v457 = vadd.f32 %v455, %v456
  %v458 = vmul.f32 %v457, 0.0625
  %v459 = vmul.f32 %v448, %v448
  %v460 = vsub.f32 %v458, %v459
  %v461 = vmax.f32 %v460, 0.0
  %v462 = vld [vmem:[%s7] sm:$0x1]
  %v463 = vadd.f32 %v461, 1e-05
  %v464 = vrsqrt.pop %v463
  %v465 = vmul.f32 %v462, %v464
  %v467 = vlaneseq
  %v468 = vshrl.u32 %v467, 7
  %v469 = vsub.s32 0, %v468
  %v470 = vrot.slane %v465, %v469
  %v472 = vmul.f32 %v439, %v470
  %v473 = vmul.f32 %v440, %v470
  %v474 = vld [vmem:[%s8] sm:$0x1]
  %v475 = vmul.f32 %v448, %v465
  %v476 = vsub.f32 %v474, %v475
  %v478 = vlaneseq
  %v479 = vshrl.u32 %v478, 7
  %v480 = vsub.s32 0, %v479
  %v481 = vrot.slane %v476, %v480
  %v483 = vadd.f32 %v472, %v481
  %v484 = vadd.f32 %v473, %v481
  %v485 = vmax.f32 %v483, 0.0
  %v486 = vmax.f32 %v484, 0.0
  %v489 = vrot.slane %v485, 7
  %v490 = vrot.slane %v486, 7
  %v491 = vsel %vm134, %v489, %v490
  %v494 = vsel %vm134, 0.0, %v489
  %v495 = vsel %vm143, %v494, 0.0
  %v496 = vsel %vm144, %v491, 0.0
  %v497 = vrot.slane %v485, 1
  %v498 = vrot.slane %v486, 1
  %v499 = vsel %vm69, %v497, %v498
  %v502 = vsel %vm69, %v498, 0.0
  %v503 = vsel %vm78, %v499, 0.0
  %v504 = vsel %vm79, %v502, 0.0
  %s505 = scalar_lea.vmem %s5, 128
  %v506 = vld [vmem:[%s505] sm:$0xff]
  %v507 = vld [vmem:[%s505 + $0x8] sm:$0xff]
  %v508 = vld [vmem:[%s505 + $0x10] sm:$0xff]
  %v509 = vld [vmem:[%s505 + $0x18] sm:$0xff]
  %v510 = vld [vmem:[%s505 + $0x20] sm:$0xff]
  %v511 = vld [vmem:[%s505 + $0x28] sm:$0xff]
  %v512 = vld [vmem:[%s505 + $0x30] sm:$0xff]
  %v513 = vld [vmem:[%s505 + $0x38] sm:$0xff]
  %v514 = vld [vmem:[%s505 + $0x40] sm:$0xff]
  %v515 = vld [vmem:[%s505 + $0x48] sm:$0xff]
  %v516 = vld [vmem:[%s505 + $0x50] sm:$0xff]
  %v517 = vld [vmem:[%s505 + $0x58] sm:$0xff]
  %v518 = vld [vmem:[%s505 + $0x60] sm:$0xff]
  %v519 = vld [vmem:[%s505 + $0x68] sm:$0xff]
  %v520 = vld [vmem:[%s505 + $0x70] sm:$0xff]
  %v521 = vld [vmem:[%s505 + $0x78] sm:$0xff]
  %v522 = vld [vmem:[%s5] sm:$0xff]
  %v523 = vld [vmem:[%s5 + $0x8] sm:$0xff]
  %v524 = vld [vmem:[%s5 + $0x10] sm:$0xff]
  %v525 = vld [vmem:[%s5 + $0x18] sm:$0xff]
  %v526 = vld [vmem:[%s5 + $0x20] sm:$0xff]
  %v527 = vld [vmem:[%s5 + $0x28] sm:$0xff]
  %v528 = vld [vmem:[%s5 + $0x30] sm:$0xff]
  %v529 = vld [vmem:[%s5 + $0x38] sm:$0xff]
  %v530 = vld [vmem:[%s5 + $0x40] sm:$0xff]
  %v531 = vld [vmem:[%s5 + $0x48] sm:$0xff]
  %v532 = vld [vmem:[%s5 + $0x50] sm:$0xff]
  %v533 = vld [vmem:[%s5 + $0x58] sm:$0xff]
  %v534 = vld [vmem:[%s5 + $0x60] sm:$0xff]
  %v535 = vld [vmem:[%s5 + $0x68] sm:$0xff]
  %v536 = vld [vmem:[%s5 + $0x70] sm:$0xff]
  %v537 = vld [vmem:[%s5 + $0x78] sm:$0xff]
  %538 = vmatprep.subr.mxu0 0.0
  %539 = vmatpush1.msra.mxu0 %v522
  %540 = vmatprep.subr.mxu0 0.0
  %541 = vmatpush1.msra.mxu0 %v523
  %542 = vmatprep.subr.mxu0 0.0
  %543 = vmatpush1.msra.mxu0 %v524
  %544 = vmatprep.subr.mxu0 0.0
  %545 = vmatpush1.msra.mxu0 %v525
  %546 = vmatprep.subr.mxu0 0.0
  %547 = vmatpush1.msra.mxu0 %v526
  %548 = vmatprep.subr.mxu0 0.0
  %549 = vmatpush1.msra.mxu0 %v527
  %550 = vmatprep.subr.mxu0 0.0
  %551 = vmatpush1.msra.mxu0 %v528
  %552 = vmatprep.subr.mxu0 0.0
  %553 = vmatpush1.msra.mxu0 %v529
  %554 = vmatprep.subr.mxu0 0.0
  %555 = vmatpush1.msra.mxu0 %v530
  %556 = vmatprep.subr.mxu0 0.0
  %557 = vmatpush1.msra.mxu0 %v531
  %558 = vmatprep.subr.mxu0 0.0
  %559 = vmatpush1.msra.mxu0 %v532
  %560 = vmatprep.subr.mxu0 0.0
  %561 = vmatpush1.msra.mxu0 %v533
  %562 = vmatprep.subr.mxu0 0.0
  %563 = vmatpush1.msra.mxu0 %v534
  %564 = vmatprep.subr.mxu0 0.0
  %565 = vmatpush1.msra.mxu0 %v535
  %566 = vmatprep.subr.mxu0 0.0
  %567 = vmatpush1.msra.mxu0 %v536
  %568 = vmatprep.subr.mxu0 0.0
  %569 = vmatpush1.msra.mxu0 %v537
  %570 = vmatprep.subr.mxu0 0.0
  %571 = vmatpush1.msra.mxu0 0.0
  %572 = vmatprep.subr.mxu0 0.0
  %573 = vmatpush1.msra.mxu0 0.0
  %574 = vmatprep.subr.mxu0 0.0
  %575 = vmatpush1.msra.mxu0 0.0
  %576 = vmatprep.subr.mxu0 0.0
  %577 = vmatpush1.msra.mxu0 0.0
  %578 = vmatprep.subr.mxu0 0.0
  %579 = vmatpush1.msra.mxu0 0.0
  %580 = vmatprep.subr.mxu0 0.0
  %581 = vmatpush1.msra.mxu0 0.0
  %582 = vmatprep.subr.mxu0 0.0
  %583 = vmatpush1.msra.mxu0 0.0
  %584 = vmatprep.subr.mxu0 0.0
  %585 = vmatpush1.msra.mxu0 0.0
  %586 = vmatprep.subr.mxu0 0.0
  %587 = vmatpush1.msra.mxu0 0.0
  %588 = vmatprep.subr.mxu0 0.0
  %589 = vmatpush1.msra.mxu0 0.0
  %590 = vmatprep.subr.mxu0 0.0
  %591 = vmatpush1.msra.mxu0 0.0
  %592 = vmatprep.subr.mxu0 0.0
  %593 = vmatpush1.msra.mxu0 0.0
  %594 = vmatprep.subr.mxu0 0.0
  %595 = vmatpush1.msra.mxu0 0.0
  %596 = vmatprep.subr.mxu0 0.0
  %597 = vmatpush1.msra.mxu0 0.0
  %598 = vmatprep.subr.mxu0 0.0
  %599 = vmatpush1.msra.mxu0 0.0
  %600 = vmatprep.subr.mxu0 0.0
  %601 = vmatpush1.msra.mxu0 0.0
  %602 = vmatprep.mubr.f32.mxu0 0.0
  %603 = vmatmul.mubr.f32.gmra.mrb[0].mxu0 %v495
  %v604 = vpop.f32.mrb[0].mxu0
  %v605 = vadd.f32 0.0, %v604
  %v606 = vpop.f32.mrb[0].mxu0
  %607 = vmatprep.mubr.f32.mxu0 0.0
  %608 = vmatmul.mubr.f32.gmra.mrb[0].mxu0 %v496
  %v609 = vpop.f32.mrb[0].mxu0
  %v610 = vadd.f32 0.0, %v609
  %v611 = vpop.f32.mrb[0].mxu0
  %612 = vdwg.mxu0
  %613 = vmatprep.subr.mxu0 0.0
  %614 = vmatpush1.msra.mxu0 %v506
  %615 = vmatprep.subr.mxu0 0.0
  %616 = vmatpush1.msra.mxu0 %v507
  %617 = vmatprep.subr.mxu0 0.0
  %618 = vmatpush1.msra.mxu0 %v508
  %619 = vmatprep.subr.mxu0 0.0
  %620 = vmatpush1.msra.mxu0 %v509
  %621 = vmatprep.subr.mxu0 0.0
  %622 = vmatpush1.msra.mxu0 %v510
  %623 = vmatprep.subr.mxu0 0.0
  %624 = vmatpush1.msra.mxu0 %v511
  %625 = vmatprep.subr.mxu0 0.0
  %626 = vmatpush1.msra.mxu0 %v512
  %627 = vmatprep.subr.mxu0 0.0
  %628 = vmatpush1.msra.mxu0 %v513
  %629 = vmatprep.subr.mxu0 0.0
  %630 = vmatpush1.msra.mxu0 %v514
  %631 = vmatprep.subr.mxu0 0.0
  %632 = vmatpush1.msra.mxu0 %v515
  %633 = vmatprep.subr.mxu0 0.0
  %634 = vmatpush1.msra.mxu0 %v516
  %635 = vmatprep.subr.mxu0 0.0
  %636 = vmatpush1.msra.mxu0 %v517
  %637 = vmatprep.subr.mxu0 0.0
  %638 = vmatpush1.msra.mxu0 %v518
  %639 = vmatprep.subr.mxu0 0.0
  %640 = vmatpush1.msra.mxu0 %v519
  %641 = vmatprep.subr.mxu0 0.0
  %642 = vmatpush1.msra.mxu0 %v520
  %643 = vmatprep.subr.mxu0 0.0
  %644 = vmatpush1.msra.mxu0 %v521
  %645 = vmatprep.subr.mxu0 0.0
  %646 = vmatpush1.msra.mxu0 0.0
  %647 = vmatprep.subr.mxu0 0.0
  %648 = vmatpush1.msra.mxu0 0.0
  %649 = vmatprep.subr.mxu0 0.0
  %650 = vmatpush1.msra.mxu0 0.0
  %651 = vmatprep.subr.mxu0 0.0
  %652 = vmatpush1.msra.mxu0 0.0
  %653 = vmatprep.subr.mxu0 0.0
  %654 = vmatpush1.msra.mxu0 0.0
  %655 = vmatprep.subr.mxu0 0.0
  %656 = vmatpush1.msra.mxu0 0.0
  %657 = vmatprep.subr.mxu0 0.0
  %658 = vmatpush1.msra.mxu0 0.0
  %659 = vmatprep.subr.mxu0 0.0
  %660 = vmatpush1.msra.mxu0 0.0
  %661 = vmatprep.subr.mxu0 0.0
  %662 = vmatpush1.msra.mxu0 0.0
  %663 = vmatprep.subr.mxu0 0.0
  %664 = vmatpush1.msra.mxu0 0.0
  %665 = vmatprep.subr.mxu0 0.0
  %666 = vmatpush1.msra.mxu0 0.0
  %667 = vmatprep.subr.mxu0 0.0
  %668 = vmatpush1.msra.mxu0 0.0
  %669 = vmatprep.subr.mxu0 0.0
  %670 = vmatpush1.msra.mxu0 0.0
  %671 = vmatprep.subr.mxu0 0.0
  %672 = vmatpush1.msra.mxu0 0.0
  %673 = vmatprep.subr.mxu0 0.0
  %674 = vmatpush1.msra.mxu0 0.0
  %675 = vmatprep.subr.mxu0 0.0
  %676 = vmatpush1.msra.mxu0 0.0
  %677 = vmatprep.mubr.f32.mxu0 0.0
  %678 = vmatmul.mubr.f32.gmra.mrb[0].mxu0 %v485
  %v679 = vpop.f32.mrb[0].mxu0
  %v680 = vadd.f32 %v605, %v679
  %v681 = vpop.f32.mrb[0].mxu0
  %682 = vmatprep.mubr.f32.mxu0 0.0
  %683 = vmatmul.mubr.f32.gmra.mrb[0].mxu0 %v486
  %v684 = vpop.f32.mrb[0].mxu0
  %v685 = vadd.f32 %v610, %v684
  %v686 = vpop.f32.mrb[0].mxu0
  %687 = vdwg.mxu0
  %s688 = scalar_lea.vmem %s5, 256
  %v689 = vld [vmem:[%s688] sm:$0xff]
  %v690 = vld [vmem:[%s688 + $0x8] sm:$0xff]
  %v691 = vld [vmem:[%s688 + $0x10] sm:$0xff]
  %v692 = vld [vmem:[%s688 + $0x18] sm:$0xff]
  %v693 = vld [vmem:[%s688 + $0x20] sm:$0xff]
  %v694 = vld [vmem:[%s688 + $0x28] sm:$0xff]
  %v695 = vld [vmem:[%s688 + $0x30] sm:$0xff]
  %v696 = vld [vmem:[%s688 + $0x38] sm:$0xff]
  %v697 = vld [vmem:[%s688 + $0x40] sm:$0xff]
  %v698 = vld [vmem:[%s688 + $0x48] sm:$0xff]
  %v699 = vld [vmem:[%s688 + $0x50] sm:$0xff]
  %v700 = vld [vmem:[%s688 + $0x58] sm:$0xff]
  %v701 = vld [vmem:[%s688 + $0x60] sm:$0xff]
  %v702 = vld [vmem:[%s688 + $0x68] sm:$0xff]
  %v703 = vld [vmem:[%s688 + $0x70] sm:$0xff]
  %v704 = vld [vmem:[%s688 + $0x78] sm:$0xff]
  %705 = vmatprep.subr.mxu0 0.0
  %706 = vmatpush1.msra.mxu0 %v689
  %707 = vmatprep.subr.mxu0 0.0
  %708 = vmatpush1.msra.mxu0 %v690
  %709 = vmatprep.subr.mxu0 0.0
  %710 = vmatpush1.msra.mxu0 %v691
  %711 = vmatprep.subr.mxu0 0.0
  %712 = vmatpush1.msra.mxu0 %v692
  %713 = vmatprep.subr.mxu0 0.0
  %714 = vmatpush1.msra.mxu0 %v693
  %715 = vmatprep.subr.mxu0 0.0
  %716 = vmatpush1.msra.mxu0 %v694
  %717 = vmatprep.subr.mxu0 0.0
  %718 = vmatpush1.msra.mxu0 %v695
  %719 = vmatprep.subr.mxu0 0.0
  %720 = vmatpush1.msra.mxu0 %v696
  %721 = vmatprep.subr.mxu0 0.0
  %722 = vmatpush1.msra.mxu0 %v697
  %723 = vmatprep.subr.mxu0 0.0
  %724 = vmatpush1.msra.mxu0 %v698
  %725 = vmatprep.subr.mxu0 0.0
  %726 = vmatpush1.msra.mxu0 %v699
  %727 = vmatprep.subr.mxu0 0.0
  %728 = vmatpush1.msra.mxu0 %v700
  %729 = vmatprep.subr.mxu0 0.0
  %730 = vmatpush1.msra.mxu0 %v701
  %731 = vmatprep.subr.mxu0 0.0
  %732 = vmatpush1.msra.mxu0 %v702
  %733 = vmatprep.subr.mxu0 0.0
  %734 = vmatpush1.msra.mxu0 %v703
  %735 = vmatprep.subr.mxu0 0.0
  %736 = vmatpush1.msra.mxu0 %v704
  %737 = vmatprep.subr.mxu0 0.0
  %738 = vmatpush1.msra.mxu0 0.0
  %739 = vmatprep.subr.mxu0 0.0
  %740 = vmatpush1.msra.mxu0 0.0
  %741 = vmatprep.subr.mxu0 0.0
  %742 = vmatpush1.msra.mxu0 0.0
  %743 = vmatprep.subr.mxu0 0.0
  %744 = vmatpush1.msra.mxu0 0.0
  %745 = vmatprep.subr.mxu0 0.0
  %746 = vmatpush1.msra.mxu0 0.0
  %747 = vmatprep.subr.mxu0 0.0
  %748 = vmatpush1.msra.mxu0 0.0
  %749 = vmatprep.subr.mxu0 0.0
  %750 = vmatpush1.msra.mxu0 0.0
  %751 = vmatprep.subr.mxu0 0.0
  %752 = vmatpush1.msra.mxu0 0.0
  %753 = vmatprep.subr.mxu0 0.0
  %754 = vmatpush1.msra.mxu0 0.0
  %755 = vmatprep.subr.mxu0 0.0
  %756 = vmatpush1.msra.mxu0 0.0
  %757 = vmatprep.subr.mxu0 0.0
  %758 = vmatpush1.msra.mxu0 0.0
  %759 = vmatprep.subr.mxu0 0.0
  %760 = vmatpush1.msra.mxu0 0.0
  %761 = vmatprep.subr.mxu0 0.0
  %762 = vmatpush1.msra.mxu0 0.0
  %763 = vmatprep.subr.mxu0 0.0
  %764 = vmatpush1.msra.mxu0 0.0
  %765 = vmatprep.subr.mxu0 0.0
  %766 = vmatpush1.msra.mxu0 0.0
  %767 = vmatprep.subr.mxu0 0.0
  %768 = vmatpush1.msra.mxu0 0.0
  %769 = vmatprep.mubr.f32.mxu0 0.0
  %770 = vmatmul.mubr.f32.gmra.mrb[0].mxu0 %v503
  %v771 = vpop.f32.mrb[0].mxu0
  %v772 = vadd.f32 0.0, %v771
  %v773 = vpop.f32.mrb[0].mxu0
  %774 = vmatprep.mubr.f32.mxu0 0.0
  %775 = vmatmul.mubr.f32.gmra.mrb[0].mxu0 %v504
  %v776 = vpop.f32.mrb[0].mxu0
  %v777 = vadd.f32 0.0, %v776
  %v778 = vpop.f32.mrb[0].mxu0
  %779 = vdwg.mxu0
  %v780 = vadd.f32 %v680, %v772
  %v781 = vadd.f32 %v685, %v777
  %v782 = vld [vmem:[%s6] sm:$0x1]
  %v784 = vlaneseq
  %v785 = vshrl.u32 %v784, 7
  %v786 = vsub.s32 0, %v785
  %v787 = vrot.slane %v782, %v786
  %v789 = vadd.f32 %v780, %v787
  %v790 = vadd.f32 %v781, %v787
  %v791 = vadd.f32 %v789, %v84
  %v792 = vadd.f32 %v790, %v85
  %793 = vst [vmem:[%s9] sm:$0xff] %v791
  %794 = vst [vmem:[%s9 + $0x8] sm:$0xff] %v792
  // Predicated region
  $region38: #{dpcnn_forward.12} parent=0 // pred_check
    _
  $region39: #{dpcnn_forward.12} parent=0 // pred_check_branch
    %796 = sbr.rel (0) target = $region41
  $region40: #{dpcnn_forward.12} parent=0 // pred_region
    _
  $region41: #{dpcnn_forward.12} parent=0 // pred_fallthru
    _
  // Predicated region
  $region42: #{dpcnn_forward.12} parent=0 // pred_check
    _
  $region43: #{dpcnn_forward.12} parent=0 // pred_check_branch
    %798 = sbr.rel (0) target = $region45
  $region44: #{dpcnn_forward.12} parent=0 // pred_region
    _
  $region45: #{dpcnn_forward.12} parent=0 // pred_fallthru
    _

// kernel: dpcnn_forward.13
$region0: #{dpcnn_forward.13}
  #allocation0 [shape = 'u32[]', space=smem, size = 0x4, offset = 0x4, fixed_abs, tag = 'smem constant byte address 0x4 - core index']
  #allocation1 [shape = 'u32[144,128]{1,0:T(1,128)}', space=vmem, size = 0x12000, scoped, tag = 'internal scratch']
  %s0 = inlined_call_operand.vmem [shape: f32[8,256], index: 0, kind: input, shape index: {}]
  %s1 = inlined_call_operand.vmem [shape: f32[3,128,128], index: 1, kind: input, shape index: {}]
  %s2 = inlined_call_operand.vmem [shape: f32[1,128], index: 2, kind: input, shape index: {}]
  %s3 = inlined_call_operand.vmem [shape: f32[1,128], index: 3, kind: input, shape index: {}]
  %s4 = inlined_call_operand.vmem [shape: f32[1,128], index: 4, kind: input, shape index: {}]
  %s5 = inlined_call_operand.vmem [shape: f32[3,128,128], index: 5, kind: input, shape index: {}]
  %s6 = inlined_call_operand.vmem [shape: f32[1,128], index: 6, kind: input, shape index: {}]
  %s7 = inlined_call_operand.vmem [shape: f32[1,128], index: 7, kind: input, shape index: {}]
  %s8 = inlined_call_operand.vmem [shape: f32[1,128], index: 8, kind: input, shape index: {}]
  %s9 = inlined_call_operand.vmem [shape: f32[8,128], index: 9, kind: output, shape index: {}]
  %s10 = sld [smem:[#allocation0]]
  $region46: #{dpcnn_forward.13} parent=0
    _
  %s12 = ssub.s32 1, %s10
  %s13 = scalar_select 0, %s12, %s10
  // Predicated region
  $region2: #{dpcnn_forward.13} parent=0 // pred_check
    _
  $region3: #{dpcnn_forward.13} parent=0 // pred_check_branch
    %15 = sbr.rel (0) target = $region5
  $region4: #{dpcnn_forward.13} parent=0 // pred_region
    _
  $region5: #{dpcnn_forward.13} parent=0 // pred_fallthru
    _
  // Predicated region
  $region6: #{dpcnn_forward.13} parent=0 // pred_check
    _
  $region7: #{dpcnn_forward.13} parent=0 // pred_check_branch
    %17 = sbr.rel (0) target = $region9
  $region8: #{dpcnn_forward.13} parent=0 // pred_region
    _
  $region9: #{dpcnn_forward.13} parent=0 // pred_fallthru
    _
  // Predicated region
  $region10: #{dpcnn_forward.13} parent=0 // pred_check
    _
  $region11: #{dpcnn_forward.13} parent=0 // pred_check_branch
    %19 = sbr.rel (0) target = $region13
  $region12: #{dpcnn_forward.13} parent=0 // pred_region
    _
  $region13: #{dpcnn_forward.13} parent=0 // pred_fallthru
    _
  // Predicated region
  $region14: #{dpcnn_forward.13} parent=0 // pred_check
    _
  $region15: #{dpcnn_forward.13} parent=0 // pred_check_branch
    %21 = sbr.rel (0) target = $region17
  $region16: #{dpcnn_forward.13} parent=0 // pred_region
    _
  $region17: #{dpcnn_forward.13} parent=0 // pred_fallthru
    _
  // Predicated region
  $region18: #{dpcnn_forward.13} parent=0 // pred_check
    _
  $region19: #{dpcnn_forward.13} parent=0 // pred_check_branch
    %23 = sbr.rel (0) target = $region21
  $region20: #{dpcnn_forward.13} parent=0 // pred_region
    _
  $region21: #{dpcnn_forward.13} parent=0 // pred_fallthru
    _
  // Predicated region
  $region22: #{dpcnn_forward.13} parent=0 // pred_check
    _
  $region23: #{dpcnn_forward.13} parent=0 // pred_check_branch
    %25 = sbr.rel (0) target = $region25
  $region24: #{dpcnn_forward.13} parent=0 // pred_region
    _
  $region25: #{dpcnn_forward.13} parent=0 // pred_fallthru
    _
  // Predicated region
  $region26: #{dpcnn_forward.13} parent=0 // pred_check
    _
  $region27: #{dpcnn_forward.13} parent=0 // pred_check_branch
    %27 = sbr.rel (0) target = $region29
  $region28: #{dpcnn_forward.13} parent=0 // pred_region
    _
  $region29: #{dpcnn_forward.13} parent=0 // pred_fallthru
    _
  // Predicated region
  $region30: #{dpcnn_forward.13} parent=0 // pred_check
    _
  $region31: #{dpcnn_forward.13} parent=0 // pred_check_branch
    %29 = sbr.rel (0) target = $region33
  $region32: #{dpcnn_forward.13} parent=0 // pred_region
    _
  $region33: #{dpcnn_forward.13} parent=0 // pred_fallthru
    _
  // Predicated region
  $region34: #{dpcnn_forward.13} parent=0 // pred_check
    _
  $region35: #{dpcnn_forward.13} parent=0 // pred_check_branch
    %31 = sbr.rel (0) target = $region37
  $region36: #{dpcnn_forward.13} parent=0 // pred_region
    _
  $region37: #{dpcnn_forward.13} parent=0 // pred_fallthru
    _
  %v32 = vld [vmem:[%s0] sm:$0xff]
  %v33 = vld [vmem:[%s0 + $0x8] sm:$0xff]
  %v34 = vlaneseq
  %v35 = vshrl.u32 %v34, 7
  %vm36 = vcmp.lt.s32.totalorder %v35, 0
  %v37 = vsub.s32 0, %v35
  %v38 = vsel %vm36, %v37, %v35
  %v39 = vshrl.u32 %v38, 2
  %v40 = vand.u32 %v38, 3
  %v41 = vsub.s32 0, %v40
  %v42 = vsel %vm36, %v41, %v40
  %vm43 = vcmp.ne.s32.totalorder %v42, 0
  %vm44 = vcmp.lt.s32.totalorder %v42, 0
  %vm45 = vmand %vm44, %vm43
  %v46 = vadd.s32 %v42, 4
  %v47 = vsel %vm45, %v46, %v42
  %vm48 = vcmp.ne.s32.totalorder %v47, 0
  %vm49 = vcmp.ne.s32.totalorder %v47, 3
  %v51 = vrot.slane %v32, 1
  %vm53 = vcmask 1046528
  %v54 = vsel %vm53, %v51, 0.0
  %v55 = vsel %vm49, 1, 0
  %vm56 = vcmp.eq.s32.totalorder %v55, 1
  %v57 = vsel %vm56, %v54, 0.0
  %v58 = vmax.f32 %v32, %v33
  %v59 = vmax.f32 %v58, %v57
  %v60 = vrot.slane %v59, 4
  %v61 = vadd.f32 %v59, %v60
  %v62 = vrot.slane %v61, 2
  %v63 = vadd.f32 %v61, %v62
  %v64 = vrot.slane %v63, 1
  %v65 = vadd.f32 %v63, %v64
  %v66 = vmul.f32 %v65, 0.125
  %v67 = vmul.f32 %v59, %v59
  %v68 = vrot.slane %v67, 4
  %v69 = vadd.f32 %v67, %v68
  %v70 = vrot.slane %v69, 2
  %v71 = vadd.f32 %v69, %v70
  %v72 = vrot.slane %v71, 1
  %v73 = vadd.f32 %v71, %v72
  %v74 = vmul.f32 %v73, 0.125
  %v75 = vmul.f32 %v66, %v66
  %v76 = vsub.f32 %v74, %v75
  %v77 = vmax.f32 %v76, 0.0
  %v78 = vld [vmem:[%s3] sm:$0x1]
  %v79 = vadd.f32 %v77, 1e-05
  %v80 = vrsqrt.pop %v79
  %v81 = vmul.f32 %v78, %v80
  %v83 = vlaneseq
  %v84 = vshrl.u32 %v83, 7
  %v85 = vsub.s32 0, %v84
  %v86 = vrot.slane %v81, %v85
  %v88 = vmul.f32 %v59, %v86
  %v89 = vld [vmem:[%s4] sm:$0x1]
  %v90 = vmul.f32 %v66, %v81
  %v91 = vsub.f32 %v89, %v90
  %v93 = vlaneseq
  %v94 = vshrl.u32 %v93, 7
  %v95 = vsub.s32 0, %v94
  %v96 = vrot.slane %v91, %v95
  %v98 = vadd.f32 %v88, %v96
  %v99 = vmax.f32 %v98, 0.0
  %v101 = vrot.slane %v99, 7
  %vm103 = vcmask 1040384
  %v104 = vsel %vm103, 0.0, %v101
  %v105 = vsel %vm48, 1, 0
  %vm106 = vcmp.eq.s32.totalorder %v105, 1
  %v107 = vsel %vm106, %v104, 0.0
  %v108 = vrot.slane %v99, 1
  %v110 = vsel %vm53, %v108, 0.0
  %v111 = vsel %vm56, %v110, 0.0
  %s112 = scalar_lea.vmem %s1, 128
  %v113 = vld [vmem:[%s112] sm:$0xff]
  %v114 = vld [vmem:[%s112 + $0x8] sm:$0xff]
  %v115 = vld [vmem:[%s112 + $0x10] sm:$0xff]
  %v116 = vld [vmem:[%s112 + $0x18] sm:$0xff]
  %v117 = vld [vmem:[%s112 + $0x20] sm:$0xff]
  %v118 = vld [vmem:[%s112 + $0x28] sm:$0xff]
  %v119 = vld [vmem:[%s112 + $0x30] sm:$0xff]
  %v120 = vld [vmem:[%s112 + $0x38] sm:$0xff]
  %v121 = vld [vmem:[%s112 + $0x40] sm:$0xff]
  %v122 = vld [vmem:[%s112 + $0x48] sm:$0xff]
  %v123 = vld [vmem:[%s112 + $0x50] sm:$0xff]
  %v124 = vld [vmem:[%s112 + $0x58] sm:$0xff]
  %v125 = vld [vmem:[%s112 + $0x60] sm:$0xff]
  %v126 = vld [vmem:[%s112 + $0x68] sm:$0xff]
  %v127 = vld [vmem:[%s112 + $0x70] sm:$0xff]
  %v128 = vld [vmem:[%s112 + $0x78] sm:$0xff]
  %v129 = vld [vmem:[%s1] sm:$0xff]
  %v130 = vld [vmem:[%s1 + $0x8] sm:$0xff]
  %v131 = vld [vmem:[%s1 + $0x10] sm:$0xff]
  %v132 = vld [vmem:[%s1 + $0x18] sm:$0xff]
  %v133 = vld [vmem:[%s1 + $0x20] sm:$0xff]
  %v134 = vld [vmem:[%s1 + $0x28] sm:$0xff]
  %v135 = vld [vmem:[%s1 + $0x30] sm:$0xff]
  %v136 = vld [vmem:[%s1 + $0x38] sm:$0xff]
  %v137 = vld [vmem:[%s1 + $0x40] sm:$0xff]
  %v138 = vld [vmem:[%s1 + $0x48] sm:$0xff]
  %v139 = vld [vmem:[%s1 + $0x50] sm:$0xff]
  %v140 = vld [vmem:[%s1 + $0x58] sm:$0xff]
  %v141 = vld [vmem:[%s1 + $0x60] sm:$0xff]
  %v142 = vld [vmem:[%s1 + $0x68] sm:$0xff]
  %v143 = vld [vmem:[%s1 + $0x70] sm:$0xff]
  %v144 = vld [vmem:[%s1 + $0x78] sm:$0xff]
  %145 = vmatprep.subr.mxu0 0.0
  %146 = vmatpush1.msra.mxu0 %v129
  %147 = vmatprep.subr.mxu0 0.0
  %148 = vmatpush1.msra.mxu0 %v130
  %149 = vmatprep.subr.mxu0 0.0
  %150 = vmatpush1.msra.mxu0 %v131
  %151 = vmatprep.subr.mxu0 0.0
  %152 = vmatpush1.msra.mxu0 %v132
  %153 = vmatprep.subr.mxu0 0.0
  %154 = vmatpush1.msra.mxu0 %v133
  %155 = vmatprep.subr.mxu0 0.0
  %156 = vmatpush1.msra.mxu0 %v134
  %157 = vmatprep.subr.mxu0 0.0
  %158 = vmatpush1.msra.mxu0 %v135
  %159 = vmatprep.subr.mxu0 0.0
  %160 = vmatpush1.msra.mxu0 %v136
  %161 = vmatprep.subr.mxu0 0.0
  %162 = vmatpush1.msra.mxu0 %v137
  %163 = vmatprep.subr.mxu0 0.0
  %164 = vmatpush1.msra.mxu0 %v138
  %165 = vmatprep.subr.mxu0 0.0
  %166 = vmatpush1.msra.mxu0 %v139
  %167 = vmatprep.subr.mxu0 0.0
  %168 = vmatpush1.msra.mxu0 %v140
  %169 = vmatprep.subr.mxu0 0.0
  %170 = vmatpush1.msra.mxu0 %v141
  %171 = vmatprep.subr.mxu0 0.0
  %172 = vmatpush1.msra.mxu0 %v142
  %173 = vmatprep.subr.mxu0 0.0
  %174 = vmatpush1.msra.mxu0 %v143
  %175 = vmatprep.subr.mxu0 0.0
  %176 = vmatpush1.msra.mxu0 %v144
  %177 = vmatprep.subr.mxu0 0.0
  %178 = vmatpush1.msra.mxu0 0.0
  %179 = vmatprep.subr.mxu0 0.0
  %180 = vmatpush1.msra.mxu0 0.0
  %181 = vmatprep.subr.mxu0 0.0
  %182 = vmatpush1.msra.mxu0 0.0
  %183 = vmatprep.subr.mxu0 0.0
  %184 = vmatpush1.msra.mxu0 0.0
  %185 = vmatprep.subr.mxu0 0.0
  %186 = vmatpush1.msra.mxu0 0.0
  %187 = vmatprep.subr.mxu0 0.0
  %188 = vmatpush1.msra.mxu0 0.0
  %189 = vmatprep.subr.mxu0 0.0
  %190 = vmatpush1.msra.mxu0 0.0
  %191 = vmatprep.subr.mxu0 0.0
  %192 = vmatpush1.msra.mxu0 0.0
  %193 = vmatprep.subr.mxu0 0.0
  %194 = vmatpush1.msra.mxu0 0.0
  %195 = vmatprep.subr.mxu0 0.0
  %196 = vmatpush1.msra.mxu0 0.0
  %197 = vmatprep.subr.mxu0 0.0
  %198 = vmatpush1.msra.mxu0 0.0
  %199 = vmatprep.subr.mxu0 0.0
  %200 = vmatpush1.msra.mxu0 0.0
  %201 = vmatprep.subr.mxu0 0.0
  %202 = vmatpush1.msra.mxu0 0.0
  %203 = vmatprep.subr.mxu0 0.0
  %204 = vmatpush1.msra.mxu0 0.0
  %205 = vmatprep.subr.mxu0 0.0
  %206 = vmatpush1.msra.mxu0 0.0
  %207 = vmatprep.subr.mxu0 0.0
  %208 = vmatpush1.msra.mxu0 0.0
  %209 = vmatprep.mubr.f32.mxu0 0.0
  %210 = vmatmul.mubr.f32.gmra.mrb[0].mxu0 %v107
  %v211 = vpop.f32.mrb[0].mxu0
  %v212 = vadd.f32 0.0, %v211
  %v213 = vpop.f32.mrb[0].mxu0
  %214 = vdwg.mxu0
  %215 = vmatprep.subr.mxu0 0.0
  %216 = vmatpush1.msra.mxu0 %v113
  %217 = vmatprep.subr.mxu0 0.0
  %218 = vmatpush1.msra.mxu0 %v114
  %219 = vmatprep.subr.mxu0 0.0
  %220 = vmatpush1.msra.mxu0 %v115
  %221 = vmatprep.subr.mxu0 0.0
  %222 = vmatpush1.msra.mxu0 %v116
  %223 = vmatprep.subr.mxu0 0.0
  %224 = vmatpush1.msra.mxu0 %v117
  %225 = vmatprep.subr.mxu0 0.0
  %226 = vmatpush1.msra.mxu0 %v118
  %227 = vmatprep.subr.mxu0 0.0
  %228 = vmatpush1.msra.mxu0 %v119
  %229 = vmatprep.subr.mxu0 0.0
  %230 = vmatpush1.msra.mxu0 %v120
  %231 = vmatprep.subr.mxu0 0.0
  %232 = vmatpush1.msra.mxu0 %v121
  %233 = vmatprep.subr.mxu0 0.0
  %234 = vmatpush1.msra.mxu0 %v122
  %235 = vmatprep.subr.mxu0 0.0
  %236 = vmatpush1.msra.mxu0 %v123
  %237 = vmatprep.subr.mxu0 0.0
  %238 = vmatpush1.msra.mxu0 %v124
  %239 = vmatprep.subr.mxu0 0.0
  %240 = vmatpush1.msra.mxu0 %v125
  %241 = vmatprep.subr.mxu0 0.0
  %242 = vmatpush1.msra.mxu0 %v126
  %243 = vmatprep.subr.mxu0 0.0
  %244 = vmatpush1.msra.mxu0 %v127
  %245 = vmatprep.subr.mxu0 0.0
  %246 = vmatpush1.msra.mxu0 %v128
  %247 = vmatprep.subr.mxu0 0.0
  %248 = vmatpush1.msra.mxu0 0.0
  %249 = vmatprep.subr.mxu0 0.0
  %250 = vmatpush1.msra.mxu0 0.0
  %251 = vmatprep.subr.mxu0 0.0
  %252 = vmatpush1.msra.mxu0 0.0
  %253 = vmatprep.subr.mxu0 0.0
  %254 = vmatpush1.msra.mxu0 0.0
  %255 = vmatprep.subr.mxu0 0.0
  %256 = vmatpush1.msra.mxu0 0.0
  %257 = vmatprep.subr.mxu0 0.0
  %258 = vmatpush1.msra.mxu0 0.0
  %259 = vmatprep.subr.mxu0 0.0
  %260 = vmatpush1.msra.mxu0 0.0
  %261 = vmatprep.subr.mxu0 0.0
  %262 = vmatpush1.msra.mxu0 0.0
  %263 = vmatprep.subr.mxu0 0.0
  %264 = vmatpush1.msra.mxu0 0.0
  %265 = vmatprep.subr.mxu0 0.0
  %266 = vmatpush1.msra.mxu0 0.0
  %267 = vmatprep.subr.mxu0 0.0
  %268 = vmatpush1.msra.mxu0 0.0
  %269 = vmatprep.subr.mxu0 0.0
  %270 = vmatpush1.msra.mxu0 0.0
  %271 = vmatprep.subr.mxu0 0.0
  %272 = vmatpush1.msra.mxu0 0.0
  %273 = vmatprep.subr.mxu0 0.0
  %274 = vmatpush1.msra.mxu0 0.0
  %275 = vmatprep.subr.mxu0 0.0
  %276 = vmatpush1.msra.mxu0 0.0
  %277 = vmatprep.subr.mxu0 0.0
  %278 = vmatpush1.msra.mxu0 0.0
  %279 = vmatprep.mubr.f32.mxu0 0.0
  %280 = vmatmul.mubr.f32.gmra.mrb[0].mxu0 %v99
  %v281 = vpop.f32.mrb[0].mxu0
  %v282 = vadd.f32 %v212, %v281
  %v283 = vpop.f32.mrb[0].mxu0
  %284 = vdwg.mxu0
  %s285 = scalar_lea.vmem %s1, 256
  %v286 = vld [vmem:[%s285] sm:$0xff]
  %v287 = vld [vmem:[%s285 + $0x8] sm:$0xff]
  %v288 = vld [vmem:[%s285 + $0x10] sm:$0xff]
  %v289 = vld [vmem:[%s285 + $0x18] sm:$0xff]
  %v290 = vld [vmem:[%s285 + $0x20] sm:$0xff]
  %v291 = vld [vmem:[%s285 + $0x28] sm:$0xff]
  %v292 = vld [vmem:[%s285 + $0x30] sm:$0xff]
  %v293 = vld [vmem:[%s285 + $0x38] sm:$0xff]
  %v294 = vld [vmem:[%s285 + $0x40] sm:$0xff]
  %v295 = vld [vmem:[%s285 + $0x48] sm:$0xff]
  %v296 = vld [vmem:[%s285 + $0x50] sm:$0xff]
  %v297 = vld [vmem:[%s285 + $0x58] sm:$0xff]
  %v298 = vld [vmem:[%s285 + $0x60] sm:$0xff]
  %v299 = vld [vmem:[%s285 + $0x68] sm:$0xff]
  %v300 = vld [vmem:[%s285 + $0x70] sm:$0xff]
  %v301 = vld [vmem:[%s285 + $0x78] sm:$0xff]
  %302 = vmatprep.subr.mxu0 0.0
  %303 = vmatpush1.msra.mxu0 %v286
  %304 = vmatprep.subr.mxu0 0.0
  %305 = vmatpush1.msra.mxu0 %v287
  %306 = vmatprep.subr.mxu0 0.0
  %307 = vmatpush1.msra.mxu0 %v288
  %308 = vmatprep.subr.mxu0 0.0
  %309 = vmatpush1.msra.mxu0 %v289
  %310 = vmatprep.subr.mxu0 0.0
  %311 = vmatpush1.msra.mxu0 %v290
  %312 = vmatprep.subr.mxu0 0.0
  %313 = vmatpush1.msra.mxu0 %v291
  %314 = vmatprep.subr.mxu0 0.0
  %315 = vmatpush1.msra.mxu0 %v292
  %316 = vmatprep.subr.mxu0 0.0
  %317 = vmatpush1.msra.mxu0 %v293
  %318 = vmatprep.subr.mxu0 0.0
  %319 = vmatpush1.msra.mxu0 %v294
  %320 = vmatprep.subr.mxu0 0.0
  %321 = vmatpush1.msra.mxu0 %v295
  %322 = vmatprep.subr.mxu0 0.0
  %323 = vmatpush1.msra.mxu0 %v296
  %324 = vmatprep.subr.mxu0 0.0
  %325 = vmatpush1.msra.mxu0 %v297
  %326 = vmatprep.subr.mxu0 0.0
  %327 = vmatpush1.msra.mxu0 %v298
  %328 = vmatprep.subr.mxu0 0.0
  %329 = vmatpush1.msra.mxu0 %v299
  %330 = vmatprep.subr.mxu0 0.0
  %331 = vmatpush1.msra.mxu0 %v300
  %332 = vmatprep.subr.mxu0 0.0
  %333 = vmatpush1.msra.mxu0 %v301
  %334 = vmatprep.subr.mxu0 0.0
  %335 = vmatpush1.msra.mxu0 0.0
  %336 = vmatprep.subr.mxu0 0.0
  %337 = vmatpush1.msra.mxu0 0.0
  %338 = vmatprep.subr.mxu0 0.0
  %339 = vmatpush1.msra.mxu0 0.0
  %340 = vmatprep.subr.mxu0 0.0
  %341 = vmatpush1.msra.mxu0 0.0
  %342 = vmatprep.subr.mxu0 0.0
  %343 = vmatpush1.msra.mxu0 0.0
  %344 = vmatprep.subr.mxu0 0.0
  %345 = vmatpush1.msra.mxu0 0.0
  %346 = vmatprep.subr.mxu0 0.0
  %347 = vmatpush1.msra.mxu0 0.0
  %348 = vmatprep.subr.mxu0 0.0
  %349 = vmatpush1.msra.mxu0 0.0
  %350 = vmatprep.subr.mxu0 0.0
  %351 = vmatpush1.msra.mxu0 0.0
  %352 = vmatprep.subr.mxu0 0.0
  %353 = vmatpush1.msra.mxu0 0.0
  %354 = vmatprep.subr.mxu0 0.0
  %355 = vmatpush1.msra.mxu0 0.0
  %356 = vmatprep.subr.mxu0 0.0
  %357 = vmatpush1.msra.mxu0 0.0
  %358 = vmatprep.subr.mxu0 0.0
  %359 = vmatpush1.msra.mxu0 0.0
  %360 = vmatprep.subr.mxu0 0.0
  %361 = vmatpush1.msra.mxu0 0.0
  %362 = vmatprep.subr.mxu0 0.0
  %363 = vmatpush1.msra.mxu0 0.0
  %364 = vmatprep.subr.mxu0 0.0
  %365 = vmatpush1.msra.mxu0 0.0
  %366 = vmatprep.mubr.f32.mxu0 0.0
  %367 = vmatmul.mubr.f32.gmra.mrb[0].mxu0 %v111
  %v368 = vpop.f32.mrb[0].mxu0
  %v369 = vadd.f32 0.0, %v368
  %v370 = vpop.f32.mrb[0].mxu0
  %371 = vdwg.mxu0
  %v372 = vadd.f32 %v282, %v369
  %v373 = vld [vmem:[%s2] sm:$0x1]
  %v375 = vlaneseq
  %v376 = vshrl.u32 %v375, 7
  %v377 = vsub.s32 0, %v376
  %v378 = vrot.slane %v373, %v377
  %v380 = vadd.f32 %v372, %v378
  %v381 = vrot.slane %v380, 4
  %v382 = vadd.f32 %v380, %v381
  %v383 = vrot.slane %v382, 2
  %v384 = vadd.f32 %v382, %v383
  %v385 = vrot.slane %v384, 1
  %v386 = vadd.f32 %v384, %v385
  %v387 = vmul.f32 %v386, 0.125
  %v388 = vmul.f32 %v380, %v380
  %v389 = vrot.slane %v388, 4
  %v390 = vadd.f32 %v388, %v389
  %v391 = vrot.slane %v390, 2
  %v392 = vadd.f32 %v390, %v391
  %v393 = vrot.slane %v392, 1
  %v394 = vadd.f32 %v392, %v393
  %v395 = vmul.f32 %v394, 0.125
  %v396 = vmul.f32 %v387, %v387
  %v397 = vsub.f32 %v395, %v396
  %v398 = vmax.f32 %v397, 0.0
  %v399 = vld [vmem:[%s7] sm:$0x1]
  %v400 = vadd.f32 %v398, 1e-05
  %v401 = vrsqrt.pop %v400
  %v402 = vmul.f32 %v399, %v401
  %v404 = vlaneseq
  %v405 = vshrl.u32 %v404, 7
  %v406 = vsub.s32 0, %v405
  %v407 = vrot.slane %v402, %v406
  %v409 = vmul.f32 %v380, %v407
  %v410 = vld [vmem:[%s8] sm:$0x1]
  %v411 = vmul.f32 %v387, %v402
  %v412 = vsub.f32 %v410, %v411
  %v414 = vlaneseq
  %v415 = vshrl.u32 %v414, 7
  %v416 = vsub.s32 0, %v415
  %v417 = vrot.slane %v412, %v416
  %v419 = vadd.f32 %v409, %v417
  %v420 = vmax.f32 %v419, 0.0
  %v422 = vrot.slane %v420, 7
  %v424 = vsel %vm103, 0.0, %v422
  %v425 = vsel %vm106, %v424, 0.0
  %v426 = vrot.slane %v420, 1
  %v428 = vsel %vm53, %v426, 0.0
  %v429 = vsel %vm56, %v428, 0.0
  %s430 = scalar_lea.vmem %s5, 128
  %v431 = vld [vmem:[%s430] sm:$0xff]
  %v432 = vld [vmem:[%s430 + $0x8] sm:$0xff]
  %v433 = vld [vmem:[%s430 + $0x10] sm:$0xff]
  %v434 = vld [vmem:[%s430 + $0x18] sm:$0xff]
  %v435 = vld [vmem:[%s430 + $0x20] sm:$0xff]
  %v436 = vld [vmem:[%s430 + $0x28] sm:$0xff]
  %v437 = vld [vmem:[%s430 + $0x30] sm:$0xff]
  %v438 = vld [vmem:[%s430 + $0x38] sm:$0xff]
  %v439 = vld [vmem:[%s430 + $0x40] sm:$0xff]
  %v440 = vld [vmem:[%s430 + $0x48] sm:$0xff]
  %v441 = vld [vmem:[%s430 + $0x50] sm:$0xff]
  %v442 = vld [vmem:[%s430 + $0x58] sm:$0xff]
  %v443 = vld [vmem:[%s430 + $0x60] sm:$0xff]
  %v444 = vld [vmem:[%s430 + $0x68] sm:$0xff]
  %v445 = vld [vmem:[%s430 + $0x70] sm:$0xff]
  %v446 = vld [vmem:[%s430 + $0x78] sm:$0xff]
  %v447 = vld [vmem:[%s5] sm:$0xff]
  %v448 = vld [vmem:[%s5 + $0x8] sm:$0xff]
  %v449 = vld [vmem:[%s5 + $0x10] sm:$0xff]
  %v450 = vld [vmem:[%s5 + $0x18] sm:$0xff]
  %v451 = vld [vmem:[%s5 + $0x20] sm:$0xff]
  %v452 = vld [vmem:[%s5 + $0x28] sm:$0xff]
  %v453 = vld [vmem:[%s5 + $0x30] sm:$0xff]
  %v454 = vld [vmem:[%s5 + $0x38] sm:$0xff]
  %v455 = vld [vmem:[%s5 + $0x40] sm:$0xff]
  %v456 = vld [vmem:[%s5 + $0x48] sm:$0xff]
  %v457 = vld [vmem:[%s5 + $0x50] sm:$0xff]
  %v458 = vld [vmem:[%s5 + $0x58] sm:$0xff]
  %v459 = vld [vmem:[%s5 + $0x60] sm:$0xff]
  %v460 = vld [vmem:[%s5 + $0x68] sm:$0xff]
  %v461 = vld [vmem:[%s5 + $0x70] sm:$0xff]
  %v462 = vld [vmem:[%s5 + $0x78] sm:$0xff]
  %463 = vmatprep.subr.mxu0 0.0
  %464 = vmatpush1.msra.mxu0 %v447
  %465 = vmatprep.subr.mxu0 0.0
  %466 = vmatpush1.msra.mxu0 %v448
  %467 = vmatprep.subr.mxu0 0.0
  %468 = vmatpush1.msra.mxu0 %v449
  %469 = vmatprep.subr.mxu0 0.0
  %470 = vmatpush1.msra.mxu0 %v450
  %471 = vmatprep.subr.mxu0 0.0
  %472 = vmatpush1.msra.mxu0 %v451
  %473 = vmatprep.subr.mxu0 0.0
  %474 = vmatpush1.msra.mxu0 %v452
  %475 = vmatprep.subr.mxu0 0.0
  %476 = vmatpush1.msra.mxu0 %v453
  %477 = vmatprep.subr.mxu0 0.0
  %478 = vmatpush1.msra.mxu0 %v454
  %479 = vmatprep.subr.mxu0 0.0
  %480 = vmatpush1.msra.mxu0 %v455
  %481 = vmatprep.subr.mxu0 0.0
  %482 = vmatpush1.msra.mxu0 %v456
  %483 = vmatprep.subr.mxu0 0.0
  %484 = vmatpush1.msra.mxu0 %v457
  %485 = vmatprep.subr.mxu0 0.0
  %486 = vmatpush1.msra.mxu0 %v458
  %487 = vmatprep.subr.mxu0 0.0
  %488 = vmatpush1.msra.mxu0 %v459
  %489 = vmatprep.subr.mxu0 0.0
  %490 = vmatpush1.msra.mxu0 %v460
  %491 = vmatprep.subr.mxu0 0.0
  %492 = vmatpush1.msra.mxu0 %v461
  %493 = vmatprep.subr.mxu0 0.0
  %494 = vmatpush1.msra.mxu0 %v462
  %495 = vmatprep.subr.mxu0 0.0
  %496 = vmatpush1.msra.mxu0 0.0
  %497 = vmatprep.subr.mxu0 0.0
  %498 = vmatpush1.msra.mxu0 0.0
  %499 = vmatprep.subr.mxu0 0.0
  %500 = vmatpush1.msra.mxu0 0.0
  %501 = vmatprep.subr.mxu0 0.0
  %502 = vmatpush1.msra.mxu0 0.0
  %503 = vmatprep.subr.mxu0 0.0
  %504 = vmatpush1.msra.mxu0 0.0
  %505 = vmatprep.subr.mxu0 0.0
  %506 = vmatpush1.msra.mxu0 0.0
  %507 = vmatprep.subr.mxu0 0.0
  %508 = vmatpush1.msra.mxu0 0.0
  %509 = vmatprep.subr.mxu0 0.0
  %510 = vmatpush1.msra.mxu0 0.0
  %511 = vmatprep.subr.mxu0 0.0
  %512 = vmatpush1.msra.mxu0 0.0
  %513 = vmatprep.subr.mxu0 0.0
  %514 = vmatpush1.msra.mxu0 0.0
  %515 = vmatprep.subr.mxu0 0.0
  %516 = vmatpush1.msra.mxu0 0.0
  %517 = vmatprep.subr.mxu0 0.0
  %518 = vmatpush1.msra.mxu0 0.0
  %519 = vmatprep.subr.mxu0 0.0
  %520 = vmatpush1.msra.mxu0 0.0
  %521 = vmatprep.subr.mxu0 0.0
  %522 = vmatpush1.msra.mxu0 0.0
  %523 = vmatprep.subr.mxu0 0.0
  %524 = vmatpush1.msra.mxu0 0.0
  %525 = vmatprep.subr.mxu0 0.0
  %526 = vmatpush1.msra.mxu0 0.0
  %527 = vmatprep.mubr.f32.mxu0 0.0
  %528 = vmatmul.mubr.f32.gmra.mrb[0].mxu0 %v425
  %v529 = vpop.f32.mrb[0].mxu0
  %v530 = vadd.f32 0.0, %v529
  %v531 = vpop.f32.mrb[0].mxu0
  %532 = vdwg.mxu0
  %533 = vmatprep.subr.mxu0 0.0
  %534 = vmatpush1.msra.mxu0 %v431
  %535 = vmatprep.subr.mxu0 0.0
  %536 = vmatpush1.msra.mxu0 %v432
  %537 = vmatprep.subr.mxu0 0.0
  %538 = vmatpush1.msra.mxu0 %v433
  %539 = vmatprep.subr.mxu0 0.0
  %540 = vmatpush1.msra.mxu0 %v434
  %541 = vmatprep.subr.mxu0 0.0
  %542 = vmatpush1.msra.mxu0 %v435
  %543 = vmatprep.subr.mxu0 0.0
  %544 = vmatpush1.msra.mxu0 %v436
  %545 = vmatprep.subr.mxu0 0.0
  %546 = vmatpush1.msra.mxu0 %v437
  %547 = vmatprep.subr.mxu0 0.0
  %548 = vmatpush1.msra.mxu0 %v438
  %549 = vmatprep.subr.mxu0 0.0
  %550 = vmatpush1.msra.mxu0 %v439
  %551 = vmatprep.subr.mxu0 0.0
  %552 = vmatpush1.msra.mxu0 %v440
  %553 = vmatprep.subr.mxu0 0.0
  %554 = vmatpush1.msra.mxu0 %v441
  %555 = vmatprep.subr.mxu0 0.0
  %556 = vmatpush1.msra.mxu0 %v442
  %557 = vmatprep.subr.mxu0 0.0
  %558 = vmatpush1.msra.mxu0 %v443
  %559 = vmatprep.subr.mxu0 0.0
  %560 = vmatpush1.msra.mxu0 %v444
  %561 = vmatprep.subr.mxu0 0.0
  %562 = vmatpush1.msra.mxu0 %v445
  %563 = vmatprep.subr.mxu0 0.0
  %564 = vmatpush1.msra.mxu0 %v446
  %565 = vmatprep.subr.mxu0 0.0
  %566 = vmatpush1.msra.mxu0 0.0
  %567 = vmatprep.subr.mxu0 0.0
  %568 = vmatpush1.msra.mxu0 0.0
  %569 = vmatprep.subr.mxu0 0.0
  %570 = vmatpush1.msra.mxu0 0.0
  %571 = vmatprep.subr.mxu0 0.0
  %572 = vmatpush1.msra.mxu0 0.0
  %573 = vmatprep.subr.mxu0 0.0
  %574 = vmatpush1.msra.mxu0 0.0
  %575 = vmatprep.subr.mxu0 0.0
  %576 = vmatpush1.msra.mxu0 0.0
  %577 = vmatprep.subr.mxu0 0.0
  %578 = vmatpush1.msra.mxu0 0.0
  %579 = vmatprep.subr.mxu0 0.0
  %580 = vmatpush1.msra.mxu0 0.0
  %581 = vmatprep.subr.mxu0 0.0
  %582 = vmatpush1.msra.mxu0 0.0
  %583 = vmatprep.subr.mxu0 0.0
  %584 = vmatpush1.msra.mxu0 0.0
  %585 = vmatprep.subr.mxu0 0.0
  %586 = vmatpush1.msra.mxu0 0.0
  %587 = vmatprep.subr.mxu0 0.0
  %588 = vmatpush1.msra.mxu0 0.0
  %589 = vmatprep.subr.mxu0 0.0
  %590 = vmatpush1.msra.mxu0 0.0
  %591 = vmatprep.subr.mxu0 0.0
  %592 = vmatpush1.msra.mxu0 0.0
  %593 = vmatprep.subr.mxu0 0.0
  %594 = vmatpush1.msra.mxu0 0.0
  %595 = vmatprep.subr.mxu0 0.0
  %596 = vmatpush1.msra.mxu0 0.0
  %597 = vmatprep.mubr.f32.mxu0 0.0
  %598 = vmatmul.mubr.f32.gmra.mrb[0].mxu0 %v420
  %v599 = vpop.f32.mrb[0].mxu0
  %v600 = vadd.f32 %v530, %v599
  %v601 = vpop.f32.mrb[0].mxu0
  %602 = vdwg.mxu0
  %s603 = scalar_lea.vmem %s5, 256
  %v604 = vld [vmem:[%s603] sm:$0xff]
  %v605 = vld [vmem:[%s603 + $0x8] sm:$0xff]
  %v606 = vld [vmem:[%s603 + $0x10] sm:$0xff]
  %v607 = vld [vmem:[%s603 + $0x18] sm:$0xff]
  %v608 = vld [vmem:[%s603 + $0x20] sm:$0xff]
  %v609 = vld [vmem:[%s603 + $0x28] sm:$0xff]
  %v610 = vld [vmem:[%s603 + $0x30] sm:$0xff]
  %v611 = vld [vmem:[%s603 + $0x38] sm:$0xff]
  %v612 = vld [vmem:[%s603 + $0x40] sm:$0xff]
  %v613 = vld [vmem:[%s603 + $0x48] sm:$0xff]
  %v614 = vld [vmem:[%s603 + $0x50] sm:$0xff]
  %v615 = vld [vmem:[%s603 + $0x58] sm:$0xff]
  %v616 = vld [vmem:[%s603 + $0x60] sm:$0xff]
  %v617 = vld [vmem:[%s603 + $0x68] sm:$0xff]
  %v618 = vld [vmem:[%s603 + $0x70] sm:$0xff]
  %v619 = vld [vmem:[%s603 + $0x78] sm:$0xff]
  %620 = vmatprep.subr.mxu0 0.0
  %621 = vmatpush1.msra.mxu0 %v604
  %622 = vmatprep.subr.mxu0 0.0
  %623 = vmatpush1.msra.mxu0 %v605
  %624 = vmatprep.subr.mxu0 0.0
  %625 = vmatpush1.msra.mxu0 %v606
  %626 = vmatprep.subr.mxu0 0.0
  %627 = vmatpush1.msra.mxu0 %v607
  %628 = vmatprep.subr.mxu0 0.0
  %629 = vmatpush1.msra.mxu0 %v608
  %630 = vmatprep.subr.mxu0 0.0
  %631 = vmatpush1.msra.mxu0 %v609
  %632 = vmatprep.subr.mxu0 0.0
  %633 = vmatpush1.msra.mxu0 %v610
  %634 = vmatprep.subr.mxu0 0.0
  %635 = vmatpush1.msra.mxu0 %v611
  %636 = vmatprep.subr.mxu0 0.0
  %637 = vmatpush1.msra.mxu0 %v612
  %638 = vmatprep.subr.mxu0 0.0
  %639 = vmatpush1.msra.mxu0 %v613
  %640 = vmatprep.subr.mxu0 0.0
  %641 = vmatpush1.msra.mxu0 %v614
  %642 = vmatprep.subr.mxu0 0.0
  %643 = vmatpush1.msra.mxu0 %v615
  %644 = vmatprep.subr.mxu0 0.0
  %645 = vmatpush1.msra.mxu0 %v616
  %646 = vmatprep.subr.mxu0 0.0
  %647 = vmatpush1.msra.mxu0 %v617
  %648 = vmatprep.subr.mxu0 0.0
  %649 = vmatpush1.msra.mxu0 %v618
  %650 = vmatprep.subr.mxu0 0.0
  %651 = vmatpush1.msra.mxu0 %v619
  %652 = vmatprep.subr.mxu0 0.0
  %653 = vmatpush1.msra.mxu0 0.0
  %654 = vmatprep.subr.mxu0 0.0
  %655 = vmatpush1.msra.mxu0 0.0
  %656 = vmatprep.subr.mxu0 0.0
  %657 = vmatpush1.msra.mxu0 0.0
  %658 = vmatprep.subr.mxu0 0.0
  %659 = vmatpush1.msra.mxu0 0.0
  %660 = vmatprep.subr.mxu0 0.0
  %661 = vmatpush1.msra.mxu0 0.0
  %662 = vmatprep.subr.mxu0 0.0
  %663 = vmatpush1.msra.mxu0 0.0
  %664 = vmatprep.subr.mxu0 0.0
  %665 = vmatpush1.msra.mxu0 0.0
  %666 = vmatprep.subr.mxu0 0.0
  %667 = vmatpush1.msra.mxu0 0.0
  %668 = vmatprep.subr.mxu0 0.0
  %669 = vmatpush1.msra.mxu0 0.0
  %670 = vmatprep.subr.mxu0 0.0
  %671 = vmatpush1.msra.mxu0 0.0
  %672 = vmatprep.subr.mxu0 0.0
  %673 = vmatpush1.msra.mxu0 0.0
  %674 = vmatprep.subr.mxu0 0.0
  %675 = vmatpush1.msra.mxu0 0.0
  %676 = vmatprep.subr.mxu0 0.0
  %677 = vmatpush1.msra.mxu0 0.0
  %678 = vmatprep.subr.mxu0 0.0
  %679 = vmatpush1.msra.mxu0 0.0
  %680 = vmatprep.subr.mxu0 0.0
  %681 = vmatpush1.msra.mxu0 0.0
  %682 = vmatprep.subr.mxu0 0.0
  %683 = vmatpush1.msra.mxu0 0.0
  %684 = vmatprep.mubr.f32.mxu0 0.0
  %685 = vmatmul.mubr.f32.gmra.mrb[0].mxu0 %v429
  %v686 = vpop.f32.mrb[0].mxu0
  %v687 = vadd.f32 0.0, %v686
  %v688 = vpop.f32.mrb[0].mxu0
  %689 = vdwg.mxu0
  %v690 = vadd.f32 %v600, %v687
  %v691 = vld [vmem:[%s6] sm:$0x1]
  %v693 = vlaneseq
  %v694 = vshrl.u32 %v693, 7
  %v695 = vsub.s32 0, %v694
  %v696 = vrot.slane %v691, %v695
  %v698 = vadd.f32 %v690, %v696
  %v699 = vadd.f32 %v698, %v59
  %700 = vst [vmem:[%s9] sm:$0xff] %v699
  // Predicated region
  $region38: #{dpcnn_forward.13} parent=0 // pred_check
    _
  $region39: #{dpcnn_forward.13} parent=0 // pred_check_branch
    %702 = sbr.rel (0) target = $region41
  $region40: #{dpcnn_forward.13} parent=0 // pred_region
    _
  $region41: #{dpcnn_forward.13} parent=0 // pred_fallthru
    _
  // Predicated region
  $region42: #{dpcnn_forward.13} parent=0 // pred_check
    _
  $region43: #{dpcnn_forward.13} parent=0 // pred_check_branch
    %704 = sbr.rel (0) target = $region45
  $region44: #{dpcnn_forward.13} parent=0 // pred_region
    _
  $region45: #{dpcnn_forward.13} parent=0 // pred_fallthru
    _

// kernel: dpcnn_forward.14
$region0: #{dpcnn_forward.14}
  #allocation0 [shape = 'u32[]', space=smem, size = 0x4, offset = 0x4, fixed_abs, tag = 'smem constant byte address 0x4 - core index']
  #allocation1 [shape = 'u32[144,128]{1,0:T(1,128)}', space=vmem, size = 0x12000, scoped, tag = 'internal scratch']
  %s0 = inlined_call_operand.vmem [shape: f32[4,256], index: 0, kind: input, shape index: {}]
  %s1 = inlined_call_operand.vmem [shape: f32[3,128,128], index: 1, kind: input, shape index: {}]
  %s2 = inlined_call_operand.vmem [shape: f32[1,128], index: 2, kind: input, shape index: {}]
  %s3 = inlined_call_operand.vmem [shape: f32[1,128], index: 3, kind: input, shape index: {}]
  %s4 = inlined_call_operand.vmem [shape: f32[1,128], index: 4, kind: input, shape index: {}]
  %s5 = inlined_call_operand.vmem [shape: f32[3,128,128], index: 5, kind: input, shape index: {}]
  %s6 = inlined_call_operand.vmem [shape: f32[1,128], index: 6, kind: input, shape index: {}]
  %s7 = inlined_call_operand.vmem [shape: f32[1,128], index: 7, kind: input, shape index: {}]
  %s8 = inlined_call_operand.vmem [shape: f32[1,128], index: 8, kind: input, shape index: {}]
  %s9 = inlined_call_operand.vmem [shape: f32[4,128], index: 9, kind: output, shape index: {}]
  %s10 = sld [smem:[#allocation0]]
  $region46: #{dpcnn_forward.14} parent=0
    _
  %s12 = ssub.s32 1, %s10
  %s13 = scalar_select 0, %s12, %s10
  // Predicated region
  $region2: #{dpcnn_forward.14} parent=0 // pred_check
    _
  $region3: #{dpcnn_forward.14} parent=0 // pred_check_branch
    %15 = sbr.rel (0) target = $region5
  $region4: #{dpcnn_forward.14} parent=0 // pred_region
    _
  $region5: #{dpcnn_forward.14} parent=0 // pred_fallthru
    _
  // Predicated region
  $region6: #{dpcnn_forward.14} parent=0 // pred_check
    _
  $region7: #{dpcnn_forward.14} parent=0 // pred_check_branch
    %17 = sbr.rel (0) target = $region9
  $region8: #{dpcnn_forward.14} parent=0 // pred_region
    _
  $region9: #{dpcnn_forward.14} parent=0 // pred_fallthru
    _
  // Predicated region
  $region10: #{dpcnn_forward.14} parent=0 // pred_check
    _
  $region11: #{dpcnn_forward.14} parent=0 // pred_check_branch
    %19 = sbr.rel (0) target = $region13
  $region12: #{dpcnn_forward.14} parent=0 // pred_region
    _
  $region13: #{dpcnn_forward.14} parent=0 // pred_fallthru
    _
  // Predicated region
  $region14: #{dpcnn_forward.14} parent=0 // pred_check
    _
  $region15: #{dpcnn_forward.14} parent=0 // pred_check_branch
    %21 = sbr.rel (0) target = $region17
  $region16: #{dpcnn_forward.14} parent=0 // pred_region
    _
  $region17: #{dpcnn_forward.14} parent=0 // pred_fallthru
    _
  // Predicated region
  $region18: #{dpcnn_forward.14} parent=0 // pred_check
    _
  $region19: #{dpcnn_forward.14} parent=0 // pred_check_branch
    %23 = sbr.rel (0) target = $region21
  $region20: #{dpcnn_forward.14} parent=0 // pred_region
    _
  $region21: #{dpcnn_forward.14} parent=0 // pred_fallthru
    _
  // Predicated region
  $region22: #{dpcnn_forward.14} parent=0 // pred_check
    _
  $region23: #{dpcnn_forward.14} parent=0 // pred_check_branch
    %25 = sbr.rel (0) target = $region25
  $region24: #{dpcnn_forward.14} parent=0 // pred_region
    _
  $region25: #{dpcnn_forward.14} parent=0 // pred_fallthru
    _
  // Predicated region
  $region26: #{dpcnn_forward.14} parent=0 // pred_check
    _
  $region27: #{dpcnn_forward.14} parent=0 // pred_check_branch
    %27 = sbr.rel (0) target = $region29
  $region28: #{dpcnn_forward.14} parent=0 // pred_region
    _
  $region29: #{dpcnn_forward.14} parent=0 // pred_fallthru
    _
  // Predicated region
  $region30: #{dpcnn_forward.14} parent=0 // pred_check
    _
  $region31: #{dpcnn_forward.14} parent=0 // pred_check_branch
    %29 = sbr.rel (0) target = $region33
  $region32: #{dpcnn_forward.14} parent=0 // pred_region
    _
  $region33: #{dpcnn_forward.14} parent=0 // pred_fallthru
    _
  // Predicated region
  $region34: #{dpcnn_forward.14} parent=0 // pred_check
    _
  $region35: #{dpcnn_forward.14} parent=0 // pred_check_branch
    %31 = sbr.rel (0) target = $region37
  $region36: #{dpcnn_forward.14} parent=0 // pred_region
    _
  $region37: #{dpcnn_forward.14} parent=0 // pred_fallthru
    _
  %v32 = vld [vmem:[%s0] sm:$0xff]
  %v33 = vlaneseq
  %v34 = vshrl.u32 %v33, 7
  %vm35 = vcmp.lt.s32.totalorder %v34, 0
  %v36 = vsub.s32 0, %v34
  %v37 = vsel %vm35, %v36, %v34
  %v38 = vshrl.u32 %v37, 1
  %v39 = vand.u32 %v37, 1
  %v40 = vsub.s32 0, %v39
  %v41 = vsel %vm35, %v40, %v39
  %vm42 = vcmp.ne.s32.totalorder %v41, 0
  %vm43 = vcmp.lt.s32.totalorder %v41, 0
  %vm44 = vmand %vm43, %vm42
  %v45 = vadd.s32 %v41, 2
  %v46 = vsel %vm44, %v45, %v41
  %vm47 = vcmp.ne.s32.totalorder %v46, 0
  %vm48 = vcmp.ne.s32.totalorder %v46, 1
  %v50 = vrot.slane %v32, 1
  %vm52 = vcmask 1042432
  %v53 = vsel %vm52, %v50, 0.0
  %v54 = vsel %vm48, 1, 0
  %vm55 = vcmp.eq.s32.totalorder %v54, 1
  %v56 = vsel %vm55, %v53, 0.0
  %v57 = vrot.slane %v32, 4
  %v59 = vmax.f32 %v32, %v57
  %v60 = vmax.f32 %v59, %v56
  %vm61 = vcmask 1043456
  %v62 = vsel %vm61, %v60, 0.0
  %v63 = vrot.slane %v62, 4
  %v64 = vadd.f32 %v62, %v63
  %v65 = vrot.slane %v64, 2
  %v66 = vadd.f32 %v64, %v65
  %v67 = vrot.slane %v66, 1
  %v68 = vadd.f32 %v66, %v67
  %v69 = vmul.f32 %v68, 0.25
  %v70 = vmul.f32 %v60, %v60
  %v71 = vsel %vm61, %v70, 0.0
  %v72 = vrot.slane %v71, 4
  %v73 = vadd.f32 %v71, %v72
  %v74 = vrot.slane %v73, 2
  %v75 = vadd.f32 %v73, %v74
  %v76 = vrot.slane %v75, 1
  %v77 = vadd.f32 %v75, %v76
  %v78 = vmul.f32 %v77, 0.25
  %v79 = vmul.f32 %v69, %v69
  %v80 = vsub.f32 %v78, %v79
  %v81 = vmax.f32 %v80, 0.0
  %v82 = vld [vmem:[%s3] sm:$0x1]
  %v83 = vadd.f32 %v81, 1e-05
  %v84 = vrsqrt.pop %v83
  %v85 = vmul.f32 %v82, %v84
  %v87 = vlaneseq
  %v88 = vshrl.u32 %v87, 7
  %v89 = vsub.s32 0, %v88
  %v90 = vrot.slane %v85, %v89
  %v92 = vmul.f32 %v60, %v90
  %v93 = vld [vmem:[%s4] sm:$0x1]
  %v94 = vmul.f32 %v69, %v85
  %v95 = vsub.f32 %v93, %v94
  %v97 = vlaneseq
  %v98 = vshrl.u32 %v97, 7
  %v99 = vsub.s32 0, %v98
  %v100 = vrot.slane %v95, %v99
  %v102 = vadd.f32 %v92, %v100
  %v103 = vmax.f32 %v102, 0.0
  %v105 = vrot.slane %v103, 7
  %vm107 = vcmask 1040384
  %v108 = vsel %vm107, 0.0, %v105
  %v109 = vsel %vm47, 1, 0
  %vm110 = vcmp.eq.s32.totalorder %v109, 1
  %v111 = vsel %vm110, %v108, 0.0
  %v112 = vrot.slane %v103, 1
  %v114 = vsel %vm52, %v112, 0.0
  %v115 = vsel %vm55, %v114, 0.0
  %s116 = scalar_lea.vmem %s1, 128
  %v117 = vld [vmem:[%s116] sm:$0xff]
  %v118 = vld [vmem:[%s116 + $0x8] sm:$0xff]
  %v119 = vld [vmem:[%s116 + $0x10] sm:$0xff]
  %v120 = vld [vmem:[%s116 + $0x18] sm:$0xff]
  %v121 = vld [vmem:[%s116 + $0x20] sm:$0xff]
  %v122 = vld [vmem:[%s116 + $0x28] sm:$0xff]
  %v123 = vld [vmem:[%s116 + $0x30] sm:$0xff]
  %v124 = vld [vmem:[%s116 + $0x38] sm:$0xff]
  %v125 = vld [vmem:[%s116 + $0x40] sm:$0xff]
  %v126 = vld [vmem:[%s116 + $0x48] sm:$0xff]
  %v127 = vld [vmem:[%s116 + $0x50] sm:$0xff]
  %v128 = vld [vmem:[%s116 + $0x58] sm:$0xff]
  %v129 = vld [vmem:[%s116 + $0x60] sm:$0xff]
  %v130 = vld [vmem:[%s116 + $0x68] sm:$0xff]
  %v131 = vld [vmem:[%s116 + $0x70] sm:$0xff]
  %v132 = vld [vmem:[%s116 + $0x78] sm:$0xff]
  %v133 = vld [vmem:[%s1] sm:$0xff]
  %v134 = vld [vmem:[%s1 + $0x8] sm:$0xff]
  %v135 = vld [vmem:[%s1 + $0x10] sm:$0xff]
  %v136 = vld [vmem:[%s1 + $0x18] sm:$0xff]
  %v137 = vld [vmem:[%s1 + $0x20] sm:$0xff]
  %v138 = vld [vmem:[%s1 + $0x28] sm:$0xff]
  %v139 = vld [vmem:[%s1 + $0x30] sm:$0xff]
  %v140 = vld [vmem:[%s1 + $0x38] sm:$0xff]
  %v141 = vld [vmem:[%s1 + $0x40] sm:$0xff]
  %v142 = vld [vmem:[%s1 + $0x48] sm:$0xff]
  %v143 = vld [vmem:[%s1 + $0x50] sm:$0xff]
  %v144 = vld [vmem:[%s1 + $0x58] sm:$0xff]
  %v145 = vld [vmem:[%s1 + $0x60] sm:$0xff]
  %v146 = vld [vmem:[%s1 + $0x68] sm:$0xff]
  %v147 = vld [vmem:[%s1 + $0x70] sm:$0xff]
  %v148 = vld [vmem:[%s1 + $0x78] sm:$0xff]
  %149 = vmatprep.subr.mxu0 0.0
  %150 = vmatpush1.msra.mxu0 %v133
  %151 = vmatprep.subr.mxu0 0.0
  %152 = vmatpush1.msra.mxu0 %v134
  %153 = vmatprep.subr.mxu0 0.0
  %154 = vmatpush1.msra.mxu0 %v135
  %155 = vmatprep.subr.mxu0 0.0
  %156 = vmatpush1.msra.mxu0 %v136
  %157 = vmatprep.subr.mxu0 0.0
  %158 = vmatpush1.msra.mxu0 %v137
  %159 = vmatprep.subr.mxu0 0.0
  %160 = vmatpush1.msra.mxu0 %v138
  %161 = vmatprep.subr.mxu0 0.0
  %162 = vmatpush1.msra.mxu0 %v139
  %163 = vmatprep.subr.mxu0 0.0
  %164 = vmatpush1.msra.mxu0 %v140
  %165 = vmatprep.subr.mxu0 0.0
  %166 = vmatpush1.msra.mxu0 %v141
  %167 = vmatprep.subr.mxu0 0.0
  %168 = vmatpush1.msra.mxu0 %v142
  %169 = vmatprep.subr.mxu0 0.0
  %170 = vmatpush1.msra.mxu0 %v143
  %171 = vmatprep.subr.mxu0 0.0
  %172 = vmatpush1.msra.mxu0 %v144
  %173 = vmatprep.subr.mxu0 0.0
  %174 = vmatpush1.msra.mxu0 %v145
  %175 = vmatprep.subr.mxu0 0.0
  %176 = vmatpush1.msra.mxu0 %v146
  %177 = vmatprep.subr.mxu0 0.0
  %178 = vmatpush1.msra.mxu0 %v147
  %179 = vmatprep.subr.mxu0 0.0
  %180 = vmatpush1.msra.mxu0 %v148
  %181 = vmatprep.subr.mxu0 0.0
  %182 = vmatpush1.msra.mxu0 0.0
  %183 = vmatprep.subr.mxu0 0.0
  %184 = vmatpush1.msra.mxu0 0.0
  %185 = vmatprep.subr.mxu0 0.0
  %186 = vmatpush1.msra.mxu0 0.0
  %187 = vmatprep.subr.mxu0 0.0
  %188 = vmatpush1.msra.mxu0 0.0
  %189 = vmatprep.subr.mxu0 0.0
  %190 = vmatpush1.msra.mxu0 0.0
  %191 = vmatprep.subr.mxu0 0.0
  %192 = vmatpush1.msra.mxu0 0.0
  %193 = vmatprep.subr.mxu0 0.0
  %194 = vmatpush1.msra.mxu0 0.0
  %195 = vmatprep.subr.mxu0 0.0
  %196 = vmatpush1.msra.mxu0 0.0
  %197 = vmatprep.subr.mxu0 0.0
  %198 = vmatpush1.msra.mxu0 0.0
  %199 = vmatprep.subr.mxu0 0.0
  %200 = vmatpush1.msra.mxu0 0.0
  %201 = vmatprep.subr.mxu0 0.0
  %202 = vmatpush1.msra.mxu0 0.0
  %203 = vmatprep.subr.mxu0 0.0
  %204 = vmatpush1.msra.mxu0 0.0
  %205 = vmatprep.subr.mxu0 0.0
  %206 = vmatpush1.msra.mxu0 0.0
  %207 = vmatprep.subr.mxu0 0.0
  %208 = vmatpush1.msra.mxu0 0.0
  %209 = vmatprep.subr.mxu0 0.0
  %210 = vmatpush1.msra.mxu0 0.0
  %211 = vmatprep.subr.mxu0 0.0
  %212 = vmatpush1.msra.mxu0 0.0
  %213 = vmatprep.mubr.f32.mxu0 0.0
  %214 = vmatmul.mubr.f32.gmra.mrb[0].mxu0 %v111
  %v215 = vpop.f32.mrb[0].mxu0
  %v216 = vadd.f32 0.0, %v215
  %v217 = vpop.f32.mrb[0].mxu0
  %218 = vdwg.mxu0
  %219 = vmatprep.subr.mxu0 0.0
  %220 = vmatpush1.msra.mxu0 %v117
  %221 = vmatprep.subr.mxu0 0.0
  %222 = vmatpush1.msra.mxu0 %v118
  %223 = vmatprep.subr.mxu0 0.0
  %224 = vmatpush1.msra.mxu0 %v119
  %225 = vmatprep.subr.mxu0 0.0
  %226 = vmatpush1.msra.mxu0 %v120
  %227 = vmatprep.subr.mxu0 0.0
  %228 = vmatpush1.msra.mxu0 %v121
  %229 = vmatprep.subr.mxu0 0.0
  %230 = vmatpush1.msra.mxu0 %v122
  %231 = vmatprep.subr.mxu0 0.0
  %232 = vmatpush1.msra.mxu0 %v123
  %233 = vmatprep.subr.mxu0 0.0
  %234 = vmatpush1.msra.mxu0 %v124
  %235 = vmatprep.subr.mxu0 0.0
  %236 = vmatpush1.msra.mxu0 %v125
  %237 = vmatprep.subr.mxu0 0.0
  %238 = vmatpush1.msra.mxu0 %v126
  %239 = vmatprep.subr.mxu0 0.0
  %240 = vmatpush1.msra.mxu0 %v127
  %241 = vmatprep.subr.mxu0 0.0
  %242 = vmatpush1.msra.mxu0 %v128
  %243 = vmatprep.subr.mxu0 0.0
  %244 = vmatpush1.msra.mxu0 %v129
  %245 = vmatprep.subr.mxu0 0.0
  %246 = vmatpush1.msra.mxu0 %v130
  %247 = vmatprep.subr.mxu0 0.0
  %248 = vmatpush1.msra.mxu0 %v131
  %249 = vmatprep.subr.mxu0 0.0
  %250 = vmatpush1.msra.mxu0 %v132
  %251 = vmatprep.subr.mxu0 0.0
  %252 = vmatpush1.msra.mxu0 0.0
  %253 = vmatprep.subr.mxu0 0.0
  %254 = vmatpush1.msra.mxu0 0.0
  %255 = vmatprep.subr.mxu0 0.0
  %256 = vmatpush1.msra.mxu0 0.0
  %257 = vmatprep.subr.mxu0 0.0
  %258 = vmatpush1.msra.mxu0 0.0
  %259 = vmatprep.subr.mxu0 0.0
  %260 = vmatpush1.msra.mxu0 0.0
  %261 = vmatprep.subr.mxu0 0.0
  %262 = vmatpush1.msra.mxu0 0.0
  %263 = vmatprep.subr.mxu0 0.0
  %264 = vmatpush1.msra.mxu0 0.0
  %265 = vmatprep.subr.mxu0 0.0
  %266 = vmatpush1.msra.mxu0 0.0
  %267 = vmatprep.subr.mxu0 0.0
  %268 = vmatpush1.msra.mxu0 0.0
  %269 = vmatprep.subr.mxu0 0.0
  %270 = vmatpush1.msra.mxu0 0.0
  %271 = vmatprep.subr.mxu0 0.0
  %272 = vmatpush1.msra.mxu0 0.0
  %273 = vmatprep.subr.mxu0 0.0
  %274 = vmatpush1.msra.mxu0 0.0
  %275 = vmatprep.subr.mxu0 0.0
  %276 = vmatpush1.msra.mxu0 0.0
  %277 = vmatprep.subr.mxu0 0.0
  %278 = vmatpush1.msra.mxu0 0.0
  %279 = vmatprep.subr.mxu0 0.0
  %280 = vmatpush1.msra.mxu0 0.0
  %281 = vmatprep.subr.mxu0 0.0
  %282 = vmatpush1.msra.mxu0 0.0
  %283 = vmatprep.mubr.f32.mxu0 0.0
  %284 = vmatmul.mubr.f32.gmra.mrb[0].mxu0 %v103
  %v285 = vpop.f32.mrb[0].mxu0
  %v286 = vadd.f32 %v216, %v285
  %v287 = vpop.f32.mrb[0].mxu0
  %288 = vdwg.mxu0
  %s289 = scalar_lea.vmem %s1, 256
  %v290 = vld [vmem:[%s289] sm:$0xff]
  %v291 = vld [vmem:[%s289 + $0x8] sm:$0xff]
  %v292 = vld [vmem:[%s289 + $0x10] sm:$0xff]
  %v293 = vld [vmem:[%s289 + $0x18] sm:$0xff]
  %v294 = vld [vmem:[%s289 + $0x20] sm:$0xff]
  %v295 = vld [vmem:[%s289 + $0x28] sm:$0xff]
  %v296 = vld [vmem:[%s289 + $0x30] sm:$0xff]
  %v297 = vld [vmem:[%s289 + $0x38] sm:$0xff]
  %v298 = vld [vmem:[%s289 + $0x40] sm:$0xff]
  %v299 = vld [vmem:[%s289 + $0x48] sm:$0xff]
  %v300 = vld [vmem:[%s289 + $0x50] sm:$0xff]
  %v301 = vld [vmem:[%s289 + $0x58] sm:$0xff]
  %v302 = vld [vmem:[%s289 + $0x60] sm:$0xff]
  %v303 = vld [vmem:[%s289 + $0x68] sm:$0xff]
  %v304 = vld [vmem:[%s289 + $0x70] sm:$0xff]
  %v305 = vld [vmem:[%s289 + $0x78] sm:$0xff]
  %306 = vmatprep.subr.mxu0 0.0
  %307 = vmatpush1.msra.mxu0 %v290
  %308 = vmatprep.subr.mxu0 0.0
  %309 = vmatpush1.msra.mxu0 %v291
  %310 = vmatprep.subr.mxu0 0.0
  %311 = vmatpush1.msra.mxu0 %v292
  %312 = vmatprep.subr.mxu0 0.0
  %313 = vmatpush1.msra.mxu0 %v293
  %314 = vmatprep.subr.mxu0 0.0
  %315 = vmatpush1.msra.mxu0 %v294
  %316 = vmatprep.subr.mxu0 0.0
  %317 = vmatpush1.msra.mxu0 %v295
  %318 = vmatprep.subr.mxu0 0.0
  %319 = vmatpush1.msra.mxu0 %v296
  %320 = vmatprep.subr.mxu0 0.0
  %321 = vmatpush1.msra.mxu0 %v297
  %322 = vmatprep.subr.mxu0 0.0
  %323 = vmatpush1.msra.mxu0 %v298
  %324 = vmatprep.subr.mxu0 0.0
  %325 = vmatpush1.msra.mxu0 %v299
  %326 = vmatprep.subr.mxu0 0.0
  %327 = vmatpush1.msra.mxu0 %v300
  %328 = vmatprep.subr.mxu0 0.0
  %329 = vmatpush1.msra.mxu0 %v301
  %330 = vmatprep.subr.mxu0 0.0
  %331 = vmatpush1.msra.mxu0 %v302
  %332 = vmatprep.subr.mxu0 0.0
  %333 = vmatpush1.msra.mxu0 %v303
  %334 = vmatprep.subr.mxu0 0.0
  %335 = vmatpush1.msra.mxu0 %v304
  %336 = vmatprep.subr.mxu0 0.0
  %337 = vmatpush1.msra.mxu0 %v305
  %338 = vmatprep.subr.mxu0 0.0
  %339 = vmatpush1.msra.mxu0 0.0
  %340 = vmatprep.subr.mxu0 0.0
  %341 = vmatpush1.msra.mxu0 0.0
  %342 = vmatprep.subr.mxu0 0.0
  %343 = vmatpush1.msra.mxu0 0.0
  %344 = vmatprep.subr.mxu0 0.0
  %345 = vmatpush1.msra.mxu0 0.0
  %346 = vmatprep.subr.mxu0 0.0
  %347 = vmatpush1.msra.mxu0 0.0
  %348 = vmatprep.subr.mxu0 0.0
  %349 = vmatpush1.msra.mxu0 0.0
  %350 = vmatprep.subr.mxu0 0.0
  %351 = vmatpush1.msra.mxu0 0.0
  %352 = vmatprep.subr.mxu0 0.0
  %353 = vmatpush1.msra.mxu0 0.0
  %354 = vmatprep.subr.mxu0 0.0
  %355 = vmatpush1.msra.mxu0 0.0
  %356 = vmatprep.subr.mxu0 0.0
  %357 = vmatpush1.msra.mxu0 0.0
  %358 = vmatprep.subr.mxu0 0.0
  %359 = vmatpush1.msra.mxu0 0.0
  %360 = vmatprep.subr.mxu0 0.0
  %361 = vmatpush1.msra.mxu0 0.0
  %362 = vmatprep.subr.mxu0 0.0
  %363 = vmatpush1.msra.mxu0 0.0
  %364 = vmatprep.subr.mxu0 0.0
  %365 = vmatpush1.msra.mxu0 0.0
  %366 = vmatprep.subr.mxu0 0.0
  %367 = vmatpush1.msra.mxu0 0.0
  %368 = vmatprep.subr.mxu0 0.0
  %369 = vmatpush1.msra.mxu0 0.0
  %370 = vmatprep.mubr.f32.mxu0 0.0
  %371 = vmatmul.mubr.f32.gmra.mrb[0].mxu0 %v115
  %v372 = vpop.f32.mrb[0].mxu0
  %v373 = vadd.f32 0.0, %v372
  %v374 = vpop.f32.mrb[0].mxu0
  %375 = vdwg.mxu0
  %v376 = vadd.f32 %v286, %v373
  %v377 = vld [vmem:[%s2] sm:$0x1]
  %v379 = vlaneseq
  %v380 = vshrl.u32 %v379, 7
  %v381 = vsub.s32 0, %v380
  %v382 = vrot.slane %v377, %v381
  %v384 = vadd.f32 %v376, %v382
  %v385 = vsel %vm61, %v384, 0.0
  %v386 = vrot.slane %v385, 4
  %v387 = vadd.f32 %v385, %v386
  %v388 = vrot.slane %v387, 2
  %v389 = vadd.f32 %v387, %v388
  %v390 = vrot.slane %v389, 1
  %v391 = vadd.f32 %v389, %v390
  %v392 = vmul.f32 %v391, 0.25
  %v393 = vmul.f32 %v384, %v384
  %v394 = vsel %vm61, %v393, 0.0
  %v395 = vrot.slane %v394, 4
  %v396 = vadd.f32 %v394, %v395
  %v397 = vrot.slane %v396, 2
  %v398 = vadd.f32 %v396, %v397
  %v399 = vrot.slane %v398, 1
  %v400 = vadd.f32 %v398, %v399
  %v401 = vmul.f32 %v400, 0.25
  %v402 = vmul.f32 %v392, %v392
  %v403 = vsub.f32 %v401, %v402
  %v404 = vmax.f32 %v403, 0.0
  %v405 = vld [vmem:[%s7] sm:$0x1]
  %v406 = vadd.f32 %v404, 1e-05
  %v407 = vrsqrt.pop %v406
  %v408 = vmul.f32 %v405, %v407
  %v410 = vlaneseq
  %v411 = vshrl.u32 %v410, 7
  %v412 = vsub.s32 0, %v411
  %v413 = vrot.slane %v408, %v412
  %v415 = vmul.f32 %v384, %v413
  %v416 = vld [vmem:[%s8] sm:$0x1]
  %v417 = vmul.f32 %v392, %v408
  %v418 = vsub.f32 %v416, %v417
  %v420 = vlaneseq
  %v421 = vshrl.u32 %v420, 7
  %v422 = vsub.s32 0, %v421
  %v423 = vrot.slane %v418, %v422
  %v425 = vadd.f32 %v415, %v423
  %v426 = vmax.f32 %v425, 0.0
  %v428 = vrot.slane %v426, 7
  %v430 = vsel %vm107, 0.0, %v428
  %v431 = vsel %vm110, %v430, 0.0
  %v432 = vrot.slane %v426, 1
  %v434 = vsel %vm52, %v432, 0.0
  %v435 = vsel %vm55, %v434, 0.0
  %s436 = scalar_lea.vmem %s5, 128
  %v437 = vld [vmem:[%s436] sm:$0xff]
  %v438 = vld [vmem:[%s436 + $0x8] sm:$0xff]
  %v439 = vld [vmem:[%s436 + $0x10] sm:$0xff]
  %v440 = vld [vmem:[%s436 + $0x18] sm:$0xff]
  %v441 = vld [vmem:[%s436 + $0x20] sm:$0xff]
  %v442 = vld [vmem:[%s436 + $0x28] sm:$0xff]
  %v443 = vld [vmem:[%s436 + $0x30] sm:$0xff]
  %v444 = vld [vmem:[%s436 + $0x38] sm:$0xff]
  %v445 = vld [vmem:[%s436 + $0x40] sm:$0xff]
  %v446 = vld [vmem:[%s436 + $0x48] sm:$0xff]
  %v447 = vld [vmem:[%s436 + $0x50] sm:$0xff]
  %v448 = vld [vmem:[%s436 + $0x58] sm:$0xff]
  %v449 = vld [vmem:[%s436 + $0x60] sm:$0xff]
  %v450 = vld [vmem:[%s436 + $0x68] sm:$0xff]
  %v451 = vld [vmem:[%s436 + $0x70] sm:$0xff]
  %v452 = vld [vmem:[%s436 + $0x78] sm:$0xff]
  %v453 = vld [vmem:[%s5] sm:$0xff]
  %v454 = vld [vmem:[%s5 + $0x8] sm:$0xff]
  %v455 = vld [vmem:[%s5 + $0x10] sm:$0xff]
  %v456 = vld [vmem:[%s5 + $0x18] sm:$0xff]
  %v457 = vld [vmem:[%s5 + $0x20] sm:$0xff]
  %v458 = vld [vmem:[%s5 + $0x28] sm:$0xff]
  %v459 = vld [vmem:[%s5 + $0x30] sm:$0xff]
  %v460 = vld [vmem:[%s5 + $0x38] sm:$0xff]
  %v461 = vld [vmem:[%s5 + $0x40] sm:$0xff]
  %v462 = vld [vmem:[%s5 + $0x48] sm:$0xff]
  %v463 = vld [vmem:[%s5 + $0x50] sm:$0xff]
  %v464 = vld [vmem:[%s5 + $0x58] sm:$0xff]
  %v465 = vld [vmem:[%s5 + $0x60] sm:$0xff]
  %v466 = vld [vmem:[%s5 + $0x68] sm:$0xff]
  %v467 = vld [vmem:[%s5 + $0x70] sm:$0xff]
  %v468 = vld [vmem:[%s5 + $0x78] sm:$0xff]
  %469 = vmatprep.subr.mxu0 0.0
  %470 = vmatpush1.msra.mxu0 %v453
  %471 = vmatprep.subr.mxu0 0.0
  %472 = vmatpush1.msra.mxu0 %v454
  %473 = vmatprep.subr.mxu0 0.0
  %474 = vmatpush1.msra.mxu0 %v455
  %475 = vmatprep.subr.mxu0 0.0
  %476 = vmatpush1.msra.mxu0 %v456
  %477 = vmatprep.subr.mxu0 0.0
  %478 = vmatpush1.msra.mxu0 %v457
  %479 = vmatprep.subr.mxu0 0.0
  %480 = vmatpush1.msra.mxu0 %v458
  %481 = vmatprep.subr.mxu0 0.0
  %482 = vmatpush1.msra.mxu0 %v459
  %483 = vmatprep.subr.mxu0 0.0
  %484 = vmatpush1.msra.mxu0 %v460
  %485 = vmatprep.subr.mxu0 0.0
  %486 = vmatpush1.msra.mxu0 %v461
  %487 = vmatprep.subr.mxu0 0.0
  %488 = vmatpush1.msra.mxu0 %v462
  %489 = vmatprep.subr.mxu0 0.0
  %490 = vmatpush1.msra.mxu0 %v463
  %491 = vmatprep.subr.mxu0 0.0
  %492 = vmatpush1.msra.mxu0 %v464
  %493 = vmatprep.subr.mxu0 0.0
  %494 = vmatpush1.msra.mxu0 %v465
  %495 = vmatprep.subr.mxu0 0.0
  %496 = vmatpush1.msra.mxu0 %v466
  %497 = vmatprep.subr.mxu0 0.0
  %498 = vmatpush1.msra.mxu0 %v467
  %499 = vmatprep.subr.mxu0 0.0
  %500 = vmatpush1.msra.mxu0 %v468
  %501 = vmatprep.subr.mxu0 0.0
  %502 = vmatpush1.msra.mxu0 0.0
  %503 = vmatprep.subr.mxu0 0.0
  %504 = vmatpush1.msra.mxu0 0.0
  %505 = vmatprep.subr.mxu0 0.0
  %506 = vmatpush1.msra.mxu0 0.0
  %507 = vmatprep.subr.mxu0 0.0
  %508 = vmatpush1.msra.mxu0 0.0
  %509 = vmatprep.subr.mxu0 0.0
  %510 = vmatpush1.msra.mxu0 0.0
  %511 = vmatprep.subr.mxu0 0.0
  %512 = vmatpush1.msra.mxu0 0.0
  %513 = vmatprep.subr.mxu0 0.0
  %514 = vmatpush1.msra.mxu0 0.0
  %515 = vmatprep.subr.mxu0 0.0
  %516 = vmatpush1.msra.mxu0 0.0
  %517 = vmatprep.subr.mxu0 0.0
  %518 = vmatpush1.msra.mxu0 0.0
  %519 = vmatprep.subr.mxu0 0.0
  %520 = vmatpush1.msra.mxu0 0.0
  %521 = vmatprep.subr.mxu0 0.0
  %522 = vmatpush1.msra.mxu0 0.0
  %523 = vmatprep.subr.mxu0 0.0
  %524 = vmatpush1.msra.mxu0 0.0
  %525 = vmatprep.subr.mxu0 0.0
  %526 = vmatpush1.msra.mxu0 0.0
  %527 = vmatprep.subr.mxu0 0.0
  %528 = vmatpush1.msra.mxu0 0.0
  %529 = vmatprep.subr.mxu0 0.0
  %530 = vmatpush1.msra.mxu0 0.0
  %531 = vmatprep.subr.mxu0 0.0
  %532 = vmatpush1.msra.mxu0 0.0
  %533 = vmatprep.mubr.f32.mxu0 0.0
  %534 = vmatmul.mubr.f32.gmra.mrb[0].mxu0 %v431
  %v535 = vpop.f32.mrb[0].mxu0
  %v536 = vadd.f32 0.0, %v535
  %v537 = vpop.f32.mrb[0].mxu0
  %538 = vdwg.mxu0
  %539 = vmatprep.subr.mxu0 0.0
  %540 = vmatpush1.msra.mxu0 %v437
  %541 = vmatprep.subr.mxu0 0.0
  %542 = vmatpush1.msra.mxu0 %v438
  %543 = vmatprep.subr.mxu0 0.0
  %544 = vmatpush1.msra.mxu0 %v439
  %545 = vmatprep.subr.mxu0 0.0
  %546 = vmatpush1.msra.mxu0 %v440
  %547 = vmatprep.subr.mxu0 0.0
  %548 = vmatpush1.msra.mxu0 %v441
  %549 = vmatprep.subr.mxu0 0.0
  %550 = vmatpush1.msra.mxu0 %v442
  %551 = vmatprep.subr.mxu0 0.0
  %552 = vmatpush1.msra.mxu0 %v443
  %553 = vmatprep.subr.mxu0 0.0
  %554 = vmatpush1.msra.mxu0 %v444
  %555 = vmatprep.subr.mxu0 0.0
  %556 = vmatpush1.msra.mxu0 %v445
  %557 = vmatprep.subr.mxu0 0.0
  %558 = vmatpush1.msra.mxu0 %v446
  %559 = vmatprep.subr.mxu0 0.0
  %560 = vmatpush1.msra.mxu0 %v447
  %561 = vmatprep.subr.mxu0 0.0
  %562 = vmatpush1.msra.mxu0 %v448
  %563 = vmatprep.subr.mxu0 0.0
  %564 = vmatpush1.msra.mxu0 %v449
  %565 = vmatprep.subr.mxu0 0.0
  %566 = vmatpush1.msra.mxu0 %v450
  %567 = vmatprep.subr.mxu0 0.0
  %568 = vmatpush1.msra.mxu0 %v451
  %569 = vmatprep.subr.mxu0 0.0
  %570 = vmatpush1.msra.mxu0 %v452
  %571 = vmatprep.subr.mxu0 0.0
  %572 = vmatpush1.msra.mxu0 0.0
  %573 = vmatprep.subr.mxu0 0.0
  %574 = vmatpush1.msra.mxu0 0.0
  %575 = vmatprep.subr.mxu0 0.0
  %576 = vmatpush1.msra.mxu0 0.0
  %577 = vmatprep.subr.mxu0 0.0
  %578 = vmatpush1.msra.mxu0 0.0
  %579 = vmatprep.subr.mxu0 0.0
  %580 = vmatpush1.msra.mxu0 0.0
  %581 = vmatprep.subr.mxu0 0.0
  %582 = vmatpush1.msra.mxu0 0.0
  %583 = vmatprep.subr.mxu0 0.0
  %584 = vmatpush1.msra.mxu0 0.0
  %585 = vmatprep.subr.mxu0 0.0
  %586 = vmatpush1.msra.mxu0 0.0
  %587 = vmatprep.subr.mxu0 0.0
  %588 = vmatpush1.msra.mxu0 0.0
  %589 = vmatprep.subr.mxu0 0.0
  %590 = vmatpush1.msra.mxu0 0.0
  %591 = vmatprep.subr.mxu0 0.0
  %592 = vmatpush1.msra.mxu0 0.0
  %593 = vmatprep.subr.mxu0 0.0
  %594 = vmatpush1.msra.mxu0 0.0
  %595 = vmatprep.subr.mxu0 0.0
  %596 = vmatpush1.msra.mxu0 0.0
  %597 = vmatprep.subr.mxu0 0.0
  %598 = vmatpush1.msra.mxu0 0.0
  %599 = vmatprep.subr.mxu0 0.0
  %600 = vmatpush1.msra.mxu0 0.0
  %601 = vmatprep.subr.mxu0 0.0
  %602 = vmatpush1.msra.mxu0 0.0
  %603 = vmatprep.mubr.f32.mxu0 0.0
  %604 = vmatmul.mubr.f32.gmra.mrb[0].mxu0 %v426
  %v605 = vpop.f32.mrb[0].mxu0
  %v606 = vadd.f32 %v536, %v605
  %v607 = vpop.f32.mrb[0].mxu0
  %608 = vdwg.mxu0
  %s609 = scalar_lea.vmem %s5, 256
  %v610 = vld [vmem:[%s609] sm:$0xff]
  %v611 = vld [vmem:[%s609 + $0x8] sm:$0xff]
  %v612 = vld [vmem:[%s609 + $0x10] sm:$0xff]
  %v613 = vld [vmem:[%s609 + $0x18] sm:$0xff]
  %v614 = vld [vmem:[%s609 + $0x20] sm:$0xff]
  %v615 = vld [vmem:[%s609 + $0x28] sm:$0xff]
  %v616 = vld [vmem:[%s609 + $0x30] sm:$0xff]
  %v617 = vld [vmem:[%s609 + $0x38] sm:$0xff]
  %v618 = vld [vmem:[%s609 + $0x40] sm:$0xff]
  %v619 = vld [vmem:[%s609 + $0x48] sm:$0xff]
  %v620 = vld [vmem:[%s609 + $0x50] sm:$0xff]
  %v621 = vld [vmem:[%s609 + $0x58] sm:$0xff]
  %v622 = vld [vmem:[%s609 + $0x60] sm:$0xff]
  %v623 = vld [vmem:[%s609 + $0x68] sm:$0xff]
  %v624 = vld [vmem:[%s609 + $0x70] sm:$0xff]
  %v625 = vld [vmem:[%s609 + $0x78] sm:$0xff]
  %626 = vmatprep.subr.mxu0 0.0
  %627 = vmatpush1.msra.mxu0 %v610
  %628 = vmatprep.subr.mxu0 0.0
  %629 = vmatpush1.msra.mxu0 %v611
  %630 = vmatprep.subr.mxu0 0.0
  %631 = vmatpush1.msra.mxu0 %v612
  %632 = vmatprep.subr.mxu0 0.0
  %633 = vmatpush1.msra.mxu0 %v613
  %634 = vmatprep.subr.mxu0 0.0
  %635 = vmatpush1.msra.mxu0 %v614
  %636 = vmatprep.subr.mxu0 0.0
  %637 = vmatpush1.msra.mxu0 %v615
  %638 = vmatprep.subr.mxu0 0.0
  %639 = vmatpush1.msra.mxu0 %v616
  %640 = vmatprep.subr.mxu0 0.0
  %641 = vmatpush1.msra.mxu0 %v617
  %642 = vmatprep.subr.mxu0 0.0
  %643 = vmatpush1.msra.mxu0 %v618
  %644 = vmatprep.subr.mxu0 0.0
  %645 = vmatpush1.msra.mxu0 %v619
  %646 = vmatprep.subr.mxu0 0.0
  %647 = vmatpush1.msra.mxu0 %v620
  %648 = vmatprep.subr.mxu0 0.0
  %649 = vmatpush1.msra.mxu0 %v621
  %650 = vmatprep.subr.mxu0 0.0
  %651 = vmatpush1.msra.mxu0 %v622
  %652 = vmatprep.subr.mxu0 0.0
  %653 = vmatpush1.msra.mxu0 %v623
  %654 = vmatprep.subr.mxu0 0.0
  %655 = vmatpush1.msra.mxu0 %v624
  %656 = vmatprep.subr.mxu0 0.0
  %657 = vmatpush1.msra.mxu0 %v625
  %658 = vmatprep.subr.mxu0 0.0
  %659 = vmatpush1.msra.mxu0 0.0
  %660 = vmatprep.subr.mxu0 0.0
  %661 = vmatpush1.msra.mxu0 0.0
  %662 = vmatprep.subr.mxu0 0.0
  %663 = vmatpush1.msra.mxu0 0.0
  %664 = vmatprep.subr.mxu0 0.0
  %665 = vmatpush1.msra.mxu0 0.0
  %666 = vmatprep.subr.mxu0 0.0
  %667 = vmatpush1.msra.mxu0 0.0
  %668 = vmatprep.subr.mxu0 0.0
  %669 = vmatpush1.msra.mxu0 0.0
  %670 = vmatprep.subr.mxu0 0.0
  %671 = vmatpush1.msra.mxu0 0.0
  %672 = vmatprep.subr.mxu0 0.0
  %673 = vmatpush1.msra.mxu0 0.0
  %674 = vmatprep.subr.mxu0 0.0
  %675 = vmatpush1.msra.mxu0 0.0
  %676 = vmatprep.subr.mxu0 0.0
  %677 = vmatpush1.msra.mxu0 0.0
  %678 = vmatprep.subr.mxu0 0.0
  %679 = vmatpush1.msra.mxu0 0.0
  %680 = vmatprep.subr.mxu0 0.0
  %681 = vmatpush1.msra.mxu0 0.0
  %682 = vmatprep.subr.mxu0 0.0
  %683 = vmatpush1.msra.mxu0 0.0
  %684 = vmatprep.subr.mxu0 0.0
  %685 = vmatpush1.msra.mxu0 0.0
  %686 = vmatprep.subr.mxu0 0.0
  %687 = vmatpush1.msra.mxu0 0.0
  %688 = vmatprep.subr.mxu0 0.0
  %689 = vmatpush1.msra.mxu0 0.0
  %690 = vmatprep.mubr.f32.mxu0 0.0
  %691 = vmatmul.mubr.f32.gmra.mrb[0].mxu0 %v435
  %v692 = vpop.f32.mrb[0].mxu0
  %v693 = vadd.f32 0.0, %v692
  %v694 = vpop.f32.mrb[0].mxu0
  %695 = vdwg.mxu0
  %v696 = vadd.f32 %v606, %v693
  %v697 = vld [vmem:[%s6] sm:$0x1]
  %v699 = vlaneseq
  %v700 = vshrl.u32 %v699, 7
  %v701 = vsub.s32 0, %v700
  %v702 = vrot.slane %v697, %v701
  %v704 = vadd.f32 %v696, %v702
  %v705 = vadd.f32 %v704, %v60
  %706 = vst [vmem:[%s9] sm:$0xf] %v705
  // Predicated region
  $region38: #{dpcnn_forward.14} parent=0 // pred_check
    _
  $region39: #{dpcnn_forward.14} parent=0 // pred_check_branch
    %708 = sbr.rel (0) target = $region41
  $region40: #{dpcnn_forward.14} parent=0 // pred_region
    _
  $region41: #{dpcnn_forward.14} parent=0 // pred_fallthru
    _
  // Predicated region
  $region42: #{dpcnn_forward.14} parent=0 // pred_check
    _
  $region43: #{dpcnn_forward.14} parent=0 // pred_check_branch
    %710 = sbr.rel (0) target = $region45
  $region44: #{dpcnn_forward.14} parent=0 // pred_region
    _
  $region45: #{dpcnn_forward.14} parent=0 // pred_fallthru
    _

// kernel: dpcnn_forward.15
$region0: #{dpcnn_forward.15}
  #allocation0 [shape = 'u32[]', space=smem, size = 0x4, offset = 0x4, fixed_abs, tag = 'smem constant byte address 0x4 - core index']
  #allocation1 [shape = 'u32[144,128]{1,0:T(1,128)}', space=vmem, size = 0x12000, scoped, tag = 'internal scratch']
  %s0 = inlined_call_operand.vmem [shape: f32[2,256], index: 0, kind: input, shape index: {}]
  %s1 = inlined_call_operand.vmem [shape: f32[256,128], index: 1, kind: input, shape index: {}]
  %s2 = inlined_call_operand.vmem [shape: f32[1,128], index: 2, kind: input, shape index: {}]
  %s3 = inlined_call_operand.vmem [shape: f32[1,128], index: 3, kind: input, shape index: {}]
  %s4 = inlined_call_operand.vmem [shape: f32[1,128], index: 4, kind: input, shape index: {}]
  %s5 = inlined_call_operand.vmem [shape: f32[128,128], index: 5, kind: input, shape index: {}]
  %s6 = inlined_call_operand.vmem [shape: f32[1,128], index: 6, kind: input, shape index: {}]
  %s7 = inlined_call_operand.hbm [shape: f32[2,128], index: 7, kind: output, shape index: {}]
  %s8 = sld [smem:[#allocation0]]
  $region38: #{dpcnn_forward.15} parent=0
    _
  %s10 = ssub.s32 1, %s8
  %s11 = scalar_select 0, %s10, %s8
  $region1: #{dpcnn_forward.15} parent=0
    #allocation2 [shape = 'u8[1024]{0}', space=vmem, size = 0x400, scoped, tag = 'output window, operand 0, single buffered']
    #allocation3 [shape = 's32[1]{0}', space=sflag, size = 0x4, scoped, tag = 'scoped memory for dpcnn_forward.15']
    %12 = vsyncpa [#allocation3], 0
    // Predicated region
    $region2: #{dpcnn_forward.15} parent=1 // pred_check
      _
    $region3: #{dpcnn_forward.15} parent=1 // pred_check_branch
      %14 = sbr.rel (0) target = $region5
    $region4: #{dpcnn_forward.15} parent=1 // pred_region
      _
    $region5: #{dpcnn_forward.15} parent=1 // pred_fallthru
      _
    // Predicated region
    $region6: #{dpcnn_forward.15} parent=1 // pred_check
      _
    $region7: #{dpcnn_forward.15} parent=1 // pred_check_branch
      %16 = sbr.rel (0) target = $region9
    $region8: #{dpcnn_forward.15} parent=1 // pred_region
      _
    $region9: #{dpcnn_forward.15} parent=1 // pred_fallthru
      _
    // Predicated region
    $region10: #{dpcnn_forward.15} parent=1 // pred_check
      _
    $region11: #{dpcnn_forward.15} parent=1 // pred_check_branch
      %18 = sbr.rel (0) target = $region13
    $region12: #{dpcnn_forward.15} parent=1 // pred_region
      _
    $region13: #{dpcnn_forward.15} parent=1 // pred_fallthru
      _
    // Predicated region
    $region14: #{dpcnn_forward.15} parent=1 // pred_check
      _
    $region15: #{dpcnn_forward.15} parent=1 // pred_check_branch
      %20 = sbr.rel (0) target = $region17
    $region16: #{dpcnn_forward.15} parent=1 // pred_region
      _
    $region17: #{dpcnn_forward.15} parent=1 // pred_fallthru
      _
    // Predicated region
    $region18: #{dpcnn_forward.15} parent=1 // pred_check
      _
    $region19: #{dpcnn_forward.15} parent=1 // pred_check_branch
      %22 = sbr.rel (0) target = $region21
    $region20: #{dpcnn_forward.15} parent=1 // pred_region
      _
    $region21: #{dpcnn_forward.15} parent=1 // pred_fallthru
      _
    // Predicated region
    $region22: #{dpcnn_forward.15} parent=1 // pred_check
      _
    $region23: #{dpcnn_forward.15} parent=1 // pred_check_branch
      %24 = sbr.rel (0) target = $region25
    $region24: #{dpcnn_forward.15} parent=1 // pred_region
      _
    $region25: #{dpcnn_forward.15} parent=1 // pred_fallthru
      _
    // Predicated region
    $region26: #{dpcnn_forward.15} parent=1 // pred_check
      _
    $region27: #{dpcnn_forward.15} parent=1 // pred_check_branch
      %26 = sbr.rel (0) target = $region29
    $region28: #{dpcnn_forward.15} parent=1 // pred_region
      _
    $region29: #{dpcnn_forward.15} parent=1 // pred_fallthru
      _
    %v27 = vld [vmem:[%s0] sm:$0xf]
    %v28 = vld [vmem:[%s1] sm:$0xff]
    %v29 = vld [vmem:[%s1 + $0x8] sm:$0xff]
    %v30 = vld [vmem:[%s1 + $0x10] sm:$0xff]
    %v31 = vld [vmem:[%s1 + $0x18] sm:$0xff]
    %v32 = vld [vmem:[%s1 + $0x20] sm:$0xff]
    %v33 = vld [vmem:[%s1 + $0x28] sm:$0xff]
    %v34 = vld [vmem:[%s1 + $0x30] sm:$0xff]
    %v35 = vld [vmem:[%s1 + $0x38] sm:$0xff]
    %v36 = vld [vmem:[%s1 + $0x40] sm:$0xff]
    %v37 = vld [vmem:[%s1 + $0x48] sm:$0xff]
    %v38 = vld [vmem:[%s1 + $0x50] sm:$0xff]
    %v39 = vld [vmem:[%s1 + $0x58] sm:$0xff]
    %v40 = vld [vmem:[%s1 + $0x60] sm:$0xff]
    %v41 = vld [vmem:[%s1 + $0x68] sm:$0xff]
    %v42 = vld [vmem:[%s1 + $0x70] sm:$0xff]
    %v43 = vld [vmem:[%s1 + $0x78] sm:$0xff]
    %v44 = vld [vmem:[%s1 + $0x80] sm:$0xff]
    %v45 = vld [vmem:[%s1 + $0x88] sm:$0xff]
    %v46 = vld [vmem:[%s1 + $0x90] sm:$0xff]
    %v47 = vld [vmem:[%s1 + $0x98] sm:$0xff]
    %v48 = vld [vmem:[%s1 + $0xa0] sm:$0xff]
    %v49 = vld [vmem:[%s1 + $0xa8] sm:$0xff]
    %v50 = vld [vmem:[%s1 + $0xb0] sm:$0xff]
    %v51 = vld [vmem:[%s1 + $0xb8] sm:$0xff]
    %v52 = vld [vmem:[%s1 + $0xc0] sm:$0xff]
    %v53 = vld [vmem:[%s1 + $0xc8] sm:$0xff]
    %v54 = vld [vmem:[%s1 + $0xd0] sm:$0xff]
    %v55 = vld [vmem:[%s1 + $0xd8] sm:$0xff]
    %v56 = vld [vmem:[%s1 + $0xe0] sm:$0xff]
    %v57 = vld [vmem:[%s1 + $0xe8] sm:$0xff]
    %v58 = vld [vmem:[%s1 + $0xf0] sm:$0xff]
    %v59 = vld [vmem:[%s1 + $0xf8] sm:$0xff]
    %v60 = vld [vmem:[%s2] sm:$0x1]
    %v62 = vlaneseq
    %v63 = vshrl.u32 %v62, 7
    %v64 = vsub.s32 0, %v63
    %v65 = vrot.slane %v60, %v64
    %v69 = vunpack.c.l.s4 1983009808
    %v70 = vunpack.c.0.s8 %v69
    %v71 = vlaneseq
    %v72 = vshrl.u32 %v71, 7
    %v73 = vsub.s32 %v70, %v72
    %v74 = vrot.slane %v27, %v73
    %v75 = vcombine.high %v74, %v74
    %78 = vmatprep.subr.mxu0 0.0
    %79 = vmatpush1.msra.mxu0 %v28
    %80 = vmatprep.subr.mxu0 0.0
    %81 = vmatpush1.msra.mxu0 %v29
    %82 = vmatprep.subr.mxu0 0.0
    %83 = vmatpush1.msra.mxu0 %v30
    %84 = vmatprep.subr.mxu0 0.0
    %85 = vmatpush1.msra.mxu0 %v31
    %86 = vmatprep.subr.mxu0 0.0
    %87 = vmatpush1.msra.mxu0 %v32
    %88 = vmatprep.subr.mxu0 0.0
    %89 = vmatpush1.msra.mxu0 %v33
    %90 = vmatprep.subr.mxu0 0.0
    %91 = vmatpush1.msra.mxu0 %v34
    %92 = vmatprep.subr.mxu0 0.0
    %93 = vmatpush1.msra.mxu0 %v35
    %94 = vmatprep.subr.mxu0 0.0
    %95 = vmatpush1.msra.mxu0 %v36
    %96 = vmatprep.subr.mxu0 0.0
    %97 = vmatpush1.msra.mxu0 %v37
    %98 = vmatprep.subr.mxu0 0.0
    %99 = vmatpush1.msra.mxu0 %v38
    %100 = vmatprep.subr.mxu0 0.0
    %101 = vmatpush1.msra.mxu0 %v39
    %102 = vmatprep.subr.mxu0 0.0
    %103 = vmatpush1.msra.mxu0 %v40
    %104 = vmatprep.subr.mxu0 0.0
    %105 = vmatpush1.msra.mxu0 %v41
    %106 = vmatprep.subr.mxu0 0.0
    %107 = vmatpush1.msra.mxu0 %v42
    %108 = vmatprep.subr.mxu0 0.0
    %109 = vmatpush1.msra.mxu0 %v43
    %110 = vmatprep.subr.mxu0 0.0
    %111 = vmatpush1.msra.mxu0 %v44
    %112 = vmatprep.subr.mxu0 0.0
    %113 = vmatpush1.msra.mxu0 %v45
    %114 = vmatprep.subr.mxu0 0.0
    %115 = vmatpush1.msra.mxu0 %v46
    %116 = vmatprep.subr.mxu0 0.0
    %117 = vmatpush1.msra.mxu0 %v47
    %118 = vmatprep.subr.mxu0 0.0
    %119 = vmatpush1.msra.mxu0 %v48
    %120 = vmatprep.subr.mxu0 0.0
    %121 = vmatpush1.msra.mxu0 %v49
    %122 = vmatprep.subr.mxu0 0.0
    %123 = vmatpush1.msra.mxu0 %v50
    %124 = vmatprep.subr.mxu0 0.0
    %125 = vmatpush1.msra.mxu0 %v51
    %126 = vmatprep.subr.mxu0 0.0
    %127 = vmatpush1.msra.mxu0 %v52
    %128 = vmatprep.subr.mxu0 0.0
    %129 = vmatpush1.msra.mxu0 %v53
    %130 = vmatprep.subr.mxu0 0.0
    %131 = vmatpush1.msra.mxu0 %v54
    %132 = vmatprep.subr.mxu0 0.0
    %133 = vmatpush1.msra.mxu0 %v55
    %134 = vmatprep.subr.mxu0 0.0
    %135 = vmatpush1.msra.mxu0 %v56
    %136 = vmatprep.subr.mxu0 0.0
    %137 = vmatpush1.msra.mxu0 %v57
    %138 = vmatprep.subr.mxu0 0.0
    %139 = vmatpush1.msra.mxu0 %v58
    %140 = vmatprep.subr.mxu0 0.0
    %141 = vmatpush1.msra.mxu0 %v59
    %142 = vmatprep.mubr.f32.mxu0 %v75
    %143 = vmatmul.mubr.f32.gmra.mrb[0].mxu0 %v74
    %v144 = vpop.f32.mrb[0].mxu0
    %v145 = vadd.f32 %v65, %v144
    %v146 = vpop.f32.mrb[0].mxu0
    %147 = vdwg.mxu0
    %vm148 = vcmask 1041408
    %v149 = vsel %vm148, %v145, 0.0
    %v150 = vrot.slane %v149, 4
    %v151 = vadd.f32 %v149, %v150
    %v152 = vrot.slane %v151, 2
    %v153 = vadd.f32 %v151, %v152
    %v154 = vrot.slane %v153, 1
    %v155 = vadd.f32 %v153, %v154
    %v156 = vmul.f32 %v155, 0.5
    %v157 = vmul.f32 %v145, %v145
    %v158 = vsel %vm148, %v157, 0.0
    %v159 = vrot.slane %v158, 4
    %v160 = vadd.f32 %v158, %v159
    %v161 = vrot.slane %v160, 2
    %v162 = vadd.f32 %v160, %v161
    %v163 = vrot.slane %v162, 1
    %v164 = vadd.f32 %v162, %v163
    %v165 = vmul.f32 %v164, 0.5
    %v166 = vmul.f32 %v156, %v156
    %v167 = vsub.f32 %v165, %v166
    %v168 = vmax.f32 %v167, 0.0
    %v169 = vld [vmem:[%s3] sm:$0x1]
    %v170 = vadd.f32 %v168, 1e-05
    %v171 = vrsqrt.pop %v170
    %v172 = vmul.f32 %v169, %v171
    %v174 = vlaneseq
    %v175 = vshrl.u32 %v174, 7
    %v176 = vsub.s32 0, %v175
    %v177 = vrot.slane %v172, %v176
    %v179 = vmul.f32 %v145, %v177
    %v180 = vld [vmem:[%s4] sm:$0x1]
    %v181 = vmul.f32 %v156, %v172
    %v182 = vsub.f32 %v180, %v181
    %v184 = vlaneseq
    %v185 = vshrl.u32 %v184, 7
    %v186 = vsub.s32 0, %v185
    %v187 = vrot.slane %v182, %v186
    %v189 = vadd.f32 %v179, %v187
    %v190 = vmax.f32 %v189, 0.0
    %v191 = vld [vmem:[%s5] sm:$0xff]
    %v192 = vld [vmem:[%s5 + $0x8] sm:$0xff]
    %v193 = vld [vmem:[%s5 + $0x10] sm:$0xff]
    %v194 = vld [vmem:[%s5 + $0x18] sm:$0xff]
    %v195 = vld [vmem:[%s5 + $0x20] sm:$0xff]
    %v196 = vld [vmem:[%s5 + $0x28] sm:$0xff]
    %v197 = vld [vmem:[%s5 + $0x30] sm:$0xff]
    %v198 = vld [vmem:[%s5 + $0x38] sm:$0xff]
    %v199 = vld [vmem:[%s5 + $0x40] sm:$0xff]
    %v200 = vld [vmem:[%s5 + $0x48] sm:$0xff]
    %v201 = vld [vmem:[%s5 + $0x50] sm:$0xff]
    %v202 = vld [vmem:[%s5 + $0x58] sm:$0xff]
    %v203 = vld [vmem:[%s5 + $0x60] sm:$0xff]
    %v204 = vld [vmem:[%s5 + $0x68] sm:$0xff]
    %v205 = vld [vmem:[%s5 + $0x70] sm:$0xff]
    %v206 = vld [vmem:[%s5 + $0x78] sm:$0xff]
    %v207 = vld [vmem:[%s6] sm:$0x1]
    %v209 = vlaneseq
    %v210 = vshrl.u32 %v209, 7
    %v211 = vsub.s32 0, %v210
    %v212 = vrot.slane %v207, %v211
    %214 = vmatprep.subr.mxu0 0.0
    %215 = vmatpush1.msra.mxu0 %v191
    %216 = vmatprep.subr.mxu0 0.0
    %217 = vmatpush1.msra.mxu0 %v192
    %218 = vmatprep.subr.mxu0 0.0
    %219 = vmatpush1.msra.mxu0 %v193
    %220 = vmatprep.subr.mxu0 0.0
    %221 = vmatpush1.msra.mxu0 %v194
    %222 = vmatprep.subr.mxu0 0.0
    %223 = vmatpush1.msra.mxu0 %v195
    %224 = vmatprep.subr.mxu0 0.0
    %225 = vmatpush1.msra.mxu0 %v196
    %226 = vmatprep.subr.mxu0 0.0
    %227 = vmatpush1.msra.mxu0 %v197
    %228 = vmatprep.subr.mxu0 0.0
    %229 = vmatpush1.msra.mxu0 %v198
    %230 = vmatprep.subr.mxu0 0.0
    %231 = vmatpush1.msra.mxu0 %v199
    %232 = vmatprep.subr.mxu0 0.0
    %233 = vmatpush1.msra.mxu0 %v200
    %234 = vmatprep.subr.mxu0 0.0
    %235 = vmatpush1.msra.mxu0 %v201
    %236 = vmatprep.subr.mxu0 0.0
    %237 = vmatpush1.msra.mxu0 %v202
    %238 = vmatprep.subr.mxu0 0.0
    %239 = vmatpush1.msra.mxu0 %v203
    %240 = vmatprep.subr.mxu0 0.0
    %241 = vmatpush1.msra.mxu0 %v204
    %242 = vmatprep.subr.mxu0 0.0
    %243 = vmatpush1.msra.mxu0 %v205
    %244 = vmatprep.subr.mxu0 0.0
    %245 = vmatpush1.msra.mxu0 %v206
    %246 = vmatprep.subr.mxu0 0.0
    %247 = vmatpush1.msra.mxu0 0.0
    %248 = vmatprep.subr.mxu0 0.0
    %249 = vmatpush1.msra.mxu0 0.0
    %250 = vmatprep.subr.mxu0 0.0
    %251 = vmatpush1.msra.mxu0 0.0
    %252 = vmatprep.subr.mxu0 0.0
    %253 = vmatpush1.msra.mxu0 0.0
    %254 = vmatprep.subr.mxu0 0.0
    %255 = vmatpush1.msra.mxu0 0.0
    %256 = vmatprep.subr.mxu0 0.0
    %257 = vmatpush1.msra.mxu0 0.0
    %258 = vmatprep.subr.mxu0 0.0
    %259 = vmatpush1.msra.mxu0 0.0
    %260 = vmatprep.subr.mxu0 0.0
    %261 = vmatpush1.msra.mxu0 0.0
    %262 = vmatprep.subr.mxu0 0.0
    %263 = vmatpush1.msra.mxu0 0.0
    %264 = vmatprep.subr.mxu0 0.0
    %265 = vmatpush1.msra.mxu0 0.0
    %266 = vmatprep.subr.mxu0 0.0
    %267 = vmatpush1.msra.mxu0 0.0
    %268 = vmatprep.subr.mxu0 0.0
    %269 = vmatpush1.msra.mxu0 0.0
    %270 = vmatprep.subr.mxu0 0.0
    %271 = vmatpush1.msra.mxu0 0.0
    %272 = vmatprep.subr.mxu0 0.0
    %273 = vmatpush1.msra.mxu0 0.0
    %274 = vmatprep.subr.mxu0 0.0
    %275 = vmatpush1.msra.mxu0 0.0
    %276 = vmatprep.subr.mxu0 0.0
    %277 = vmatpush1.msra.mxu0 0.0
    %278 = vmatprep.mubr.f32.mxu0 0.0
    %279 = vmatmul.mubr.f32.gmra.mrb[0].mxu0 %v190
    %v280 = vpop.f32.mrb[0].mxu0
    %v281 = vadd.f32 %v212, %v280
    %v282 = vpop.f32.mrb[0].mxu0
    %283 = vdwg.mxu0
    %284 = vst [vmem:[#allocation2] sm:$0x3] %v281
    // Predicated region
    $region30: #{dpcnn_forward.15} parent=1 // pred_check
      _
    $region31: #{dpcnn_forward.15} parent=1 // pred_check_branch
      %286 = sbr.rel (0) target = $region33
    $region32: #{dpcnn_forward.15} parent=1 // pred_region
      %s288 = ssub.s32 32, 32
      %289 = vsyncadd [#allocation3], %s288
      %s291 = sshll.u32 [#allocation2], 4
      %s292 = int_to_ptr.vmem [resolvable:$true] %s291
      %294 = dma.vmem_to_hbm [thread:$0]  %s292, 32, %s7, [#allocation3]
    $region33: #{dpcnn_forward.15} parent=1 // pred_fallthru
      _
    // Predicated region
    $region34: #{dpcnn_forward.15} parent=1 // pred_check
      _
    $region35: #{dpcnn_forward.15} parent=1 // pred_check_branch
      %296 = sbr.rel (0) target = $region37
    $region36: #{dpcnn_forward.15} parent=1 // pred_region
      %297 = dma.done [#allocation3], 32
    $region37: #{dpcnn_forward.15} parent=1 // pred_fallthru
      _
    %298 = vsyncpa [#allocation3], 1

</llo_original>
